<compile_context>
chip_gen: v6e
topology: v6e:2x2x1
jax: 0.10.0
libtpu: 0.0.40
codegen_flags: <defaults>
</compile_context>

<pallas_src>
import functools

import numpy as np
import jax
import jax.numpy as jnp
from jax import lax
from jax.experimental import pallas as pl
from jax.experimental.pallas import tpu as pltpu


# ----------------------------- Pallas kernel --------------------------------
def feblock_kernel(x_ref, w1_ref, b1_ref, w2_ref, b2_ref, out_ref, xcol_ref,
                   *, H, W, Nb):
    # x_ref:   (Nb, C, Lpad) bf16  input, zero-padded to (H+2, W+2) + 2 tail
    # w1_ref:  (Cmid, 9*C)   bf16  grouped 3x3 conv weight (block-diagonal,
    #                              BN1 scale folded in), tap-major columns
    # b1_ref:  (Cmid, 1)     f32   folded BN1 bias (incl. conv1 bias)
    # w2_ref:  (Cout, Cmid)  bf16  1x1 conv weight, BN2 scale folded in
    # b2_ref:  (Cout, 1)     f32   folded BN2 bias (incl. conv2 bias)
    # out_ref: (Nb, Cout, L) f32   output on the (H, W+2) padded lane grid
    # xcol_ref:(9*C, Nb*L)   bf16  VMEM scratch for the im2col matrix
    Wp = W + 2
    L = H * Wp
    C = x_ref.shape[1]

    # In-kernel im2col: 9 static lane slices per image, streamed into scratch.
    # The (H+2, W+2) zero pad makes every tap valid -> no masks at all.
    for b in range(Nb):
        for kh in range(3):
            for kw in range(3):
                t = kh * 3 + kw
                start = kh * Wp + kw                     # static lane offset
                xcol_ref[t * C:(t + 1) * C, b * L:(b + 1) * L] = (
                    x_ref[b, :, start:start + L])        # (C, L) bf16

    # grouped 3x3 conv (one dense block-diagonal matmul) + BN1 bias + ReLU
    a = jnp.dot(w1_ref[...], xcol_ref[...],
                preferred_element_type=jnp.float32)      # (Cmid, Nb*L) f32
    h = jnp.maximum(a + b1_ref[...], 0.0).astype(jnp.bfloat16)

    # 1x1 conv + BN2 bias
    y = jnp.dot(w2_ref[...], h,
                preferred_element_type=jnp.float32)      # (Cout, Nb*L) f32

    # residual add + final ReLU (epilogue math in f32)
    res_start = Wp + 1                                   # padded (h+1, w+1)
    for b in range(Nb):
        res = x_ref[b, :, res_start:res_start + L].astype(jnp.float32)
        out_ref[b] = jnp.maximum(
            res + y[:, b * L:(b + 1) * L] + b2_ref[...], 0.0
        ).astype(out_ref.dtype)


# ------------------------------- wrapper -------------------------------------
def feblock_pallas(x_nchw, params, *, groups=8, eps=1e-5, batch_block=None):
    (w1, b1c, g1, be1, m1, v1, w2, b2c, g2, be2, m2, v2) = params
    N, C, H, W = x_nchw.shape
    Cmid = w1.shape[0]                  # inchannels * 4
    Cout = w2.shape[0]
    assert Cout == C, "residual add requires outchannels == inchannels"
    Wp = W + 2
    L = H * Wp                          # padded-lane output width per image
    Lpad = (H + 2) * Wp + 2             # +2 tail so the (kh=2,kw=2) tap fits

    Nb = batch_block or (2 if N % 2 == 0 else 1)
    assert N % Nb == 0

    # ---- pack grouped-conv weight as dense block-diagonal, fold BN1 scale ----
    in_pg, out_pg = C // groups, Cmid // groups
    co = jnp.arange(Cmid)
    ci = jnp.arange(C)
    gmask = (co[:, None] // out_pg) == (ci[None, :] // in_pg)       # (Cmid, C)
    w1_exp = jnp.take(w1, ci % in_pg, axis=1)                       # (Cmid, C, 3, 3)
    w1_full = jnp.where(gmask[:, :, None, None], w1_exp, 0.0)
    scale1 = g1 / jnp.sqrt(v1 + eps)
    # columns ordered tap-major: index = (kh*3 + kw)*C + ci  (matches kernel)
    w1_packed = (jnp.transpose(w1_full, (0, 2, 3, 1)).reshape(Cmid, 9 * C)
                 * scale1[:, None]).astype(jnp.bfloat16)
    bias1 = ((b1c - m1) * scale1 + be1).reshape(Cmid, 1).astype(jnp.float32)

    # ---- 1x1 conv weight, fold BN2 scale --------------------------------------
    scale2 = g2 / jnp.sqrt(v2 + eps)
    w2_packed = (w2[:, :, 0, 0] * scale2[:, None]).astype(jnp.bfloat16)
    bias2 = ((b2c - m2) * scale2 + be2).reshape(Cout, 1).astype(jnp.float32)

    # ---- channels-first, zero-pad H and W, flatten, bf16 ----------------------
    xpad = jnp.pad(x_nchw.astype(jnp.bfloat16), ((0, 0), (0, 0), (1, 1), (1, 1)))
    xpad = xpad.reshape(N, C, (H + 2) * Wp)
    xpad = jnp.pad(xpad, ((0, 0), (0, 0), (0, Lpad - (H + 2) * Wp)))

    out_flat = pl.pallas_call(
        functools.partial(feblock_kernel, H=H, W=W, Nb=Nb),
        out_shape=jax.ShapeDtypeStruct((N, Cout, L), jnp.float32),
        grid=(N // Nb,),
        in_specs=[
            pl.BlockSpec((Nb, C, Lpad), lambda n: (n, 0, 0)),
            pl.BlockSpec((Cmid, 9 * C), lambda n: (0, 0)),
            pl.BlockSpec((Cmid, 1), lambda n: (0, 0)),
            pl.BlockSpec((Cout, Cmid), lambda n: (0, 0)),
            pl.BlockSpec((Cout, 1), lambda n: (0, 0)),
        ],
        out_specs=pl.BlockSpec((Nb, Cout, L), lambda n: (n, 0, 0)),
        scratch_shapes=[pltpu.VMEM((9 * C, Nb * L), jnp.bfloat16)],
        compiler_params=pltpu.CompilerParams(
            dimension_semantics=("parallel",)),
    )(xpad, w1_packed, bias1, w2_packed, bias2)

    # strip the two junk pad columns per row (free XLA slice in the wrapper)
    return out_flat.reshape(N, Cout, H, Wp)[:, :, :, :W]


# --------------------------- pure-JAX reference ------------------------------
def feblock_ref(x_nchw, params, *, groups=8, eps=1e-5):
    (w1, b1c, g1, be1, m1, v1, w2, b2c, g2, be2, m2, v2) = params
    dn = ("NCHW", "OIHW", "NCHW")
    y = lax.conv_general_dilated(x_nchw, w1, (1, 1), "SAME",
                                 dimension_numbers=dn, feature_group_count=groups)
    y = y + b1c[None, :, None, None]
    y = (y - m1[None, :, None, None]) / jnp.sqrt(v1 + eps)[None, :, None, None]
    y = y * g1[None, :, None, None] + be1[None, :, None, None]
    y = jnp.maximum(y, 0.0)
    y = lax.conv_general_dilated(y, w2, (1, 1), "VALID", dimension_numbers=dn)
    y = y + b2c[None, :, None, None]
    y = (y - m2[None, :, None, None]) / jnp.sqrt(v2 + eps)[None, :, None, None]
    y = y * g2[None, :, None, None] + be2[None, :, None, None]
    return jnp.maximum(x_nchw + y, 0.0)


# ---------------------------------- main -------------------------------------
if __name__ == "__main__":
    # inchannels=32 is the module default (and required for groups=8); N=4 so
    # Nb=2 per grid step gives an even-length grid for both v7x TensorCores.
    N, C, H, W = 4, 32, 16, 16
    Cmid, Cout, groups = C * 4, 32, 8

    key = jax.random.PRNGKey(0)
    ks = jax.random.split(key, 13)
    f32 = jnp.float32
    x = jax.random.normal(ks[0], (N, C, H, W), f32)

    # conv1: grouped 3x3 (128, 4, 3, 3), conv2: 1x1 (32, 128, 1, 1)
    w1 = jax.random.normal(ks[1], (Cmid, C // groups, 3, 3), f32) * 0.1
    b1c = jax.random.normal(ks[2], (Cmid,), f32) * 0.1
    g1 = 1.0 + 0.1 * jax.random.normal(ks[3], (Cmid,), f32)
    be1 = 0.1 * jax.random.normal(ks[4], (Cmid,), f32)
    m1 = 0.1 * jax.random.normal(ks[5], (Cmid,), f32)
    v1 = 0.5 + jnp.abs(jax.random.normal(ks[6], (Cmid,), f32))
    w2 = jax.random.normal(ks[7], (Cout, Cmid, 1, 1), f32) * 0.1
    b2c = jax.random.normal(ks[8], (Cout,), f32) * 0.1
    g2 = 1.0 + 0.1 * jax.random.normal(ks[9], (Cout,), f32)
    be2 = 0.1 * jax.random.normal(ks[10], (Cout,), f32)
    m2 = 0.1 * jax.random.normal(ks[11], (Cout,), f32)
    v2 = 0.5 + jnp.abs(jax.random.normal(ks[12], (Cout,), f32))

    params = (w1, b1c, g1, be1, m1, v1, w2, b2c, g2, be2, m2, v2)

    fe = jax.jit(functools.partial(feblock_pallas, groups=groups))
    out = jax.block_until_ready(fe(x, params))
    ref = jax.block_until_ready(feblock_ref(x, params, groups=groups))

    assert out.shape == (N, Cout, H, W)
    # bf16 input + bf16 matmul operands with f32 accumulation -> relaxed tol.
    np.testing.assert_allclose(np.asarray(out), np.asarray(ref),
                               rtol=5e-2, atol=5e-2)
    print("KERNEL_OK")
</pallas_src>

<mosaic_0001>
module attributes {stable_mosaic.version = 11 : i64} {
  func.func @feblock_kernel(%arg0: i32, %arg1: memref<2x32x326xbf16, #tpu.memory_space<vmem>>, %arg2: memref<128x288xbf16, #tpu.memory_space<vmem>>, %arg3: memref<128x1xf32, #tpu.memory_space<vmem>>, %arg4: memref<32x128xbf16, #tpu.memory_space<vmem>>, %arg5: memref<32x1xf32, #tpu.memory_space<vmem>>, %arg6: memref<2x32x288xf32, #tpu.memory_space<vmem>>, %arg7: memref<288x576xbf16, #tpu.memory_space<vmem>>) attributes {dimension_semantics = [#tpu.dimension_semantics<parallel>], iteration_bounds = array<i64: 2>, scalar_prefetch = 0 : i64, scratch_operands = 1 : i64, tpu.core_type = #tpu.core_type<tc>, window_params = [{transform_indices = @transform_0, window_bounds = array<i64: 2, 32, 326>}, {pipeline_mode = #tpu.pipeline_mode<synchronous>, transform_indices = @transform_1, window_bounds = array<i64: 128, 288>}, {pipeline_mode = #tpu.pipeline_mode<synchronous>, transform_indices = @transform_2, window_bounds = array<i64: 128, 1>}, {pipeline_mode = #tpu.pipeline_mode<synchronous>, transform_indices = @transform_3, window_bounds = array<i64: 32, 128>}, {pipeline_mode = #tpu.pipeline_mode<synchronous>, transform_indices = @transform_4, window_bounds = array<i64: 32, 1>}, {transform_indices = @transform_5, window_bounds = array<i64: 2, 32, 288>}]} {
    %c0 = arith.constant 0 : index
    %c0_0 = arith.constant 0 : index
    %c0_1 = arith.constant 0 : index
    %0 = vector.load %arg1[%c0, %c0_0, %c0_1] : memref<2x32x326xbf16, #tpu.memory_space<vmem>>, vector<1x32x288xbf16>
    %1 = vector.shape_cast %0 : vector<1x32x288xbf16> to vector<32x288xbf16>
    %c0_2 = arith.constant 0 : index
    %c0_3 = arith.constant 0 : index
    %2 = vector.load %arg7[%c0_2, %c0_3] : memref<288x576xbf16, #tpu.memory_space<vmem>>, vector<32x288xbf16>
    tpu.vector_store %arg7[%c0_2, %c0_3], %1 {strides = array<i32>} : memref<288x576xbf16, #tpu.memory_space<vmem>>, vector<32x288xbf16>,
    %c0_4 = arith.constant 0 : index
    %c0_5 = arith.constant 0 : index
    %c1 = arith.constant 1 : index
    %3 = vector.load %arg1[%c0_4, %c0_5, %c1] : memref<2x32x326xbf16, #tpu.memory_space<vmem>>, vector<1x32x288xbf16>
    %4 = vector.shape_cast %3 : vector<1x32x288xbf16> to vector<32x288xbf16>
    %c32 = arith.constant 32 : index
    %c0_6 = arith.constant 0 : index
    %5 = vector.load %arg7[%c32, %c0_6] : memref<288x576xbf16, #tpu.memory_space<vmem>>, vector<32x288xbf16>
    tpu.vector_store %arg7[%c32, %c0_6], %4 {strides = array<i32>} : memref<288x576xbf16, #tpu.memory_space<vmem>>, vector<32x288xbf16>,
    %c0_7 = arith.constant 0 : index
    %c0_8 = arith.constant 0 : index
    %c2 = arith.constant 2 : index
    %6 = vector.load %arg1[%c0_7, %c0_8, %c2] : memref<2x32x326xbf16, #tpu.memory_space<vmem>>, vector<1x32x288xbf16>
    %7 = vector.shape_cast %6 : vector<1x32x288xbf16> to vector<32x288xbf16>
    %c64 = arith.constant 64 : index
    %c0_9 = arith.constant 0 : index
    %8 = vector.load %arg7[%c64, %c0_9] : memref<288x576xbf16, #tpu.memory_space<vmem>>, vector<32x288xbf16>
    tpu.vector_store %arg7[%c64, %c0_9], %7 {strides = array<i32>} : memref<288x576xbf16, #tpu.memory_space<vmem>>, vector<32x288xbf16>,
    %c0_10 = arith.constant 0 : index
    %c0_11 = arith.constant 0 : index
    %c18 = arith.constant 18 : index
    %9 = vector.load %arg1[%c0_10, %c0_11, %c18] : memref<2x32x326xbf16, #tpu.memory_space<vmem>>, vector<1x32x288xbf16>
    %10 = vector.shape_cast %9 : vector<1x32x288xbf16> to vector<32x288xbf16>
    %c96 = arith.constant 96 : index
    %c0_12 = arith.constant 0 : index
    %11 = vector.load %arg7[%c96, %c0_12] : memref<288x576xbf16, #tpu.memory_space<vmem>>, vector<32x288xbf16>
    tpu.vector_store %arg7[%c96, %c0_12], %10 {strides = array<i32>} : memref<288x576xbf16, #tpu.memory_space<vmem>>, vector<32x288xbf16>,
    %c0_13 = arith.constant 0 : index
    %c0_14 = arith.constant 0 : index
    %c19 = arith.constant 19 : index
    %12 = vector.load %arg1[%c0_13, %c0_14, %c19] : memref<2x32x326xbf16, #tpu.memory_space<vmem>>, vector<1x32x288xbf16>
    %13 = vector.shape_cast %12 : vector<1x32x288xbf16> to vector<32x288xbf16>
    %c128 = arith.constant 128 : index
    %c0_15 = arith.constant 0 : index
    %14 = vector.load %arg7[%c128, %c0_15] : memref<288x576xbf16, #tpu.memory_space<vmem>>, vector<32x288xbf16>
    tpu.vector_store %arg7[%c128, %c0_15], %13 {strides = array<i32>} : memref<288x576xbf16, #tpu.memory_space<vmem>>, vector<32x288xbf16>,
    %c0_16 = arith.constant 0 : index
    %c0_17 = arith.constant 0 : index
    %c20 = arith.constant 20 : index
    %15 = vector.load %arg1[%c0_16, %c0_17, %c20] : memref<2x32x326xbf16, #tpu.memory_space<vmem>>, vector<1x32x288xbf16>
    %16 = vector.shape_cast %15 : vector<1x32x288xbf16> to vector<32x288xbf16>
    %c160 = arith.constant 160 : index
    %c0_18 = arith.constant 0 : index
    %17 = vector.load %arg7[%c160, %c0_18] : memref<288x576xbf16, #tpu.memory_space<vmem>>, vector<32x288xbf16>
    tpu.vector_store %arg7[%c160, %c0_18], %16 {strides = array<i32>} : memref<288x576xbf16, #tpu.memory_space<vmem>>, vector<32x288xbf16>,
    %c0_19 = arith.constant 0 : index
    %c0_20 = arith.constant 0 : index
    %c36 = arith.constant 36 : index
    %18 = vector.load %arg1[%c0_19, %c0_20, %c36] : memref<2x32x326xbf16, #tpu.memory_space<vmem>>, vector<1x32x288xbf16>
    %19 = vector.shape_cast %18 : vector<1x32x288xbf16> to vector<32x288xbf16>
    %c192 = arith.constant 192 : index
    %c0_21 = arith.constant 0 : index
    %20 = vector.load %arg7[%c192, %c0_21] : memref<288x576xbf16, #tpu.memory_space<vmem>>, vector<32x288xbf16>
    tpu.vector_store %arg7[%c192, %c0_21], %19 {strides = array<i32>} : memref<288x576xbf16, #tpu.memory_space<vmem>>, vector<32x288xbf16>,
    %c0_22 = arith.constant 0 : index
    %c0_23 = arith.constant 0 : index
    %c37 = arith.constant 37 : index
    %21 = vector.load %arg1[%c0_22, %c0_23, %c37] : memref<2x32x326xbf16, #tpu.memory_space<vmem>>, vector<1x32x288xbf16>
    %22 = vector.shape_cast %21 : vector<1x32x288xbf16> to vector<32x288xbf16>
    %c224 = arith.constant 224 : index
    %c0_24 = arith.constant 0 : index
    %23 = vector.load %arg7[%c224, %c0_24] : memref<288x576xbf16, #tpu.memory_space<vmem>>, vector<32x288xbf16>
    tpu.vector_store %arg7[%c224, %c0_24], %22 {strides = array<i32>} : memref<288x576xbf16, #tpu.memory_space<vmem>>, vector<32x288xbf16>,
    %c0_25 = arith.constant 0 : index
    %c0_26 = arith.constant 0 : index
    %c38 = arith.constant 38 : index
    %24 = vector.load %arg1[%c0_25, %c0_26, %c38] : memref<2x32x326xbf16, #tpu.memory_space<vmem>>, vector<1x32x288xbf16>
    %25 = vector.shape_cast %24 : vector<1x32x288xbf16> to vector<32x288xbf16>
    %c256 = arith.constant 256 : index
    %c0_27 = arith.constant 0 : index
    %26 = vector.load %arg7[%c256, %c0_27] : memref<288x576xbf16, #tpu.memory_space<vmem>>, vector<32x288xbf16>
    tpu.vector_store %arg7[%c256, %c0_27], %25 {strides = array<i32>} : memref<288x576xbf16, #tpu.memory_space<vmem>>, vector<32x288xbf16>,
    %c1_28 = arith.constant 1 : index
    %c0_29 = arith.constant 0 : index
    %c0_30 = arith.constant 0 : index
    %27 = vector.load %arg1[%c1_28, %c0_29, %c0_30] : memref<2x32x326xbf16, #tpu.memory_space<vmem>>, vector<1x32x288xbf16>
    %28 = vector.shape_cast %27 : vector<1x32x288xbf16> to vector<32x288xbf16>
    %c0_31 = arith.constant 0 : index
    %c288 = arith.constant 288 : index
    %29 = vector.load %arg7[%c0_31, %c288] : memref<288x576xbf16, #tpu.memory_space<vmem>>, vector<32x288xbf16>
    tpu.vector_store %arg7[%c0_31, %c288], %28 {strides = array<i32>} : memref<288x576xbf16, #tpu.memory_space<vmem>>, vector<32x288xbf16>,
    %c1_32 = arith.constant 1 : index
    %c0_33 = arith.constant 0 : index
    %c1_34 = arith.constant 1 : index
    %30 = vector.load %arg1[%c1_32, %c0_33, %c1_34] : memref<2x32x326xbf16, #tpu.memory_space<vmem>>, vector<1x32x288xbf16>
    %31 = vector.shape_cast %30 : vector<1x32x288xbf16> to vector<32x288xbf16>
    %c32_35 = arith.constant 32 : index
    %c288_36 = arith.constant 288 : index
    %32 = vector.load %arg7[%c32_35, %c288_36] : memref<288x576xbf16, #tpu.memory_space<vmem>>, vector<32x288xbf16>
    tpu.vector_store %arg7[%c32_35, %c288_36], %31 {strides = array<i32>} : memref<288x576xbf16, #tpu.memory_space<vmem>>, vector<32x288xbf16>,
    %c1_37 = arith.constant 1 : index
    %c0_38 = arith.constant 0 : index
    %c2_39 = arith.constant 2 : index
    %33 = vector.load %arg1[%c1_37, %c0_38, %c2_39] : memref<2x32x326xbf16, #tpu.memory_space<vmem>>, vector<1x32x288xbf16>
    %34 = vector.shape_cast %33 : vector<1x32x288xbf16> to vector<32x288xbf16>
    %c64_40 = arith.constant 64 : index
    %c288_41 = arith.constant 288 : index
    %35 = vector.load %arg7[%c64_40, %c288_41] : memref<288x576xbf16, #tpu.memory_space<vmem>>, vector<32x288xbf16>
    tpu.vector_store %arg7[%c64_40, %c288_41], %34 {strides = array<i32>} : memref<288x576xbf16, #tpu.memory_space<vmem>>, vector<32x288xbf16>,
    %c1_42 = arith.constant 1 : index
    %c0_43 = arith.constant 0 : index
    %c18_44 = arith.constant 18 : index
    %36 = vector.load %arg1[%c1_42, %c0_43, %c18_44] : memref<2x32x326xbf16, #tpu.memory_space<vmem>>, vector<1x32x288xbf16>
    %37 = vector.shape_cast %36 : vector<1x32x288xbf16> to vector<32x288xbf16>
    %c96_45 = arith.constant 96 : index
    %c288_46 = arith.constant 288 : index
    %38 = vector.load %arg7[%c96_45, %c288_46] : memref<288x576xbf16, #tpu.memory_space<vmem>>, vector<32x288xbf16>
    tpu.vector_store %arg7[%c96_45, %c288_46], %37 {strides = array<i32>} : memref<288x576xbf16, #tpu.memory_space<vmem>>, vector<32x288xbf16>,
    %c1_47 = arith.constant 1 : index
    %c0_48 = arith.constant 0 : index
    %c19_49 = arith.constant 19 : index
    %39 = vector.load %arg1[%c1_47, %c0_48, %c19_49] : memref<2x32x326xbf16, #tpu.memory_space<vmem>>, vector<1x32x288xbf16>
    %40 = vector.shape_cast %39 : vector<1x32x288xbf16> to vector<32x288xbf16>
    %c128_50 = arith.constant 128 : index
    %c288_51 = arith.constant 288 : index
    %41 = vector.load %arg7[%c128_50, %c288_51] : memref<288x576xbf16, #tpu.memory_space<vmem>>, vector<32x288xbf16>
    tpu.vector_store %arg7[%c128_50, %c288_51], %40 {strides = array<i32>} : memref<288x576xbf16, #tpu.memory_space<vmem>>, vector<32x288xbf16>,
    %c1_52 = arith.constant 1 : index
    %c0_53 = arith.constant 0 : index
    %c20_54 = arith.constant 20 : index
    %42 = vector.load %arg1[%c1_52, %c0_53, %c20_54] : memref<2x32x326xbf16, #tpu.memory_space<vmem>>, vector<1x32x288xbf16>
    %43 = vector.shape_cast %42 : vector<1x32x288xbf16> to vector<32x288xbf16>
    %c160_55 = arith.constant 160 : index
    %c288_56 = arith.constant 288 : index
    %44 = vector.load %arg7[%c160_55, %c288_56] : memref<288x576xbf16, #tpu.memory_space<vmem>>, vector<32x288xbf16>
    tpu.vector_store %arg7[%c160_55, %c288_56], %43 {strides = array<i32>} : memref<288x576xbf16, #tpu.memory_space<vmem>>, vector<32x288xbf16>,
    %c1_57 = arith.constant 1 : index
    %c0_58 = arith.constant 0 : index
    %c36_59 = arith.constant 36 : index
    %45 = vector.load %arg1[%c1_57, %c0_58, %c36_59] : memref<2x32x326xbf16, #tpu.memory_space<vmem>>, vector<1x32x288xbf16>
    %46 = vector.shape_cast %45 : vector<1x32x288xbf16> to vector<32x288xbf16>
    %c192_60 = arith.constant 192 : index
    %c288_61 = arith.constant 288 : index
    %47 = vector.load %arg7[%c192_60, %c288_61] : memref<288x576xbf16, #tpu.memory_space<vmem>>, vector<32x288xbf16>
    tpu.vector_store %arg7[%c192_60, %c288_61], %46 {strides = array<i32>} : memref<288x576xbf16, #tpu.memory_space<vmem>>, vector<32x288xbf16>,
    %c1_62 = arith.constant 1 : index
    %c0_63 = arith.constant 0 : index
    %c37_64 = arith.constant 37 : index
    %48 = vector.load %arg1[%c1_62, %c0_63, %c37_64] : memref<2x32x326xbf16, #tpu.memory_space<vmem>>, vector<1x32x288xbf16>
    %49 = vector.shape_cast %48 : vector<1x32x288xbf16> to vector<32x288xbf16>
    %c224_65 = arith.constant 224 : index
    %c288_66 = arith.constant 288 : index
    %50 = vector.load %arg7[%c224_65, %c288_66] : memref<288x576xbf16, #tpu.memory_space<vmem>>, vector<32x288xbf16>
    tpu.vector_store %arg7[%c224_65, %c288_66], %49 {strides = array<i32>} : memref<288x576xbf16, #tpu.memory_space<vmem>>, vector<32x288xbf16>,
    %c1_67 = arith.constant 1 : index
    %c0_68 = arith.constant 0 : index
    %c38_69 = arith.constant 38 : index
    %51 = vector.load %arg1[%c1_67, %c0_68, %c38_69] : memref<2x32x326xbf16, #tpu.memory_space<vmem>>, vector<1x32x288xbf16>
    %52 = vector.shape_cast %51 : vector<1x32x288xbf16> to vector<32x288xbf16>
    %c256_70 = arith.constant 256 : index
    %c288_71 = arith.constant 288 : index
    %53 = vector.load %arg7[%c256_70, %c288_71] : memref<288x576xbf16, #tpu.memory_space<vmem>>, vector<32x288xbf16>
    tpu.vector_store %arg7[%c256_70, %c288_71], %52 {strides = array<i32>} : memref<288x576xbf16, #tpu.memory_space<vmem>>, vector<32x288xbf16>,
    %c0_72 = arith.constant 0 : index
    %c0_73 = arith.constant 0 : index
    %54 = vector.load %arg2[%c0_72, %c0_73] : memref<128x288xbf16, #tpu.memory_space<vmem>>, vector<128x288xbf16>
    %c0_74 = arith.constant 0 : index
    %c0_75 = arith.constant 0 : index
    %55 = vector.load %arg7[%c0_74, %c0_75] : memref<288x576xbf16, #tpu.memory_space<vmem>>, vector<288x576xbf16>
    %cst = arith.constant dense<0.000000e+00> : vector<128x576xf32>
    %56 = tpu.matmul %54, %55, %cst {dimension_numbers = #tpu.dot_dimension_numbers<[1], [0], [0], [1], [0, 0, 1, 1], [], []>} : vector<128x288xbf16>, vector<288x576xbf16>, vector<128x576xf32> -> vector<128x576xf32>
    %c0_76 = arith.constant 0 : index
    %c0_77 = arith.constant 0 : index
    %57 = vector.load %arg3[%c0_76, %c0_77] : memref<128x1xf32, #tpu.memory_space<vmem>>, vector<128x1xf32>
    %58 = vector.broadcast %57 : vector<128x1xf32> to vector<128x576xf32>
    %59 = arith.addf %56, %58 : vector<128x576xf32>
    %cst_78 = arith.constant 0.000000e+00 : f32
    %60 = vector.broadcast %cst_78 : f32 to vector<128x576xf32>
    %61 = arith.maximumf %59, %60 : vector<128x576xf32>
    %62 = arith.truncf %61 : vector<128x576xf32> to vector<128x576xbf16>
    %c0_79 = arith.constant 0 : index
    %c0_80 = arith.constant 0 : index
    %63 = vector.load %arg4[%c0_79, %c0_80] : memref<32x128xbf16, #tpu.memory_space<vmem>>, vector<32x128xbf16>
    %cst_81 = arith.constant dense<0.000000e+00> : vector<32x576xf32>
    %64 = tpu.matmul %63, %62, %cst_81 {dimension_numbers = #tpu.dot_dimension_numbers<[1], [0], [0], [1], [0, 0, 1, 1], [], []>} : vector<32x128xbf16>, vector<128x576xbf16>, vector<32x576xf32> -> vector<32x576xf32>
    %c0_82 = arith.constant 0 : index
    %c0_83 = arith.constant 0 : index
    %c19_84 = arith.constant 19 : index
    %65 = vector.load %arg1[%c0_82, %c0_83, %c19_84] : memref<2x32x326xbf16, #tpu.memory_space<vmem>>, vector<1x32x288xbf16>
    %66 = vector.shape_cast %65 : vector<1x32x288xbf16> to vector<32x288xbf16>
    %67 = arith.extf %66 : vector<32x288xbf16> to vector<32x288xf32>
    %68 = vector.extract_strided_slice %64 {offsets = [0, 0], sizes = [32, 288], strides = [1, 1]} : vector<32x576xf32> to vector<32x288xf32>
    %69 = arith.addf %67, %68 : vector<32x288xf32>
    %c0_85 = arith.constant 0 : index
    %c0_86 = arith.constant 0 : index
    %70 = vector.load %arg5[%c0_85, %c0_86] : memref<32x1xf32, #tpu.memory_space<vmem>>, vector<32x1xf32>
    %71 = vector.broadcast %70 : vector<32x1xf32> to vector<32x288xf32>
    %72 = arith.addf %69, %71 : vector<32x288xf32>
    %cst_87 = arith.constant 0.000000e+00 : f32
    %73 = vector.broadcast %cst_87 : f32 to vector<32x288xf32>
    %74 = arith.maximumf %72, %73 : vector<32x288xf32>
    %c0_88 = arith.constant 0 : index
    %c0_89 = arith.constant 0 : index
    %c0_90 = arith.constant 0 : index
    %75 = vector.load %arg6[%c0_88, %c0_89, %c0_90] : memref<2x32x288xf32, #tpu.memory_space<vmem>>, vector<1x32x288xf32>
    %76 = vector.shape_cast %75 : vector<1x32x288xf32> to vector<32x288xf32>
    %77 = vector.shape_cast %74 : vector<32x288xf32> to vector<1x32x288xf32>
    tpu.vector_store %arg6[%c0_88, %c0_89, %c0_90], %77 {strides = array<i32>} : memref<2x32x288xf32, #tpu.memory_space<vmem>>, vector<1x32x288xf32>,
    %c1_91 = arith.constant 1 : index
    %c0_92 = arith.constant 0 : index
    %c19_93 = arith.constant 19 : index
    %78 = vector.load %arg1[%c1_91, %c0_92, %c19_93] : memref<2x32x326xbf16, #tpu.memory_space<vmem>>, vector<1x32x288xbf16>
    %79 = vector.shape_cast %78 : vector<1x32x288xbf16> to vector<32x288xbf16>
    %80 = arith.extf %79 : vector<32x288xbf16> to vector<32x288xf32>
    %81 = vector.extract_strided_slice %64 {offsets = [0, 288], sizes = [32, 288], strides = [1, 1]} : vector<32x576xf32> to vector<32x288xf32>
    %82 = arith.addf %80, %81 : vector<32x288xf32>
    %c0_94 = arith.constant 0 : index
    %c0_95 = arith.constant 0 : index
    %83 = vector.load %arg5[%c0_94, %c0_95] : memref<32x1xf32, #tpu.memory_space<vmem>>, vector<32x1xf32>
    %84 = vector.broadcast %83 : vector<32x1xf32> to vector<32x288xf32>
    %85 = arith.addf %82, %84 : vector<32x288xf32>
    %cst_96 = arith.constant 0.000000e+00 : f32
    %86 = vector.broadcast %cst_96 : f32 to vector<32x288xf32>
    %87 = arith.maximumf %85, %86 : vector<32x288xf32>
    %c1_97 = arith.constant 1 : index
    %c0_98 = arith.constant 0 : index
    %c0_99 = arith.constant 0 : index
    %88 = vector.load %arg6[%c1_97, %c0_98, %c0_99] : memref<2x32x288xf32, #tpu.memory_space<vmem>>, vector<1x32x288xf32>
    %89 = vector.shape_cast %88 : vector<1x32x288xf32> to vector<32x288xf32>
    %90 = vector.shape_cast %87 : vector<32x288xf32> to vector<1x32x288xf32>
    tpu.vector_store %arg6[%c1_97, %c0_98, %c0_99], %90 {strides = array<i32>} : memref<2x32x288xf32, #tpu.memory_space<vmem>>, vector<1x32x288xf32>,
    return
  }
  func.func @transform_0(%arg0: i32) -> (i32, i32, i32) {
    %c0_i32 = arith.constant 0 : i32
    %c0_i32_0 = arith.constant 0 : i32
    %c0_i32_1 = arith.constant 0 : i32
    return %arg0, %c0_i32, %c0_i32_0 : i32, i32, i32
  }
  func.func @transform_1(%arg0: i32) -> (i32, i32) {
    %c0_i32 = arith.constant 0 : i32
    %c0_i32_0 = arith.constant 0 : i32
    %c0_i32_1 = arith.constant 0 : i32
    return %c0_i32, %c0_i32_0 : i32, i32
  }
  func.func @transform_2(%arg0: i32) -> (i32, i32) {
    %c0_i32 = arith.constant 0 : i32
    %c0_i32_0 = arith.constant 0 : i32
    %c0_i32_1 = arith.constant 0 : i32
    return %c0_i32, %c0_i32_0 : i32, i32
  }
  func.func @transform_3(%arg0: i32) -> (i32, i32) {
    %c0_i32 = arith.constant 0 : i32
    %c0_i32_0 = arith.constant 0 : i32
    %c0_i32_1 = arith.constant 0 : i32
    return %c0_i32, %c0_i32_0 : i32, i32
  }
  func.func @transform_4(%arg0: i32) -> (i32, i32) {
    %c0_i32 = arith.constant 0 : i32
    %c0_i32_0 = arith.constant 0 : i32
    %c0_i32_1 = arith.constant 0 : i32
    return %c0_i32, %c0_i32_0 : i32, i32
  }
  func.func @transform_5(%arg0: i32) -> (i32, i32, i32) {
    %c0_i32 = arith.constant 0 : i32
    %c0_i32_0 = arith.constant 0 : i32
    %c0_i32_1 = arith.constant 0 : i32
    return %arg0, %c0_i32, %c0_i32_0 : i32, i32, i32
  }
}

</mosaic_0001>

<llo_original>
// kernel: feblock_pallas.1
$region0: #{feblock_pallas.1}
  #allocation0 [shape = 'u32[]', space=smem, size = 0x4, offset = 0x4, fixed_abs, tag = 'smem constant byte address 0x4 - core index']
  #allocation1 [shape = 'u32[144,128]{1,0:T(1,128)}', space=vmem, size = 0x12000, scoped, tag = 'internal scratch']
  #allocation2 [shape = 'bf16[288,576]{1,0:T(8,128)(2,1)}', space=vmem, size = 0x5a000, scoped, tag = 'scratch operand']
  %s0 = inlined_call_operand.vmem [shape: bf16[4,32,326], index: 0, kind: input, shape index: {}]
  %s1 = inlined_call_operand.vmem [shape: bf16[128,288], index: 1, kind: input, shape index: {}]
  %s2 = inlined_call_operand.vmem [shape: f32[128,1], index: 2, kind: input, shape index: {}]
  %s3 = inlined_call_operand.vmem [shape: bf16[32,128], index: 3, kind: input, shape index: {}]
  %s4 = inlined_call_operand.vmem [shape: f32[32,1], index: 4, kind: input, shape index: {}]
  %s5 = inlined_call_operand.vmem [shape: f32[4,32,288], index: 5, kind: output, shape index: {}]
  %s6 = sld [smem:[#allocation0]]
  $region53: #{feblock_pallas.1} parent=0
    _
  %s8 = ssub.s32 1, %s6
  %s9 = scalar_select 0, %s8, %s6
  loop: start=0, step=1, limit=4
  $region2: #{feblock_pallas.1} parent=0 // loop_pre_header
    _
  $region3: #{feblock_pallas.1} parent=0 // loop_header
    %s11 = sphi 0, %s15
    %p12 = scmp.ge.s32.totalorder %s11, 4
    %s21 = sphi 0, %s23
    %s24 = sphi 0, %s21
    %s25 = sphi 0, %s24
    %s41 = sphi 0, %s25
    %s45 = sphi 0, %s45
    %s47 = sphi 0, %s45
    %s48 = sphi 0, %s47
    %s62 = sphi 0, %s48
    %s66 = sphi 0, %s66
    %s68 = sphi 0, %s66
    %s69 = sphi 0, %s68
    %s83 = sphi 0, %s69
    %s87 = sphi 0, %s87
    %s89 = sphi 0, %s87
    %s90 = sphi 0, %s89
    %s104 = sphi 0, %s90
    %s108 = sphi 0, %s108
    %s110 = sphi 0, %s108
    %s111 = sphi 0, %s110
    %s125 = sphi 0, %s111
    %s131 = sphi 0, %s133
    %s134 = sphi 0, %s131
    %s135 = sphi 0, %s134
    %s151 = sphi 0, %s135
  $region4: #{feblock_pallas.1} parent=0 // loop_header_branch
    %14 = sbr.rel (%p12) target = $region8
  $region5: #{feblock_pallas.1} parent=0 // loop_body
    %s16 = ssub.s32 %s11, 1
    %s17 = ssub.s32 %s11, 2
    %s18 = sadd.s32 %s11, 1
    %s19 = ssub.s32 %s11, %s18
    %p20 = scmp.eq.s32.totalorder %s19, 0
    %s22 = sadd.s32 %s21, 1
    %s23 = scalar_select %p20, %s21, %s22
    %p26 = pneg %p20
    %p27 = scmp.eq.s32.totalorder %s11, 1
    %p28 = por %p26, %p27
    %p29 = scmp.ne.s32.totalorder %s21, %s24
    %p30 = scmp.eq.s32.totalorder %s11, 0
    %p31 = por %p29, %p30
    %p32 = scmp.ne.s32.totalorder %s21, %s24
    %p33 = scmp.eq.s32.totalorder %s16, 1
    %p34 = por %p32, %p33
    %p35 = scmp.ne.s32.totalorder %s24, %s25
    %p36 = scmp.eq.s32.totalorder %s16, 0
    %p37 = por %p35, %p36
    %p38 = scmp.ne.s32.totalorder %s24, %s25
    %p39 = scmp.eq.s32.totalorder %s17, 1
    %p40 = por %p38, %p39
    %p42 = scmp.ne.s32.totalorder %s25, %s41
    %p43 = scmp.eq.s32.totalorder %s17, 0
    %p44 = por %p42, %p43
    %s46 = sadd.s32 %s45, 1
    %p49 = scmp.eq.s32.totalorder %s11, 1
    %p50 = scmp.ne.s32.totalorder %s45, %s47
    %p51 = scmp.eq.s32.totalorder %s11, 0
    %p52 = por %p50, %p51
    %p53 = scmp.ne.s32.totalorder %s45, %s47
    %p54 = scmp.eq.s32.totalorder %s16, 1
    %p55 = por %p53, %p54
    %p56 = scmp.ne.s32.totalorder %s47, %s48
    %p57 = scmp.eq.s32.totalorder %s16, 0
    %p58 = por %p56, %p57
    %p59 = scmp.ne.s32.totalorder %s47, %s48
    %p60 = scmp.eq.s32.totalorder %s17, 1
    %p61 = por %p59, %p60
    %p63 = scmp.ne.s32.totalorder %s48, %s62
    %p64 = scmp.eq.s32.totalorder %s17, 0
    %p65 = por %p63, %p64
    %s67 = sadd.s32 %s66, 1
    %p70 = scmp.eq.s32.totalorder %s11, 1
    %p71 = scmp.ne.s32.totalorder %s66, %s68
    %p72 = scmp.eq.s32.totalorder %s11, 0
    %p73 = por %p71, %p72
    %p74 = scmp.ne.s32.totalorder %s66, %s68
    %p75 = scmp.eq.s32.totalorder %s16, 1
    %p76 = por %p74, %p75
    %p77 = scmp.ne.s32.totalorder %s68, %s69
    %p78 = scmp.eq.s32.totalorder %s16, 0
    %p79 = por %p77, %p78
    %p80 = scmp.ne.s32.totalorder %s68, %s69
    %p81 = scmp.eq.s32.totalorder %s17, 1
    %p82 = por %p80, %p81
    %p84 = scmp.ne.s32.totalorder %s69, %s83
    %p85 = scmp.eq.s32.totalorder %s17, 0
    %p86 = por %p84, %p85
    %s88 = sadd.s32 %s87, 1
    %p91 = scmp.eq.s32.totalorder %s11, 1
    %p92 = scmp.ne.s32.totalorder %s87, %s89
    %p93 = scmp.eq.s32.totalorder %s11, 0
    %p94 = por %p92, %p93
    %p95 = scmp.ne.s32.totalorder %s87, %s89
    %p96 = scmp.eq.s32.totalorder %s16, 1
    %p97 = por %p95, %p96
    %p98 = scmp.ne.s32.totalorder %s89, %s90
    %p99 = scmp.eq.s32.totalorder %s16, 0
    %p100 = por %p98, %p99
    %p101 = scmp.ne.s32.totalorder %s89, %s90
    %p102 = scmp.eq.s32.totalorder %s17, 1
    %p103 = por %p101, %p102
    %p105 = scmp.ne.s32.totalorder %s90, %s104
    %p106 = scmp.eq.s32.totalorder %s17, 0
    %p107 = por %p105, %p106
    %s109 = sadd.s32 %s108, 1
    %p112 = scmp.eq.s32.totalorder %s11, 1
    %p113 = scmp.ne.s32.totalorder %s108, %s110
    %p114 = scmp.eq.s32.totalorder %s11, 0
    %p115 = por %p113, %p114
    %p116 = scmp.ne.s32.totalorder %s108, %s110
    %p117 = scmp.eq.s32.totalorder %s16, 1
    %p118 = por %p116, %p117
    %p119 = scmp.ne.s32.totalorder %s110, %s111
    %p120 = scmp.eq.s32.totalorder %s16, 0
    %p121 = por %p119, %p120
    %p122 = scmp.ne.s32.totalorder %s110, %s111
    %p123 = scmp.eq.s32.totalorder %s17, 1
    %p124 = por %p122, %p123
    %p126 = scmp.ne.s32.totalorder %s111, %s125
    %p127 = scmp.eq.s32.totalorder %s17, 0
    %p128 = por %p126, %p127
    %s129 = ssub.s32 %s11, %s18
    %p130 = scmp.eq.s32.totalorder %s129, 0
    %s132 = sadd.s32 %s131, 1
    %s133 = scalar_select %p130, %s131, %s132
    %p136 = pneg %p130
    %p137 = scmp.eq.s32.totalorder %s11, 1
    %p138 = por %p136, %p137
    %p139 = scmp.ne.s32.totalorder %s131, %s134
    %p140 = scmp.eq.s32.totalorder %s11, 0
    %p141 = por %p139, %p140
    %p142 = scmp.ne.s32.totalorder %s131, %s134
    %p143 = scmp.eq.s32.totalorder %s16, 1
    %p144 = por %p142, %p143
    %p145 = scmp.ne.s32.totalorder %s134, %s135
    %p146 = scmp.eq.s32.totalorder %s16, 0
    %p147 = por %p145, %p146
    %p148 = scmp.ne.s32.totalorder %s134, %s135
    %p149 = scmp.eq.s32.totalorder %s17, 1
    %p150 = por %p148, %p149
    %p152 = scmp.ne.s32.totalorder %s135, %s151
    %p153 = scmp.eq.s32.totalorder %s17, 0
    %p154 = por %p152, %p153
    %p155 = scmp.le.s32.totalorder 1, %s11
    %p156 = scmp.lt.s32.totalorder %s11, 3
    %p157 = pnand %p155, %p156
    %p158 = pneg %p157
    // Predicated region
    $region9: #{feblock_pallas.1} parent=5 // pred_check
      _
    $region10: #{feblock_pallas.1} parent=5 // pred_check_branch
      %160 = sbr.rel (%p157) target = $region12
    $region11: #{feblock_pallas.1} parent=5 // pred_region
      %s161 = ssub.s32 %s11, 1
      // Predicated region
      $region13: #{feblock_pallas.1} parent=11 // pred_check
        %p162 = pneg %p58
      $region14: #{feblock_pallas.1} parent=11 // pred_check_branch
        %164 = sbr.rel (%p162) target = $region16
      $region15: #{feblock_pallas.1} parent=11 // pred_region
        _
      $region16: #{feblock_pallas.1} parent=11 // pred_fallthru
        _
      // Predicated region
      $region17: #{feblock_pallas.1} parent=11 // pred_check
        %p165 = pneg %p79
      $region18: #{feblock_pallas.1} parent=11 // pred_check_branch
        %167 = sbr.rel (%p165) target = $region20
      $region19: #{feblock_pallas.1} parent=11 // pred_region
        _
      $region20: #{feblock_pallas.1} parent=11 // pred_fallthru
        _
      // Predicated region
      $region21: #{feblock_pallas.1} parent=11 // pred_check
        %p168 = pneg %p100
      $region22: #{feblock_pallas.1} parent=11 // pred_check_branch
        %170 = sbr.rel (%p168) target = $region24
      $region23: #{feblock_pallas.1} parent=11 // pred_region
        _
      $region24: #{feblock_pallas.1} parent=11 // pred_fallthru
        _
      // Predicated region
      $region25: #{feblock_pallas.1} parent=11 // pred_check
        %p171 = pneg %p121
      $region26: #{feblock_pallas.1} parent=11 // pred_check_branch
        %173 = sbr.rel (%p171) target = $region28
      $region27: #{feblock_pallas.1} parent=11 // pred_region
        _
      $region28: #{feblock_pallas.1} parent=11 // pred_fallthru
        _
    $region12: #{feblock_pallas.1} parent=5 // pred_fallthru
      _
    %p174 = scmp.lt.s32.totalorder %s11, 2
    // Predicated region
    $region29: #{feblock_pallas.1} parent=5 // pred_check
      %p175 = pneg %p174
    $region30: #{feblock_pallas.1} parent=5 // pred_check_branch
      %177 = sbr.rel (%p175) target = $region32
    $region31: #{feblock_pallas.1} parent=5 // pred_region
      // Predicated region
      $region33: #{feblock_pallas.1} parent=31 // pred_check
        %p178 = pneg %p31
      $region34: #{feblock_pallas.1} parent=31 // pred_check_branch
        %180 = sbr.rel (%p178) target = $region36
      $region35: #{feblock_pallas.1} parent=31 // pred_region
        %s181 = smul.u32 2, %s11
        %p182 = scmp.lt.s32.totalorder %s181, 3
        %s183 = scalar_select %p182, %s181, 3
        %s184 = smul.addr %s183, 12
        %s185 = smul.addr %s184, 4
        %s186 = scalar_lea.vmem %s0, %s185
        %s187 = smul.u32 2, %s11
      $region36: #{feblock_pallas.1} parent=31 // pred_fallthru
        _
    $region32: #{feblock_pallas.1} parent=5 // pred_fallthru
      _
    %p188 = scmp.le.s32.totalorder 1, %s11
    %p189 = scmp.lt.s32.totalorder %s11, 3
    %p190 = pnand %p188, %p189
    %p191 = pneg %p190
    // Predicated region
    $region37: #{feblock_pallas.1} parent=5 // pred_check
      _
    $region38: #{feblock_pallas.1} parent=5 // pred_check_branch
      %193 = sbr.rel (%p190) target = $region40
    $region39: #{feblock_pallas.1} parent=5 // pred_region
      %s194 = ssub.s32 %s11, 1
      %s195 = smul.u32 2, %s16
      %p196 = scmp.lt.s32.totalorder %s195, 3
      %s197 = scalar_select %p196, %s195, 3
      %s198 = smul.addr %s197, 12
      %s199 = smul.addr %s198, 4
      %s200 = scalar_lea.vmem %s0, %s199
      %p201 = pneg %p37
      %p202 = pneg %p34
      %p203 = pneg %p58
      %p204 = pneg %p55
      %p205 = pneg %p79
      %p206 = pneg %p76
      %p207 = pneg %p100
      %p208 = pneg %p97
      %p209 = pneg %p121
      %p210 = pneg %p118
      %p211 = pneg %p147
      %p212 = pneg %p144
      %s213 = smul.u32 2, %s16
      %p214 = scmp.lt.s32.totalorder %s213, 3
      %s215 = scalar_select %p214, %s213, 3
      %s216 = smul.addr %s215, 12
      %s217 = smul.addr %s216, 8
      %s218 = scalar_lea.vmem %s5, %s217
      %s219 = smul.u32 2, %s16
      %p220 = scmp.lt.s32.totalorder %s219, 3
      %s221 = scalar_select %p220, %s219, 3
      %s222 = smul.addr %s221, 12
      %s223 = smul.addr %s222, 4
      %s224 = scalar_lea.vmem %s0, %s223
      %s225 = smul.u32 2, %s16
      %s226 = smul.u32 2, %s16
      %p227 = scmp.lt.s32.totalorder %s226, 3
      %s228 = scalar_select %p227, %s226, 3
      %s229 = smul.addr %s228, 12
      %s230 = smul.addr %s229, 8
      %s231 = scalar_lea.vmem %s5, %s230
      %s232 = smul.u32 2, %s16
      %v234 = vld [vmem:[%s224] sm:$0xff]
      %v235 = vld [vmem:[%s224 + $0x8] sm:$0xf]
      %v236 = vld [vmem:[%s224 + $0xc] sm:$0xff]
      %v237 = vld [vmem:[%s224 + $0x14] sm:$0xf]
      %v238 = vld [vmem:[%s224 + $0x18] sm:$0xff]
      %v239 = vld [vmem:[%s224 + $0x20] sm:$0xf]
      %v240 = vld [vmem:[%s224 + $0x24] sm:$0xff]
      %v241 = vld [vmem:[%s224 + $0x2c] sm:$0xf]
      %242 = vst [vmem:[#allocation2] sm:$0xff] %v234
      %vm243 = vcmask 257024
      %244 = vst.msk [vmem:[#allocation2 + $0x8] sm:$0xf] %vm243, %v235
      %245 = vst [vmem:[#allocation2 + $0x14] sm:$0xff] %v236
      %246 = vst.msk [vmem:[#allocation2 + $0x1c] sm:$0xf] %vm243, %v237
      %247 = vst [vmem:[#allocation2 + $0x28] sm:$0xff] %v238
      %248 = vst.msk [vmem:[#allocation2 + $0x30] sm:$0xf] %vm243, %v239
      %249 = vst [vmem:[#allocation2 + $0x3c] sm:$0xff] %v240
      %250 = vst.msk [vmem:[#allocation2 + $0x44] sm:$0xf] %vm243, %v241
      %v251 = vld [vmem:[%s224] sm:$0xff]
      %v252 = vld [vmem:[%s224 + $0x8] sm:$0xf]
      %v253 = vld [vmem:[%s224 + $0xc] sm:$0xff]
      %v254 = vld [vmem:[%s224 + $0x14] sm:$0xf]
      %v255 = vld [vmem:[%s224 + $0x18] sm:$0xff]
      %v256 = vld [vmem:[%s224 + $0x20] sm:$0xf]
      %v257 = vld [vmem:[%s224 + $0x24] sm:$0xff]
      %v258 = vld [vmem:[%s224 + $0x2c] sm:$0xf]
      %267 = vrot.lane.b32.xlu0 %v251, 127
      %v268 = vpop.permute.xlu0 %267
      %269 = vrot.lane.b32.xlu0 %v252, 127
      %v270 = vpop.permute.xlu0 %269
      %271 = vrot.lane.b32.xlu0 %v253, 127
      %v272 = vpop.permute.xlu0 %271
      %273 = vrot.lane.b32.xlu0 %v254, 127
      %v274 = vpop.permute.xlu0 %273
      %275 = vrot.lane.b32.xlu0 %v255, 127
      %v276 = vpop.permute.xlu0 %275
      %277 = vrot.lane.b32.xlu0 %v256, 127
      %v278 = vpop.permute.xlu0 %277
      %279 = vrot.lane.b32.xlu0 %v257, 127
      %v280 = vpop.permute.xlu0 %279
      %281 = vrot.lane.b32.xlu0 %v258, 127
      %v282 = vpop.permute.xlu0 %281
      %v283 = vrot.slane %v268, 4
      %v284 = vrot.slane %v270, 4
      %v285 = vrot.slane %v272, 4
      %v286 = vrot.slane %v274, 4
      %v287 = vrot.slane %v276, 4
      %v288 = vrot.slane %v278, 4
      %v289 = vrot.slane %v280, 4
      %v290 = vrot.slane %v282, 4
      %vm291 = vcmask 1043456
      %v292 = vsel %vm291, %v283, %v284
      %vm293 = vcmask 1039360
      %v294 = vsel %vm293, %v268, %v292
      %v295 = vsel %vm291, %v285, %v286
      %v296 = vsel %vm293, %v272, %v295
      %v297 = vsel %vm291, %v287, %v288
      %v298 = vsel %vm293, %v276, %v297
      %v299 = vsel %vm291, %v289, %v290
      %v300 = vsel %vm293, %v280, %v299
      %309 = vst [vmem:[#allocation2 + $0x50] sm:$0xff] %v294
      %310 = vst.msk [vmem:[#allocation2 + $0x58] sm:$0xf] %vm243, %v270
      %311 = vst [vmem:[#allocation2 + $0x64] sm:$0xff] %v296
      %312 = vst.msk [vmem:[#allocation2 + $0x6c] sm:$0xf] %vm243, %v274
      %313 = vst [vmem:[#allocation2 + $0x78] sm:$0xff] %v298
      %314 = vst.msk [vmem:[#allocation2 + $0x80] sm:$0xf] %vm243, %v278
      %315 = vst [vmem:[#allocation2 + $0x8c] sm:$0xff] %v300
      %316 = vst.msk [vmem:[#allocation2 + $0x94] sm:$0xf] %vm243, %v282
      %v317 = vld [vmem:[%s224] sm:$0xff]
      %v318 = vld [vmem:[%s224 + $0x8] sm:$0xf]
      %v319 = vld [vmem:[%s224 + $0xc] sm:$0xff]
      %v320 = vld [vmem:[%s224 + $0x14] sm:$0xf]
      %v321 = vld [vmem:[%s224 + $0x18] sm:$0xff]
      %v322 = vld [vmem:[%s224 + $0x20] sm:$0xf]
      %v323 = vld [vmem:[%s224 + $0x24] sm:$0xff]
      %v324 = vld [vmem:[%s224 + $0x2c] sm:$0xf]
      %333 = vrot.lane.b32.xlu0 %v317, 126
      %v334 = vpop.permute.xlu0 %333
      %335 = vrot.lane.b32.xlu0 %v318, 126
      %v336 = vpop.permute.xlu0 %335
      %337 = vrot.lane.b32.xlu0 %v319, 126
      %v338 = vpop.permute.xlu0 %337
      %339 = vrot.lane.b32.xlu0 %v320, 126
      %v340 = vpop.permute.xlu0 %339
      %341 = vrot.lane.b32.xlu0 %v321, 126
      %v342 = vpop.permute.xlu0 %341
      %343 = vrot.lane.b32.xlu0 %v322, 126
      %v344 = vpop.permute.xlu0 %343
      %345 = vrot.lane.b32.xlu0 %v323, 126
      %v346 = vpop.permute.xlu0 %345
      %347 = vrot.lane.b32.xlu0 %v324, 126
      %v348 = vpop.permute.xlu0 %347
      %v349 = vrot.slane %v334, 4
      %v350 = vrot.slane %v336, 4
      %v351 = vrot.slane %v338, 4
      %v352 = vrot.slane %v340, 4
      %v353 = vrot.slane %v342, 4
      %v354 = vrot.slane %v344, 4
      %v355 = vrot.slane %v346, 4
      %v356 = vrot.slane %v348, 4
      %v357 = vsel %vm291, %v349, %v350
      %vm358 = vcmask 1031168
      %v359 = vsel %vm358, %v334, %v357
      %v360 = vsel %vm291, %v351, %v352
      %v361 = vsel %vm358, %v338, %v360
      %v362 = vsel %vm291, %v353, %v354
      %v363 = vsel %vm358, %v342, %v362
      %v364 = vsel %vm291, %v355, %v356
      %v365 = vsel %vm358, %v346, %v364
      %374 = vst [vmem:[#allocation2 + $0xa0] sm:$0xff] %v359
      %375 = vst.msk [vmem:[#allocation2 + $0xa8] sm:$0xf] %vm243, %v336
      %376 = vst [vmem:[#allocation2 + $0xb4] sm:$0xff] %v361
      %377 = vst.msk [vmem:[#allocation2 + $0xbc] sm:$0xf] %vm243, %v340
      %378 = vst [vmem:[#allocation2 + $0xc8] sm:$0xff] %v363
      %379 = vst.msk [vmem:[#allocation2 + $0xd0] sm:$0xf] %vm243, %v344
      %380 = vst [vmem:[#allocation2 + $0xdc] sm:$0xff] %v365
      %381 = vst.msk [vmem:[#allocation2 + $0xe4] sm:$0xf] %vm243, %v348
      %v382 = vld [vmem:[%s224] sm:$0xff]
      %v383 = vld [vmem:[%s224 + $0x8] sm:$0xf]
      %v384 = vld [vmem:[%s224 + $0xc] sm:$0xff]
      %v385 = vld [vmem:[%s224 + $0x14] sm:$0xf]
      %v386 = vld [vmem:[%s224 + $0x18] sm:$0xff]
      %v387 = vld [vmem:[%s224 + $0x20] sm:$0xf]
      %v388 = vld [vmem:[%s224 + $0x24] sm:$0xff]
      %v389 = vld [vmem:[%s224 + $0x2c] sm:$0xf]
      %398 = vrot.lane.b32.xlu0 %v382, 110
      %v399 = vpop.permute.xlu0 %398
      %400 = vrot.lane.b32.xlu0 %v383, 110
      %v401 = vpop.permute.xlu0 %400
      %402 = vrot.lane.b32.xlu0 %v384, 110
      %v403 = vpop.permute.xlu0 %402
      %404 = vrot.lane.b32.xlu0 %v385, 110
      %v405 = vpop.permute.xlu0 %404
      %406 = vrot.lane.b32.xlu0 %v386, 110
      %v407 = vpop.permute.xlu0 %406
      %408 = vrot.lane.b32.xlu0 %v387, 110
      %v409 = vpop.permute.xlu0 %408
      %410 = vrot.lane.b32.xlu0 %v388, 110
      %v411 = vpop.permute.xlu0 %410
      %412 = vrot.lane.b32.xlu0 %v389, 110
      %v413 = vpop.permute.xlu0 %412
      %v414 = vrot.slane %v399, 4
      %v415 = vrot.slane %v401, 4
      %v416 = vrot.slane %v403, 4
      %v417 = vrot.slane %v405, 4
      %v418 = vrot.slane %v407, 4
      %v419 = vrot.slane %v409, 4
      %v420 = vrot.slane %v411, 4
      %v421 = vrot.slane %v413, 4
      %v422 = vsel %vm291, %v414, %v415
      %vm423 = vcmask 900096
      %v424 = vsel %vm423, %v399, %v422
      %v425 = vsel %vm291, %v416, %v417
      %v426 = vsel %vm423, %v403, %v425
      %v427 = vsel %vm291, %v418, %v419
      %v428 = vsel %vm423, %v407, %v427
      %v429 = vsel %vm291, %v420, %v421
      %v430 = vsel %vm423, %v411, %v429
      %439 = vst [vmem:[#allocation2 + $0xf0] sm:$0xff] %v424
      %440 = vst.msk [vmem:[#allocation2 + $0xf8] sm:$0xf] %vm243, %v401
      %441 = vst [vmem:[#allocation2 + $0x104] sm:$0xff] %v426
      %442 = vst.msk [vmem:[#allocation2 + $0x10c] sm:$0xf] %vm243, %v405
      %443 = vst [vmem:[#allocation2 + $0x118] sm:$0xff] %v428
      %444 = vst.msk [vmem:[#allocation2 + $0x120] sm:$0xf] %vm243, %v409
      %445 = vst [vmem:[#allocation2 + $0x12c] sm:$0xff] %v430
      %446 = vst.msk [vmem:[#allocation2 + $0x134] sm:$0xf] %vm243, %v413
      %v447 = vld [vmem:[%s224] sm:$0xff]
      %v448 = vld [vmem:[%s224 + $0x8] sm:$0xf]
      %v449 = vld [vmem:[%s224 + $0xc] sm:$0xff]
      %v450 = vld [vmem:[%s224 + $0x14] sm:$0xf]
      %v451 = vld [vmem:[%s224 + $0x18] sm:$0xff]
      %v452 = vld [vmem:[%s224 + $0x20] sm:$0xf]
      %v453 = vld [vmem:[%s224 + $0x24] sm:$0xff]
      %v454 = vld [vmem:[%s224 + $0x2c] sm:$0xf]
      %463 = vrot.lane.b32.xlu0 %v447, 109
      %v464 = vpop.permute.xlu0 %463
      %465 = vrot.lane.b32.xlu0 %v448, 109
      %v466 = vpop.permute.xlu0 %465
      %467 = vrot.lane.b32.xlu0 %v449, 109
      %v468 = vpop.permute.xlu0 %467
      %469 = vrot.lane.b32.xlu0 %v450, 109
      %v470 = vpop.permute.xlu0 %469
      %471 = vrot.lane.b32.xlu0 %v451, 109
      %v472 = vpop.permute.xlu0 %471
      %473 = vrot.lane.b32.xlu0 %v452, 109
      %v474 = vpop.permute.xlu0 %473
      %475 = vrot.lane.b32.xlu0 %v453, 109
      %v476 = vpop.permute.xlu0 %475
      %477 = vrot.lane.b32.xlu0 %v454, 109
      %v478 = vpop.permute.xlu0 %477
      %v479 = vrot.slane %v464, 4
      %v480 = vrot.slane %v466, 4
      %v481 = vrot.slane %v468, 4
      %v482 = vrot.slane %v470, 4
      %v483 = vrot.slane %v472, 4
      %v484 = vrot.slane %v474, 4
      %v485 = vrot.slane %v476, 4
      %v486 = vrot.slane %v478, 4
      %v487 = vsel %vm291, %v479, %v480
      %vm488 = vcmask 891904
      %v489 = vsel %vm488, %v464, %v487
      %v490 = vsel %vm291, %v481, %v482
      %v491 = vsel %vm488, %v468, %v490
      %v492 = vsel %vm291, %v483, %v484
      %v493 = vsel %vm488, %v472, %v492
      %v494 = vsel %vm291, %v485, %v486
      %v495 = vsel %vm488, %v476, %v494
      %504 = vst [vmem:[#allocation2 + $0x140] sm:$0xff] %v489
      %505 = vst.msk [vmem:[#allocation2 + $0x148] sm:$0xf] %vm243, %v466
      %506 = vst [vmem:[#allocation2 + $0x154] sm:$0xff] %v491
      %507 = vst.msk [vmem:[#allocation2 + $0x15c] sm:$0xf] %vm243, %v470
      %508 = vst [vmem:[#allocation2 + $0x168] sm:$0xff] %v493
      %509 = vst.msk [vmem:[#allocation2 + $0x170] sm:$0xf] %vm243, %v474
      %510 = vst [vmem:[#allocation2 + $0x17c] sm:$0xff] %v495
      %511 = vst.msk [vmem:[#allocation2 + $0x184] sm:$0xf] %vm243, %v478
      %v512 = vld [vmem:[%s224] sm:$0xff]
      %v513 = vld [vmem:[%s224 + $0x8] sm:$0xf]
      %v514 = vld [vmem:[%s224 + $0xc] sm:$0xff]
      %v515 = vld [vmem:[%s224 + $0x14] sm:$0xf]
      %v516 = vld [vmem:[%s224 + $0x18] sm:$0xff]
      %v517 = vld [vmem:[%s224 + $0x20] sm:$0xf]
      %v518 = vld [vmem:[%s224 + $0x24] sm:$0xff]
      %v519 = vld [vmem:[%s224 + $0x2c] sm:$0xf]
      %528 = vrot.lane.b32.xlu0 %v512, 108
      %v529 = vpop.permute.xlu0 %528
      %530 = vrot.lane.b32.xlu0 %v513, 108
      %v531 = vpop.permute.xlu0 %530
      %532 = vrot.lane.b32.xlu0 %v514, 108
      %v533 = vpop.permute.xlu0 %532
      %534 = vrot.lane.b32.xlu0 %v515, 108
      %v535 = vpop.permute.xlu0 %534
      %536 = vrot.lane.b32.xlu0 %v516, 108
      %v537 = vpop.permute.xlu0 %536
      %538 = vrot.lane.b32.xlu0 %v517, 108
      %v539 = vpop.permute.xlu0 %538
      %540 = vrot.lane.b32.xlu0 %v518, 108
      %v541 = vpop.permute.xlu0 %540
      %542 = vrot.lane.b32.xlu0 %v519, 108
      %v543 = vpop.permute.xlu0 %542
      %v544 = vrot.slane %v529, 4
      %v545 = vrot.slane %v531, 4
      %v546 = vrot.slane %v533, 4
      %v547 = vrot.slane %v535, 4
      %v548 = vrot.slane %v537, 4
      %v549 = vrot.slane %v539, 4
      %v550 = vrot.slane %v541, 4
      %v551 = vrot.slane %v543, 4
      %v552 = vsel %vm291, %v544, %v545
      %vm553 = vcmask 883712
      %v554 = vsel %vm553, %v529, %v552
      %v555 = vsel %vm291, %v546, %v547
      %v556 = vsel %vm553, %v533, %v555
      %v557 = vsel %vm291, %v548, %v549
      %v558 = vsel %vm553, %v537, %v557
      %v559 = vsel %vm291, %v550, %v551
      %v560 = vsel %vm553, %v541, %v559
      %569 = vst [vmem:[#allocation2 + $0x190] sm:$0xff] %v554
      %570 = vst.msk [vmem:[#allocation2 + $0x198] sm:$0xf] %vm243, %v531
      %571 = vst [vmem:[#allocation2 + $0x1a4] sm:$0xff] %v556
      %572 = vst.msk [vmem:[#allocation2 + $0x1ac] sm:$0xf] %vm243, %v535
      %573 = vst [vmem:[#allocation2 + $0x1b8] sm:$0xff] %v558
      %574 = vst.msk [vmem:[#allocation2 + $0x1c0] sm:$0xf] %vm243, %v539
      %575 = vst [vmem:[#allocation2 + $0x1cc] sm:$0xff] %v560
      %576 = vst.msk [vmem:[#allocation2 + $0x1d4] sm:$0xf] %vm243, %v543
      %v577 = vld [vmem:[%s224] sm:$0xff]
      %v578 = vld [vmem:[%s224 + $0x8] sm:$0xf]
      %v579 = vld [vmem:[%s224 + $0xc] sm:$0xff]
      %v580 = vld [vmem:[%s224 + $0x14] sm:$0xf]
      %v581 = vld [vmem:[%s224 + $0x18] sm:$0xff]
      %v582 = vld [vmem:[%s224 + $0x20] sm:$0xf]
      %v583 = vld [vmem:[%s224 + $0x24] sm:$0xff]
      %v584 = vld [vmem:[%s224 + $0x2c] sm:$0xf]
      %593 = vrot.lane.b32.xlu0 %v577, 92
      %v594 = vpop.permute.xlu0 %593
      %595 = vrot.lane.b32.xlu0 %v578, 92
      %v596 = vpop.permute.xlu0 %595
      %597 = vrot.lane.b32.xlu0 %v579, 92
      %v598 = vpop.permute.xlu0 %597
      %599 = vrot.lane.b32.xlu0 %v580, 92
      %v600 = vpop.permute.xlu0 %599
      %601 = vrot.lane.b32.xlu0 %v581, 92
      %v602 = vpop.permute.xlu0 %601
      %603 = vrot.lane.b32.xlu0 %v582, 92
      %v604 = vpop.permute.xlu0 %603
      %605 = vrot.lane.b32.xlu0 %v583, 92
      %v606 = vpop.permute.xlu0 %605
      %607 = vrot.lane.b32.xlu0 %v584, 92
      %v608 = vpop.permute.xlu0 %607
      %v609 = vrot.slane %v594, 4
      %v610 = vrot.slane %v596, 4
      %v611 = vrot.slane %v598, 4
      %v612 = vrot.slane %v600, 4
      %v613 = vrot.slane %v602, 4
      %v614 = vrot.slane %v604, 4
      %v615 = vrot.slane %v606, 4
      %v616 = vrot.slane %v608, 4
      %v617 = vsel %vm291, %v609, %v610
      %vm618 = vcmask 752640
      %v619 = vsel %vm618, %v594, %v617
      %v620 = vsel %vm291, %v611, %v612
      %v621 = vsel %vm618, %v598, %v620
      %v622 = vsel %vm291, %v613, %v614
      %v623 = vsel %vm618, %v602, %v622
      %v624 = vsel %vm291, %v615, %v616
      %v625 = vsel %vm618, %v606, %v624
      %634 = vst [vmem:[#allocation2 + $0x1e0] sm:$0xff] %v619
      %635 = vst.msk [vmem:[#allocation2 + $0x1e8] sm:$0xf] %vm243, %v596
      %636 = vst [vmem:[#allocation2 + $0x1f4] sm:$0xff] %v621
      %637 = vst.msk [vmem:[#allocation2 + $0x1fc] sm:$0xf] %vm243, %v600
      %638 = vst [vmem:[#allocation2 + $0x208] sm:$0xff] %v623
      %639 = vst.msk [vmem:[#allocation2 + $0x210] sm:$0xf] %vm243, %v604
      %640 = vst [vmem:[#allocation2 + $0x21c] sm:$0xff] %v625
      %641 = vst.msk [vmem:[#allocation2 + $0x224] sm:$0xf] %vm243, %v608
      %v642 = vld [vmem:[%s224] sm:$0xff]
      %v643 = vld [vmem:[%s224 + $0x8] sm:$0xf]
      %v644 = vld [vmem:[%s224 + $0xc] sm:$0xff]
      %v645 = vld [vmem:[%s224 + $0x14] sm:$0xf]
      %v646 = vld [vmem:[%s224 + $0x18] sm:$0xff]
      %v647 = vld [vmem:[%s224 + $0x20] sm:$0xf]
      %v648 = vld [vmem:[%s224 + $0x24] sm:$0xff]
      %v649 = vld [vmem:[%s224 + $0x2c] sm:$0xf]
      %658 = vrot.lane.b32.xlu0 %v642, 91
      %v659 = vpop.permute.xlu0 %658
      %660 = vrot.lane.b32.xlu0 %v643, 91
      %v661 = vpop.permute.xlu0 %660
      %662 = vrot.lane.b32.xlu0 %v644, 91
      %v663 = vpop.permute.xlu0 %662
      %664 = vrot.lane.b32.xlu0 %v645, 91
      %v665 = vpop.permute.xlu0 %664
      %666 = vrot.lane.b32.xlu0 %v646, 91
      %v667 = vpop.permute.xlu0 %666
      %668 = vrot.lane.b32.xlu0 %v647, 91
      %v669 = vpop.permute.xlu0 %668
      %670 = vrot.lane.b32.xlu0 %v648, 91
      %v671 = vpop.permute.xlu0 %670
      %672 = vrot.lane.b32.xlu0 %v649, 91
      %v673 = vpop.permute.xlu0 %672
      %v674 = vrot.slane %v659, 4
      %v675 = vrot.slane %v661, 4
      %v676 = vrot.slane %v663, 4
      %v677 = vrot.slane %v665, 4
      %v678 = vrot.slane %v667, 4
      %v679 = vrot.slane %v669, 4
      %v680 = vrot.slane %v671, 4
      %v681 = vrot.slane %v673, 4
      %v682 = vsel %vm291, %v674, %v675
      %vm683 = vcmask 744448
      %v684 = vsel %vm683, %v659, %v682
      %v685 = vsel %vm291, %v676, %v677
      %v686 = vsel %vm683, %v663, %v685
      %v687 = vsel %vm291, %v678, %v679
      %v688 = vsel %vm683, %v667, %v687
      %v689 = vsel %vm291, %v680, %v681
      %v690 = vsel %vm683, %v671, %v689
      %699 = vst [vmem:[#allocation2 + $0x230] sm:$0xff] %v684
      %700 = vst.msk [vmem:[#allocation2 + $0x238] sm:$0xf] %vm243, %v661
      %701 = vst [vmem:[#allocation2 + $0x244] sm:$0xff] %v686
      %702 = vst.msk [vmem:[#allocation2 + $0x24c] sm:$0xf] %vm243, %v665
      %703 = vst [vmem:[#allocation2 + $0x258] sm:$0xff] %v688
      %704 = vst.msk [vmem:[#allocation2 + $0x260] sm:$0xf] %vm243, %v669
      %705 = vst [vmem:[#allocation2 + $0x26c] sm:$0xff] %v690
      %706 = vst.msk [vmem:[#allocation2 + $0x274] sm:$0xf] %vm243, %v673
      %v707 = vld [vmem:[%s224] sm:$0xff]
      %v708 = vld [vmem:[%s224 + $0x8] sm:$0xf]
      %v709 = vld [vmem:[%s224 + $0xc] sm:$0xff]
      %v710 = vld [vmem:[%s224 + $0x14] sm:$0xf]
      %v711 = vld [vmem:[%s224 + $0x18] sm:$0xff]
      %v712 = vld [vmem:[%s224 + $0x20] sm:$0xf]
      %v713 = vld [vmem:[%s224 + $0x24] sm:$0xff]
      %v714 = vld [vmem:[%s224 + $0x2c] sm:$0xf]
      %723 = vrot.lane.b32.xlu0 %v707, 90
      %v724 = vpop.permute.xlu0 %723
      %725 = vrot.lane.b32.xlu0 %v708, 90
      %v726 = vpop.permute.xlu0 %725
      %727 = vrot.lane.b32.xlu0 %v709, 90
      %v728 = vpop.permute.xlu0 %727
      %729 = vrot.lane.b32.xlu0 %v710, 90
      %v730 = vpop.permute.xlu0 %729
      %731 = vrot.lane.b32.xlu0 %v711, 90
      %v732 = vpop.permute.xlu0 %731
      %733 = vrot.lane.b32.xlu0 %v712, 90
      %v734 = vpop.permute.xlu0 %733
      %735 = vrot.lane.b32.xlu0 %v713, 90
      %v736 = vpop.permute.xlu0 %735
      %737 = vrot.lane.b32.xlu0 %v714, 90
      %v738 = vpop.permute.xlu0 %737
      %v739 = vrot.slane %v724, 4
      %v740 = vrot.slane %v726, 4
      %v741 = vrot.slane %v728, 4
      %v742 = vrot.slane %v730, 4
      %v743 = vrot.slane %v732, 4
      %v744 = vrot.slane %v734, 4
      %v745 = vrot.slane %v736, 4
      %v746 = vrot.slane %v738, 4
      %v747 = vsel %vm291, %v739, %v740
      %vm748 = vcmask 736256
      %v749 = vsel %vm748, %v724, %v747
      %v750 = vsel %vm291, %v741, %v742
      %v751 = vsel %vm748, %v728, %v750
      %v752 = vsel %vm291, %v743, %v744
      %v753 = vsel %vm748, %v732, %v752
      %v754 = vsel %vm291, %v745, %v746
      %v755 = vsel %vm748, %v736, %v754
      %764 = vst [vmem:[#allocation2 + $0x280] sm:$0xff] %v749
      %765 = vst.msk [vmem:[#allocation2 + $0x288] sm:$0xf] %vm243, %v726
      %766 = vst [vmem:[#allocation2 + $0x294] sm:$0xff] %v751
      %767 = vst.msk [vmem:[#allocation2 + $0x29c] sm:$0xf] %vm243, %v730
      %768 = vst [vmem:[#allocation2 + $0x2a8] sm:$0xff] %v753
      %769 = vst.msk [vmem:[#allocation2 + $0x2b0] sm:$0xf] %vm243, %v734
      %770 = vst [vmem:[#allocation2 + $0x2bc] sm:$0xff] %v755
      %771 = vst.msk [vmem:[#allocation2 + $0x2c4] sm:$0xf] %vm243, %v738
      %s772 = scalar_lea.vmem %s224, 48
      %v773 = vld [vmem:[%s772] sm:$0xff]
      %v774 = vld [vmem:[%s772 + $0x8] sm:$0xf]
      %v775 = vld [vmem:[%s772 + $0xc] sm:$0xff]
      %v776 = vld [vmem:[%s772 + $0x14] sm:$0xf]
      %v777 = vld [vmem:[%s772 + $0x18] sm:$0xff]
      %v778 = vld [vmem:[%s772 + $0x20] sm:$0xf]
      %v779 = vld [vmem:[%s772 + $0x24] sm:$0xff]
      %v780 = vld [vmem:[%s772 + $0x2c] sm:$0xf]
      %789 = vrot.lane.b32.xlu0 %v773, 32
      %v790 = vpop.permute.xlu0 %789
      %791 = vrot.lane.b32.xlu0 %v774, 32
      %v792 = vpop.permute.xlu0 %791
      %793 = vrot.lane.b32.xlu0 %v775, 32
      %v794 = vpop.permute.xlu0 %793
      %795 = vrot.lane.b32.xlu0 %v776, 32
      %v796 = vpop.permute.xlu0 %795
      %797 = vrot.lane.b32.xlu0 %v777, 32
      %v798 = vpop.permute.xlu0 %797
      %799 = vrot.lane.b32.xlu0 %v778, 32
      %v800 = vpop.permute.xlu0 %799
      %801 = vrot.lane.b32.xlu0 %v779, 32
      %v802 = vpop.permute.xlu0 %801
      %803 = vrot.lane.b32.xlu0 %v780, 32
      %v804 = vpop.permute.xlu0 %803
      %v805 = vrot.slane %v790, 4
      %v806 = vrot.slane %v794, 4
      %v807 = vrot.slane %v798, 4
      %v808 = vrot.slane %v802, 4
      %vm809 = vcmask 261120
      %v810 = vsel %vm809, %v805, %v790
      %v811 = vsel %vm809, %v805, %v792
      %v812 = vsel %vm809, %v806, %v794
      %v813 = vsel %vm809, %v806, %v796
      %v814 = vsel %vm809, %v807, %v798
      %v815 = vsel %vm809, %v807, %v800
      %v816 = vsel %vm809, %v808, %v802
      %v817 = vsel %vm809, %v808, %v804
      %vm826 = vcmask 1043712
      %vm827 = vcmask 1047556
      %vm828 = vmor %vm827, %vm826
      %829 = vst.msk [vmem:[#allocation2 + $0x8] sm:$0xff] %vm828, %v810
      %vm830 = vcmask 519168
      %831 = vst.msk [vmem:[#allocation2 + $0x10] sm:$0xf] %vm830, %v811
      %832 = vst.msk [vmem:[#allocation2 + $0x1c] sm:$0xff] %vm828, %v812
      %833 = vst.msk [vmem:[#allocation2 + $0x24] sm:$0xf] %vm830, %v813
      %834 = vst.msk [vmem:[#allocation2 + $0x30] sm:$0xff] %vm828, %v814
      %835 = vst.msk [vmem:[#allocation2 + $0x38] sm:$0xf] %vm830, %v815
      %836 = vst.msk [vmem:[#allocation2 + $0x44] sm:$0xff] %vm828, %v816
      %837 = vst.msk [vmem:[#allocation2 + $0x4c] sm:$0xf] %vm830, %v817
      %v838 = vld [vmem:[%s772] sm:$0xff]
      %v839 = vld [vmem:[%s772 + $0x8] sm:$0xf]
      %v840 = vld [vmem:[%s772 + $0xc] sm:$0xff]
      %v841 = vld [vmem:[%s772 + $0x14] sm:$0xf]
      %v842 = vld [vmem:[%s772 + $0x18] sm:$0xff]
      %v843 = vld [vmem:[%s772 + $0x20] sm:$0xf]
      %v844 = vld [vmem:[%s772 + $0x24] sm:$0xff]
      %v845 = vld [vmem:[%s772 + $0x2c] sm:$0xf]
      %854 = vrot.lane.b32.xlu0 %v838, 31
      %v855 = vpop.permute.xlu0 %854
      %856 = vrot.lane.b32.xlu0 %v839, 31
      %v857 = vpop.permute.xlu0 %856
      %858 = vrot.lane.b32.xlu0 %v840, 31
      %v859 = vpop.permute.xlu0 %858
      %860 = vrot.lane.b32.xlu0 %v841, 31
      %v861 = vpop.permute.xlu0 %860
      %862 = vrot.lane.b32.xlu0 %v842, 31
      %v863 = vpop.permute.xlu0 %862
      %864 = vrot.lane.b32.xlu0 %v843, 31
      %v865 = vpop.permute.xlu0 %864
      %866 = vrot.lane.b32.xlu0 %v844, 31
      %v867 = vpop.permute.xlu0 %866
      %868 = vrot.lane.b32.xlu0 %v845, 31
      %v869 = vpop.permute.xlu0 %868
      %v870 = vrot.slane %v855, 4
      %v871 = vrot.slane %v859, 4
      %v872 = vrot.slane %v863, 4
      %v873 = vrot.slane %v867, 4
      %vm874 = vcmask 252928
      %v875 = vsel %vm874, %v870, %v855
      %v876 = vsel %vm874, %v870, %v857
      %v877 = vsel %vm874, %v871, %v859
      %v878 = vsel %vm874, %v871, %v861
      %v879 = vsel %vm874, %v872, %v863
      %v880 = vsel %vm874, %v872, %v865
      %v881 = vsel %vm874, %v873, %v867
      %v882 = vsel %vm874, %v873, %v869
      %891 = vst.msk [vmem:[#allocation2 + $0x58] sm:$0xff] %vm828, %v875
      %892 = vst.msk [vmem:[#allocation2 + $0x60] sm:$0xf] %vm830, %v876
      %893 = vst.msk [vmem:[#allocation2 + $0x6c] sm:$0xff] %vm828, %v877
      %894 = vst.msk [vmem:[#allocation2 + $0x74] sm:$0xf] %vm830, %v878
      %895 = vst.msk [vmem:[#allocation2 + $0x80] sm:$0xff] %vm828, %v879
      %896 = vst.msk [vmem:[#allocation2 + $0x88] sm:$0xf] %vm830, %v880
      %897 = vst.msk [vmem:[#allocation2 + $0x94] sm:$0xff] %vm828, %v881
      %898 = vst.msk [vmem:[#allocation2 + $0x9c] sm:$0xf] %vm830, %v882
      %v899 = vld [vmem:[%s772] sm:$0xff]
      %v900 = vld [vmem:[%s772 + $0x8] sm:$0xf]
      %v901 = vld [vmem:[%s772 + $0xc] sm:$0xff]
      %v902 = vld [vmem:[%s772 + $0x14] sm:$0xf]
      %v903 = vld [vmem:[%s772 + $0x18] sm:$0xff]
      %v904 = vld [vmem:[%s772 + $0x20] sm:$0xf]
      %v905 = vld [vmem:[%s772 + $0x24] sm:$0xff]
      %v906 = vld [vmem:[%s772 + $0x2c] sm:$0xf]
      %915 = vrot.lane.b32.xlu0 %v899, 30
      %v916 = vpop.permute.xlu0 %915
      %917 = vrot.lane.b32.xlu0 %v900, 30
      %v918 = vpop.permute.xlu0 %917
      %919 = vrot.lane.b32.xlu0 %v901, 30
      %v920 = vpop.permute.xlu0 %919
      %921 = vrot.lane.b32.xlu0 %v902, 30
      %v922 = vpop.permute.xlu0 %921
      %923 = vrot.lane.b32.xlu0 %v903, 30
      %v924 = vpop.permute.xlu0 %923
      %925 = vrot.lane.b32.xlu0 %v904, 30
      %v926 = vpop.permute.xlu0 %925
      %927 = vrot.lane.b32.xlu0 %v905, 30
      %v928 = vpop.permute.xlu0 %927
      %929 = vrot.lane.b32.xlu0 %v906, 30
      %v930 = vpop.permute.xlu0 %929
      %v931 = vrot.slane %v916, 4
      %v932 = vrot.slane %v920, 4
      %v933 = vrot.slane %v924, 4
      %v934 = vrot.slane %v928, 4
      %vm935 = vcmask 244736
      %v936 = vsel %vm935, %v931, %v916
      %v937 = vsel %vm935, %v931, %v918
      %v938 = vsel %vm935, %v932, %v920
      %v939 = vsel %vm935, %v932, %v922
      %v940 = vsel %vm935, %v933, %v924
      %v941 = vsel %vm935, %v933, %v926
      %v942 = vsel %vm935, %v934, %v928
      %v943 = vsel %vm935, %v934, %v930
      %952 = vst.msk [vmem:[#allocation2 + $0xa8] sm:$0xff] %vm828, %v936
      %953 = vst.msk [vmem:[#allocation2 + $0xb0] sm:$0xf] %vm830, %v937
      %954 = vst.msk [vmem:[#allocation2 + $0xbc] sm:$0xff] %vm828, %v938
      %955 = vst.msk [vmem:[#allocation2 + $0xc4] sm:$0xf] %vm830, %v939
      %956 = vst.msk [vmem:[#allocation2 + $0xd0] sm:$0xff] %vm828, %v940
      %957 = vst.msk [vmem:[#allocation2 + $0xd8] sm:$0xf] %vm830, %v941
      %958 = vst.msk [vmem:[#allocation2 + $0xe4] sm:$0xff] %vm828, %v942
      %959 = vst.msk [vmem:[#allocation2 + $0xec] sm:$0xf] %vm830, %v943
      %v960 = vld [vmem:[%s772] sm:$0xff]
      %v961 = vld [vmem:[%s772 + $0x8] sm:$0xf]
      %v962 = vld [vmem:[%s772 + $0xc] sm:$0xff]
      %v963 = vld [vmem:[%s772 + $0x14] sm:$0xf]
      %v964 = vld [vmem:[%s772 + $0x18] sm:$0xff]
      %v965 = vld [vmem:[%s772 + $0x20] sm:$0xf]
      %v966 = vld [vmem:[%s772 + $0x24] sm:$0xff]
      %v967 = vld [vmem:[%s772 + $0x2c] sm:$0xf]
      %976 = vrot.lane.b32.xlu0 %v960, 14
      %v977 = vpop.permute.xlu0 %976
      %978 = vrot.lane.b32.xlu0 %v961, 14
      %v979 = vpop.permute.xlu0 %978
      %980 = vrot.lane.b32.xlu0 %v962, 14
      %v981 = vpop.permute.xlu0 %980
      %982 = vrot.lane.b32.xlu0 %v963, 14
      %v983 = vpop.permute.xlu0 %982
      %984 = vrot.lane.b32.xlu0 %v964, 14
      %v985 = vpop.permute.xlu0 %984
      %986 = vrot.lane.b32.xlu0 %v965, 14
      %v987 = vpop.permute.xlu0 %986
      %988 = vrot.lane.b32.xlu0 %v966, 14
      %v989 = vpop.permute.xlu0 %988
      %990 = vrot.lane.b32.xlu0 %v967, 14
      %v991 = vpop.permute.xlu0 %990
      %v992 = vrot.slane %v977, 4
      %v993 = vrot.slane %v981, 4
      %v994 = vrot.slane %v985, 4
      %v995 = vrot.slane %v989, 4
      %vm996 = vcmask 113664
      %v997 = vsel %vm996, %v992, %v977
      %v998 = vsel %vm996, %v992, %v979
      %v999 = vsel %vm996, %v993, %v981
      %v1000 = vsel %vm996, %v993, %v983
      %v1001 = vsel %vm996, %v994, %v985
      %v1002 = vsel %vm996, %v994, %v987
      %v1003 = vsel %vm996, %v995, %v989
      %v1004 = vsel %vm996, %v995, %v991
      %1013 = vst.msk [vmem:[#allocation2 + $0xf8] sm:$0xff] %vm828, %v997
      %1014 = vst.msk [vmem:[#allocation2 + $0x100] sm:$0xf] %vm830, %v998
      %1015 = vst.msk [vmem:[#allocation2 + $0x10c] sm:$0xff] %vm828, %v999
      %1016 = vst.msk [vmem:[#allocation2 + $0x114] sm:$0xf] %vm830, %v1000
      %1017 = vst.msk [vmem:[#allocation2 + $0x120] sm:$0xff] %vm828, %v1001
      %1018 = vst.msk [vmem:[#allocation2 + $0x128] sm:$0xf] %vm830, %v1002
      %1019 = vst.msk [vmem:[#allocation2 + $0x134] sm:$0xff] %vm828, %v1003
      %1020 = vst.msk [vmem:[#allocation2 + $0x13c] sm:$0xf] %vm830, %v1004
      %v1021 = vld [vmem:[%s772] sm:$0xff]
      %v1022 = vld [vmem:[%s772 + $0x8] sm:$0xf]
      %v1023 = vld [vmem:[%s772 + $0xc] sm:$0xff]
      %v1024 = vld [vmem:[%s772 + $0x14] sm:$0xf]
      %v1025 = vld [vmem:[%s772 + $0x18] sm:$0xff]
      %v1026 = vld [vmem:[%s772 + $0x20] sm:$0xf]
      %v1027 = vld [vmem:[%s772 + $0x24] sm:$0xff]
      %v1028 = vld [vmem:[%s772 + $0x2c] sm:$0xf]
      %1037 = vrot.lane.b32.xlu0 %v1021, 13
      %v1038 = vpop.permute.xlu0 %1037
      %1039 = vrot.lane.b32.xlu0 %v1022, 13
      %v1040 = vpop.permute.xlu0 %1039
      %1041 = vrot.lane.b32.xlu0 %v1023, 13
      %v1042 = vpop.permute.xlu0 %1041
      %1043 = vrot.lane.b32.xlu0 %v1024, 13
      %v1044 = vpop.permute.xlu0 %1043
      %1045 = vrot.lane.b32.xlu0 %v1025, 13
      %v1046 = vpop.permute.xlu0 %1045
      %1047 = vrot.lane.b32.xlu0 %v1026, 13
      %v1048 = vpop.permute.xlu0 %1047
      %1049 = vrot.lane.b32.xlu0 %v1027, 13
      %v1050 = vpop.permute.xlu0 %1049
      %1051 = vrot.lane.b32.xlu0 %v1028, 13
      %v1052 = vpop.permute.xlu0 %1051
      %v1053 = vrot.slane %v1038, 4
      %v1054 = vrot.slane %v1042, 4
      %v1055 = vrot.slane %v1046, 4
      %v1056 = vrot.slane %v1050, 4
      %vm1057 = vcmask 105472
      %v1058 = vsel %vm1057, %v1053, %v1038
      %v1059 = vsel %vm1057, %v1053, %v1040
      %v1060 = vsel %vm1057, %v1054, %v1042
      %v1061 = vsel %vm1057, %v1054, %v1044
      %v1062 = vsel %vm1057, %v1055, %v1046
      %v1063 = vsel %vm1057, %v1055, %v1048
      %v1064 = vsel %vm1057, %v1056, %v1050
      %v1065 = vsel %vm1057, %v1056, %v1052
      %1074 = vst.msk [vmem:[#allocation2 + $0x148] sm:$0xff] %vm828, %v1058
      %1075 = vst.msk [vmem:[#allocation2 + $0x150] sm:$0xf] %vm830, %v1059
      %1076 = vst.msk [vmem:[#allocation2 + $0x15c] sm:$0xff] %vm828, %v1060
      %1077 = vst.msk [vmem:[#allocation2 + $0x164] sm:$0xf] %vm830, %v1061
      %1078 = vst.msk [vmem:[#allocation2 + $0x170] sm:$0xff] %vm828, %v1062
      %1079 = vst.msk [vmem:[#allocation2 + $0x178] sm:$0xf] %vm830, %v1063
      %1080 = vst.msk [vmem:[#allocation2 + $0x184] sm:$0xff] %vm828, %v1064
      %1081 = vst.msk [vmem:[#allocation2 + $0x18c] sm:$0xf] %vm830, %v1065
      %v1082 = vld [vmem:[%s772] sm:$0xff]
      %v1083 = vld [vmem:[%s772 + $0x8] sm:$0xf]
      %v1084 = vld [vmem:[%s772 + $0xc] sm:$0xff]
      %v1085 = vld [vmem:[%s772 + $0x14] sm:$0xf]
      %v1086 = vld [vmem:[%s772 + $0x18] sm:$0xff]
      %v1087 = vld [vmem:[%s772 + $0x20] sm:$0xf]
      %v1088 = vld [vmem:[%s772 + $0x24] sm:$0xff]
      %v1089 = vld [vmem:[%s772 + $0x2c] sm:$0xf]
      %1098 = vrot.lane.b32.xlu0 %v1082, 12
      %v1099 = vpop.permute.xlu0 %1098
      %1100 = vrot.lane.b32.xlu0 %v1083, 12
      %v1101 = vpop.permute.xlu0 %1100
      %1102 = vrot.lane.b32.xlu0 %v1084, 12
      %v1103 = vpop.permute.xlu0 %1102
      %1104 = vrot.lane.b32.xlu0 %v1085, 12
      %v1105 = vpop.permute.xlu0 %1104
      %1106 = vrot.lane.b32.xlu0 %v1086, 12
      %v1107 = vpop.permute.xlu0 %1106
      %1108 = vrot.lane.b32.xlu0 %v1087, 12
      %v1109 = vpop.permute.xlu0 %1108
      %1110 = vrot.lane.b32.xlu0 %v1088, 12
      %v1111 = vpop.permute.xlu0 %1110
      %1112 = vrot.lane.b32.xlu0 %v1089, 12
      %v1113 = vpop.permute.xlu0 %1112
      %v1114 = vrot.slane %v1099, 4
      %v1115 = vrot.slane %v1103, 4
      %v1116 = vrot.slane %v1107, 4
      %v1117 = vrot.slane %v1111, 4
      %vm1118 = vcmask 97280
      %v1119 = vsel %vm1118, %v1114, %v1099
      %v1120 = vsel %vm1118, %v1114, %v1101
      %v1121 = vsel %vm1118, %v1115, %v1103
      %v1122 = vsel %vm1118, %v1115, %v1105
      %v1123 = vsel %vm1118, %v1116, %v1107
      %v1124 = vsel %vm1118, %v1116, %v1109
      %v1125 = vsel %vm1118, %v1117, %v1111
      %v1126 = vsel %vm1118, %v1117, %v1113
      %1135 = vst.msk [vmem:[#allocation2 + $0x198] sm:$0xff] %vm828, %v1119
      %1136 = vst.msk [vmem:[#allocation2 + $0x1a0] sm:$0xf] %vm830, %v1120
      %1137 = vst.msk [vmem:[#allocation2 + $0x1ac] sm:$0xff] %vm828, %v1121
      %1138 = vst.msk [vmem:[#allocation2 + $0x1b4] sm:$0xf] %vm830, %v1122
      %1139 = vst.msk [vmem:[#allocation2 + $0x1c0] sm:$0xff] %vm828, %v1123
      %1140 = vst.msk [vmem:[#allocation2 + $0x1c8] sm:$0xf] %vm830, %v1124
      %1141 = vst.msk [vmem:[#allocation2 + $0x1d4] sm:$0xff] %vm828, %v1125
      %1142 = vst.msk [vmem:[#allocation2 + $0x1dc] sm:$0xf] %vm830, %v1126
      %v1143 = vld [vmem:[%s772] sm:$0xff]
      %v1144 = vld [vmem:[%s772 + $0x8] sm:$0xf]
      %v1145 = vld [vmem:[%s772 + $0xc] sm:$0xff]
      %v1146 = vld [vmem:[%s772 + $0x14] sm:$0xf]
      %v1147 = vld [vmem:[%s772 + $0x18] sm:$0xff]
      %v1148 = vld [vmem:[%s772 + $0x20] sm:$0xf]
      %v1149 = vld [vmem:[%s772 + $0x24] sm:$0xff]
      %v1150 = vld [vmem:[%s772 + $0x2c] sm:$0xf]
      %1159 = vrot.lane.b32.xlu0 %v1143, 124
      %v1160 = vpop.permute.xlu0 %1159
      %1161 = vrot.lane.b32.xlu0 %v1144, 124
      %v1162 = vpop.permute.xlu0 %1161
      %1163 = vrot.lane.b32.xlu0 %v1145, 124
      %v1164 = vpop.permute.xlu0 %1163
      %1165 = vrot.lane.b32.xlu0 %v1146, 124
      %v1166 = vpop.permute.xlu0 %1165
      %1167 = vrot.lane.b32.xlu0 %v1147, 124
      %v1168 = vpop.permute.xlu0 %1167
      %1169 = vrot.lane.b32.xlu0 %v1148, 124
      %v1170 = vpop.permute.xlu0 %1169
      %1171 = vrot.lane.b32.xlu0 %v1149, 124
      %v1172 = vpop.permute.xlu0 %1171
      %1173 = vrot.lane.b32.xlu0 %v1150, 124
      %v1174 = vpop.permute.xlu0 %1173
      %v1175 = vrot.slane %v1160, 4
      %v1176 = vrot.slane %v1162, 4
      %v1177 = vrot.slane %v1164, 4
      %v1178 = vrot.slane %v1166, 4
      %v1179 = vrot.slane %v1168, 4
      %v1180 = vrot.slane %v1170, 4
      %v1181 = vrot.slane %v1172, 4
      %v1182 = vrot.slane %v1174, 4
      %v1183 = vsel %vm291, %v1175, %v1176
      %vm1184 = vcmask 1014784
      %v1185 = vsel %vm1184, %v1160, %v1183
      %v1186 = vsel %vm291, %v1177, %v1178
      %v1187 = vsel %vm1184, %v1164, %v1186
      %v1188 = vsel %vm291, %v1179, %v1180
      %v1189 = vsel %vm1184, %v1168, %v1188
      %v1190 = vsel %vm291, %v1181, %v1182
      %v1191 = vsel %vm1184, %v1172, %v1190
      %1200 = vst.msk [vmem:[#allocation2 + $0x1e8] sm:$0xff] %vm828, %v1185
      %1201 = vst.msk [vmem:[#allocation2 + $0x1f0] sm:$0xf] %vm830, %v1162
      %1202 = vst.msk [vmem:[#allocation2 + $0x1fc] sm:$0xff] %vm828, %v1187
      %1203 = vst.msk [vmem:[#allocation2 + $0x204] sm:$0xf] %vm830, %v1166
      %1204 = vst.msk [vmem:[#allocation2 + $0x210] sm:$0xff] %vm828, %v1189
      %1205 = vst.msk [vmem:[#allocation2 + $0x218] sm:$0xf] %vm830, %v1170
      %1206 = vst.msk [vmem:[#allocation2 + $0x224] sm:$0xff] %vm828, %v1191
      %1207 = vst.msk [vmem:[#allocation2 + $0x22c] sm:$0xf] %vm830, %v1174
      %v1208 = vld [vmem:[%s772] sm:$0xff]
      %v1209 = vld [vmem:[%s772 + $0x8] sm:$0xf]
      %v1210 = vld [vmem:[%s772 + $0xc] sm:$0xff]
      %v1211 = vld [vmem:[%s772 + $0x14] sm:$0xf]
      %v1212 = vld [vmem:[%s772 + $0x18] sm:$0xff]
      %v1213 = vld [vmem:[%s772 + $0x20] sm:$0xf]
      %v1214 = vld [vmem:[%s772 + $0x24] sm:$0xff]
      %v1215 = vld [vmem:[%s772 + $0x2c] sm:$0xf]
      %1224 = vrot.lane.b32.xlu0 %v1208, 123
      %v1225 = vpop.permute.xlu0 %1224
      %1226 = vrot.lane.b32.xlu0 %v1209, 123
      %v1227 = vpop.permute.xlu0 %1226
      %1228 = vrot.lane.b32.xlu0 %v1210, 123
      %v1229 = vpop.permute.xlu0 %1228
      %1230 = vrot.lane.b32.xlu0 %v1211, 123
      %v1231 = vpop.permute.xlu0 %1230
      %1232 = vrot.lane.b32.xlu0 %v1212, 123
      %v1233 = vpop.permute.xlu0 %1232
      %1234 = vrot.lane.b32.xlu0 %v1213, 123
      %v1235 = vpop.permute.xlu0 %1234
      %1236 = vrot.lane.b32.xlu0 %v1214, 123
      %v1237 = vpop.permute.xlu0 %1236
      %1238 = vrot.lane.b32.xlu0 %v1215, 123
      %v1239 = vpop.permute.xlu0 %1238
      %v1240 = vrot.slane %v1225, 4
      %v1241 = vrot.slane %v1227, 4
      %v1242 = vrot.slane %v1229, 4
      %v1243 = vrot.slane %v1231, 4
      %v1244 = vrot.slane %v1233, 4
      %v1245 = vrot.slane %v1235, 4
      %v1246 = vrot.slane %v1237, 4
      %v1247 = vrot.slane %v1239, 4
      %v1248 = vsel %vm291, %v1240, %v1241
      %vm1249 = vcmask 1006592
      %v1250 = vsel %vm1249, %v1225, %v1248
      %v1251 = vsel %vm291, %v1242, %v1243
      %v1252 = vsel %vm1249, %v1229, %v1251
      %v1253 = vsel %vm291, %v1244, %v1245
      %v1254 = vsel %vm1249, %v1233, %v1253
      %v1255 = vsel %vm291, %v1246, %v1247
      %v1256 = vsel %vm1249, %v1237, %v1255
      %1265 = vst.msk [vmem:[#allocation2 + $0x238] sm:$0xff] %vm828, %v1250
      %1266 = vst.msk [vmem:[#allocation2 + $0x240] sm:$0xf] %vm830, %v1227
      %1267 = vst.msk [vmem:[#allocation2 + $0x24c] sm:$0xff] %vm828, %v1252
      %1268 = vst.msk [vmem:[#allocation2 + $0x254] sm:$0xf] %vm830, %v1231
      %1269 = vst.msk [vmem:[#allocation2 + $0x260] sm:$0xff] %vm828, %v1254
      %1270 = vst.msk [vmem:[#allocation2 + $0x268] sm:$0xf] %vm830, %v1235
      %1271 = vst.msk [vmem:[#allocation2 + $0x274] sm:$0xff] %vm828, %v1256
      %1272 = vst.msk [vmem:[#allocation2 + $0x27c] sm:$0xf] %vm830, %v1239
      %v1273 = vld [vmem:[%s772] sm:$0xff]
      %v1274 = vld [vmem:[%s772 + $0x8] sm:$0xf]
      %v1275 = vld [vmem:[%s772 + $0xc] sm:$0xff]
      %v1276 = vld [vmem:[%s772 + $0x14] sm:$0xf]
      %v1277 = vld [vmem:[%s772 + $0x18] sm:$0xff]
      %v1278 = vld [vmem:[%s772 + $0x20] sm:$0xf]
      %v1279 = vld [vmem:[%s772 + $0x24] sm:$0xff]
      %v1280 = vld [vmem:[%s772 + $0x2c] sm:$0xf]
      %1289 = vrot.lane.b32.xlu0 %v1273, 122
      %v1290 = vpop.permute.xlu0 %1289
      %1291 = vrot.lane.b32.xlu0 %v1274, 122
      %v1292 = vpop.permute.xlu0 %1291
      %1293 = vrot.lane.b32.xlu0 %v1275, 122
      %v1294 = vpop.permute.xlu0 %1293
      %1295 = vrot.lane.b32.xlu0 %v1276, 122
      %v1296 = vpop.permute.xlu0 %1295
      %1297 = vrot.lane.b32.xlu0 %v1277, 122
      %v1298 = vpop.permute.xlu0 %1297
      %1299 = vrot.lane.b32.xlu0 %v1278, 122
      %v1300 = vpop.permute.xlu0 %1299
      %1301 = vrot.lane.b32.xlu0 %v1279, 122
      %v1302 = vpop.permute.xlu0 %1301
      %1303 = vrot.lane.b32.xlu0 %v1280, 122
      %v1304 = vpop.permute.xlu0 %1303
      %v1305 = vrot.slane %v1290, 4
      %v1306 = vrot.slane %v1292, 4
      %v1307 = vrot.slane %v1294, 4
      %v1308 = vrot.slane %v1296, 4
      %v1309 = vrot.slane %v1298, 4
      %v1310 = vrot.slane %v1300, 4
      %v1311 = vrot.slane %v1302, 4
      %v1312 = vrot.slane %v1304, 4
      %v1313 = vsel %vm291, %v1305, %v1306
      %vm1314 = vcmask 998400
      %v1315 = vsel %vm1314, %v1290, %v1313
      %v1316 = vsel %vm291, %v1307, %v1308
      %v1317 = vsel %vm1314, %v1294, %v1316
      %v1318 = vsel %vm291, %v1309, %v1310
      %v1319 = vsel %vm1314, %v1298, %v1318
      %v1320 = vsel %vm291, %v1311, %v1312
      %v1321 = vsel %vm1314, %v1302, %v1320
      %1330 = vst.msk [vmem:[#allocation2 + $0x288] sm:$0xff] %vm828, %v1315
      %1331 = vst.msk [vmem:[#allocation2 + $0x290] sm:$0xf] %vm830, %v1292
      %1332 = vst.msk [vmem:[#allocation2 + $0x29c] sm:$0xff] %vm828, %v1317
      %1333 = vst.msk [vmem:[#allocation2 + $0x2a4] sm:$0xf] %vm830, %v1296
      %1334 = vst.msk [vmem:[#allocation2 + $0x2b0] sm:$0xff] %vm828, %v1319
      %1335 = vst.msk [vmem:[#allocation2 + $0x2b8] sm:$0xf] %vm830, %v1300
      %1336 = vst.msk [vmem:[#allocation2 + $0x2c4] sm:$0xff] %vm828, %v1321
      %1337 = vst.msk [vmem:[#allocation2 + $0x2cc] sm:$0xf] %vm830, %v1304
      %v1338 = vld [vmem:[%s1] sm:$0xff]
      %v1339 = vld [vmem:[%s1 + $0x8] sm:$0xf]
      %v1340 = vld [vmem:[%s1 + $0xc] sm:$0xff]
      %v1341 = vld [vmem:[%s1 + $0x14] sm:$0xf]
      %v1342 = vld [vmem:[%s1 + $0x18] sm:$0xff]
      %v1343 = vld [vmem:[%s1 + $0x20] sm:$0xf]
      %v1344 = vld [vmem:[%s1 + $0x24] sm:$0xff]
      %v1345 = vld [vmem:[%s1 + $0x2c] sm:$0xf]
      %v1346 = vld [vmem:[%s1 + $0x30] sm:$0xff]
      %v1347 = vld [vmem:[%s1 + $0x38] sm:$0xf]
      %v1348 = vld [vmem:[%s1 + $0x3c] sm:$0xff]
      %v1349 = vld [vmem:[%s1 + $0x44] sm:$0xf]
      %v1350 = vld [vmem:[%s1 + $0x48] sm:$0xff]
      %v1351 = vld [vmem:[%s1 + $0x50] sm:$0xf]
      %v1352 = vld [vmem:[%s1 + $0x54] sm:$0xff]
      %v1353 = vld [vmem:[%s1 + $0x5c] sm:$0xf]
      %v1354 = vld [vmem:[%s1 + $0x60] sm:$0xff]
      %v1355 = vld [vmem:[%s1 + $0x68] sm:$0xf]
      %v1356 = vld [vmem:[%s1 + $0x6c] sm:$0xff]
      %v1357 = vld [vmem:[%s1 + $0x74] sm:$0xf]
      %v1358 = vld [vmem:[%s1 + $0x78] sm:$0xff]
      %v1359 = vld [vmem:[%s1 + $0x80] sm:$0xf]
      %v1360 = vld [vmem:[%s1 + $0x84] sm:$0xff]
      %v1361 = vld [vmem:[%s1 + $0x8c] sm:$0xf]
      %v1362 = vld [vmem:[%s1 + $0x90] sm:$0xff]
      %v1363 = vld [vmem:[%s1 + $0x98] sm:$0xf]
      %v1364 = vld [vmem:[%s1 + $0x9c] sm:$0xff]
      %v1365 = vld [vmem:[%s1 + $0xa4] sm:$0xf]
      %v1366 = vld [vmem:[%s1 + $0xa8] sm:$0xff]
      %v1367 = vld [vmem:[%s1 + $0xb0] sm:$0xf]
      %v1368 = vld [vmem:[%s1 + $0xb4] sm:$0xff]
      %v1369 = vld [vmem:[%s1 + $0xbc] sm:$0xf]
      %v1370 = vld [vmem:[#allocation2] sm:$0xff]
      %v1371 = vld [vmem:[#allocation2 + $0x8] sm:$0xff]
      %v1372 = vld [vmem:[#allocation2 + $0x10] sm:$0xf]
      %v1373 = vld [vmem:[#allocation2 + $0x14] sm:$0xff]
      %v1374 = vld [vmem:[#allocation2 + $0x1c] sm:$0xff]
      %v1375 = vld [vmem:[#allocation2 + $0x24] sm:$0xf]
      %v1376 = vld [vmem:[#allocation2 + $0x28] sm:$0xff]
      %v1377 = vld [vmem:[#allocation2 + $0x30] sm:$0xff]
      %v1378 = vld [vmem:[#allocation2 + $0x38] sm:$0xf]
      %v1379 = vld [vmem:[#allocation2 + $0x3c] sm:$0xff]
      %v1380 = vld [vmem:[#allocation2 + $0x44] sm:$0xff]
      %v1381 = vld [vmem:[#allocation2 + $0x4c] sm:$0xf]
      %v1382 = vld [vmem:[#allocation2 + $0x50] sm:$0xff]
      %v1383 = vld [vmem:[#allocation2 + $0x58] sm:$0xff]
      %v1384 = vld [vmem:[#allocation2 + $0x60] sm:$0xf]
      %v1385 = vld [vmem:[#allocation2 + $0x64] sm:$0xff]
      %v1386 = vld [vmem:[#allocation2 + $0x6c] sm:$0xff]
      %v1387 = vld [vmem:[#allocation2 + $0x74] sm:$0xf]
      %v1388 = vld [vmem:[#allocation2 + $0x78] sm:$0xff]
      %v1389 = vld [vmem:[#allocation2 + $0x80] sm:$0xff]
      %v1390 = vld [vmem:[#allocation2 + $0x88] sm:$0xf]
      %v1391 = vld [vmem:[#allocation2 + $0x8c] sm:$0xff]
      %v1392 = vld [vmem:[#allocation2 + $0x94] sm:$0xff]
      %v1393 = vld [vmem:[#allocation2 + $0x9c] sm:$0xf]
      %v1394 = vld [vmem:[#allocation2 + $0xa0] sm:$0xff]
      %v1395 = vld [vmem:[#allocation2 + $0xa8] sm:$0xff]
      %v1396 = vld [vmem:[#allocation2 + $0xb0] sm:$0xf]
      %v1397 = vld [vmem:[#allocation2 + $0xb4] sm:$0xff]
      %v1398 = vld [vmem:[#allocation2 + $0xbc] sm:$0xff]
      %v1399 = vld [vmem:[#allocation2 + $0xc4] sm:$0xf]
      %v1400 = vld [vmem:[#allocation2 + $0xc8] sm:$0xff]
      %v1401 = vld [vmem:[#allocation2 + $0xd0] sm:$0xff]
      %v1402 = vld [vmem:[#allocation2 + $0xd8] sm:$0xf]
      %v1403 = vld [vmem:[#allocation2 + $0xdc] sm:$0xff]
      %v1404 = vld [vmem:[#allocation2 + $0xe4] sm:$0xff]
      %v1405 = vld [vmem:[#allocation2 + $0xec] sm:$0xf]
      %v1406 = vld [vmem:[#allocation2 + $0xf0] sm:$0xff]
      %v1407 = vld [vmem:[#allocation2 + $0xf8] sm:$0xff]
      %v1408 = vld [vmem:[#allocation2 + $0x100] sm:$0xf]
      %v1409 = vld [vmem:[#allocation2 + $0x104] sm:$0xff]
      %v1410 = vld [vmem:[#allocation2 + $0x10c] sm:$0xff]
      %v1411 = vld [vmem:[#allocation2 + $0x114] sm:$0xf]
      %v1412 = vld [vmem:[#allocation2 + $0x118] sm:$0xff]
      %v1413 = vld [vmem:[#allocation2 + $0x120] sm:$0xff]
      %v1414 = vld [vmem:[#allocation2 + $0x128] sm:$0xf]
      %v1415 = vld [vmem:[#allocation2 + $0x12c] sm:$0xff]
      %v1416 = vld [vmem:[#allocation2 + $0x134] sm:$0xff]
      %v1417 = vld [vmem:[#allocation2 + $0x13c] sm:$0xf]
      %v1418 = vld [vmem:[#allocation2 + $0x140] sm:$0xff]
      %v1419 = vld [vmem:[#allocation2 + $0x148] sm:$0xff]
      %v1420 = vld [vmem:[#allocation2 + $0x150] sm:$0xf]
      %v1421 = vld [vmem:[#allocation2 + $0x154] sm:$0xff]
      %v1422 = vld [vmem:[#allocation2 + $0x15c] sm:$0xff]
      %v1423 = vld [vmem:[#allocation2 + $0x164] sm:$0xf]
      %v1424 = vld [vmem:[#allocation2 + $0x168] sm:$0xff]
      %v1425 = vld [vmem:[#allocation2 + $0x170] sm:$0xff]
      %v1426 = vld [vmem:[#allocation2 + $0x178] sm:$0xf]
      %v1427 = vld [vmem:[#allocation2 + $0x17c] sm:$0xff]
      %v1428 = vld [vmem:[#allocation2 + $0x184] sm:$0xff]
      %v1429 = vld [vmem:[#allocation2 + $0x18c] sm:$0xf]
      %v1430 = vld [vmem:[#allocation2 + $0x190] sm:$0xff]
      %v1431 = vld [vmem:[#allocation2 + $0x198] sm:$0xff]
      %v1432 = vld [vmem:[#allocation2 + $0x1a0] sm:$0xf]
      %v1433 = vld [vmem:[#allocation2 + $0x1a4] sm:$0xff]
      %v1434 = vld [vmem:[#allocation2 + $0x1ac] sm:$0xff]
      %v1435 = vld [vmem:[#allocation2 + $0x1b4] sm:$0xf]
      %v1436 = vld [vmem:[#allocation2 + $0x1b8] sm:$0xff]
      %v1437 = vld [vmem:[#allocation2 + $0x1c0] sm:$0xff]
      %v1438 = vld [vmem:[#allocation2 + $0x1c8] sm:$0xf]
      %v1439 = vld [vmem:[#allocation2 + $0x1cc] sm:$0xff]
      %v1440 = vld [vmem:[#allocation2 + $0x1d4] sm:$0xff]
      %v1441 = vld [vmem:[#allocation2 + $0x1dc] sm:$0xf]
      %v1442 = vld [vmem:[#allocation2 + $0x1e0] sm:$0xff]
      %v1443 = vld [vmem:[#allocation2 + $0x1e8] sm:$0xff]
      %v1444 = vld [vmem:[#allocation2 + $0x1f0] sm:$0xf]
      %v1445 = vld [vmem:[#allocation2 + $0x1f4] sm:$0xff]
      %v1446 = vld [vmem:[#allocation2 + $0x1fc] sm:$0xff]
      %v1447 = vld [vmem:[#allocation2 + $0x204] sm:$0xf]
      %v1448 = vld [vmem:[#allocation2 + $0x208] sm:$0xff]
      %v1449 = vld [vmem:[#allocation2 + $0x210] sm:$0xff]
      %v1450 = vld [vmem:[#allocation2 + $0x218] sm:$0xf]
      %v1451 = vld [vmem:[#allocation2 + $0x21c] sm:$0xff]
      %v1452 = vld [vmem:[#allocation2 + $0x224] sm:$0xff]
      %v1453 = vld [vmem:[#allocation2 + $0x22c] sm:$0xf]
      %v1454 = vld [vmem:[#allocation2 + $0x230] sm:$0xff]
      %v1455 = vld [vmem:[#allocation2 + $0x238] sm:$0xff]
      %v1456 = vld [vmem:[#allocation2 + $0x240] sm:$0xf]
      %v1457 = vld [vmem:[#allocation2 + $0x244] sm:$0xff]
      %v1458 = vld [vmem:[#allocation2 + $0x24c] sm:$0xff]
      %v1459 = vld [vmem:[#allocation2 + $0x254] sm:$0xf]
      %v1460 = vld [vmem:[#allocation2 + $0x258] sm:$0xff]
      %v1461 = vld [vmem:[#allocation2 + $0x260] sm:$0xff]
      %v1462 = vld [vmem:[#allocation2 + $0x268] sm:$0xf]
      %v1463 = vld [vmem:[#allocation2 + $0x26c] sm:$0xff]
      %v1464 = vld [vmem:[#allocation2 + $0x274] sm:$0xff]
      %v1465 = vld [vmem:[#allocation2 + $0x27c] sm:$0xf]
      %v1466 = vld [vmem:[#allocation2 + $0x280] sm:$0xff]
      %v1467 = vld [vmem:[#allocation2 + $0x288] sm:$0xff]
      %v1468 = vld [vmem:[#allocation2 + $0x290] sm:$0xf]
      %v1469 = vld [vmem:[#allocation2 + $0x294] sm:$0xff]
      %v1470 = vld [vmem:[#allocation2 + $0x29c] sm:$0xff]
      %v1471 = vld [vmem:[#allocation2 + $0x2a4] sm:$0xf]
      %v1472 = vld [vmem:[#allocation2 + $0x2a8] sm:$0xff]
      %v1473 = vld [vmem:[#allocation2 + $0x2b0] sm:$0xff]
      %v1474 = vld [vmem:[#allocation2 + $0x2b8] sm:$0xf]
      %v1475 = vld [vmem:[#allocation2 + $0x2bc] sm:$0xff]
      %v1476 = vld [vmem:[#allocation2 + $0x2c4] sm:$0xff]
      %v1477 = vld [vmem:[#allocation2 + $0x2cc] sm:$0xf]
      %v1478 = vld [vmem:[%s2] sm:$0xff]
      %v1479 = vld [vmem:[%s2 + $0x8] sm:$0xff]
      %v1480 = vld [vmem:[%s2 + $0x10] sm:$0xff]
      %v1481 = vld [vmem:[%s2 + $0x18] sm:$0xff]
      %v1482 = vld [vmem:[%s2 + $0x20] sm:$0xff]
      %v1483 = vld [vmem:[%s2 + $0x28] sm:$0xff]
      %v1484 = vld [vmem:[%s2 + $0x30] sm:$0xff]
      %v1485 = vld [vmem:[%s2 + $0x38] sm:$0xff]
      %v1486 = vld [vmem:[%s2 + $0x40] sm:$0xff]
      %v1487 = vld [vmem:[%s2 + $0x48] sm:$0xff]
      %v1488 = vld [vmem:[%s2 + $0x50] sm:$0xff]
      %v1489 = vld [vmem:[%s2 + $0x58] sm:$0xff]
      %v1490 = vld [vmem:[%s2 + $0x60] sm:$0xff]
      %v1491 = vld [vmem:[%s2 + $0x68] sm:$0xff]
      %v1492 = vld [vmem:[%s2 + $0x70] sm:$0xff]
      %v1493 = vld [vmem:[%s2 + $0x78] sm:$0xff]
      %1495 = vset.pattern.permute.xlu0 0
      %1496 = vperm.xlu0 %1495, %v1478
      %v1497 = vpop.permute.xlu0 %1496
      %1500 = vset.pattern.permute.xlu0 0
      %1501 = vperm.xlu0 %1500, %v1479
      %v1502 = vpop.permute.xlu0 %1501
      %1505 = vset.pattern.permute.xlu0 0
      %1506 = vperm.xlu0 %1505, %v1480
      %v1507 = vpop.permute.xlu0 %1506
      %1510 = vset.pattern.permute.xlu0 0
      %1511 = vperm.xlu0 %1510, %v1481
      %v1512 = vpop.permute.xlu0 %1511
      %1515 = vset.pattern.permute.xlu0 0
      %1516 = vperm.xlu0 %1515, %v1482
      %v1517 = vpop.permute.xlu0 %1516
      %1520 = vset.pattern.permute.xlu0 0
      %1521 = vperm.xlu0 %1520, %v1483
      %v1522 = vpop.permute.xlu0 %1521
      %1525 = vset.pattern.permute.xlu0 0
      %1526 = vperm.xlu0 %1525, %v1484
      %v1527 = vpop.permute.xlu0 %1526
      %1530 = vset.pattern.permute.xlu0 0
      %1531 = vperm.xlu0 %1530, %v1485
      %v1532 = vpop.permute.xlu0 %1531
      %1535 = vset.pattern.permute.xlu0 0
      %1536 = vperm.xlu0 %1535, %v1486
      %v1537 = vpop.permute.xlu0 %1536
      %1540 = vset.pattern.permute.xlu0 0
      %1541 = vperm.xlu0 %1540, %v1487
      %v1542 = vpop.permute.xlu0 %1541
      %1545 = vset.pattern.permute.xlu0 0
      %1546 = vperm.xlu0 %1545, %v1488
      %v1547 = vpop.permute.xlu0 %1546
      %1550 = vset.pattern.permute.xlu0 0
      %1551 = vperm.xlu0 %1550, %v1489
      %v1552 = vpop.permute.xlu0 %1551
      %1555 = vset.pattern.permute.xlu0 0
      %1556 = vperm.xlu0 %1555, %v1490
      %v1557 = vpop.permute.xlu0 %1556
      %1560 = vset.pattern.permute.xlu0 0
      %1561 = vperm.xlu0 %1560, %v1491
      %v1562 = vpop.permute.xlu0 %1561
      %1565 = vset.pattern.permute.xlu0 0
      %1566 = vperm.xlu0 %1565, %v1492
      %v1567 = vpop.permute.xlu0 %1566
      %1570 = vset.pattern.permute.xlu0 0
      %1571 = vperm.xlu0 %1570, %v1493
      %v1572 = vpop.permute.xlu0 %1571
      %v1606 = vunpack.c.l.b16 %v1338
      %v1607 = vunpack.c.h.b16 %v1338
      %v1608 = vunpack.c.l.b16 %v1339
      %v1609 = vunpack.c.l.b16 %v1340
      %v1610 = vunpack.c.h.b16 %v1340
      %v1611 = vunpack.c.l.b16 %v1341
      %v1612 = vunpack.c.l.b16 %v1342
      %v1613 = vunpack.c.h.b16 %v1342
      %v1614 = vunpack.c.l.b16 %v1343
      %v1615 = vunpack.c.l.b16 %v1344
      %v1616 = vunpack.c.h.b16 %v1344
      %v1617 = vunpack.c.l.b16 %v1345
      %v1618 = vunpack.c.l.b16 %v1346
      %v1619 = vunpack.c.h.b16 %v1346
      %v1620 = vunpack.c.l.b16 %v1347
      %v1621 = vunpack.c.l.b16 %v1348
      %v1622 = vunpack.c.h.b16 %v1348
      %v1623 = vunpack.c.l.b16 %v1349
      %v1624 = vunpack.c.l.b16 %v1350
      %v1625 = vunpack.c.h.b16 %v1350
      %v1626 = vunpack.c.l.b16 %v1351
      %v1627 = vunpack.c.l.b16 %v1352
      %v1628 = vunpack.c.h.b16 %v1352
      %v1629 = vunpack.c.l.b16 %v1353
      %v1630 = vunpack.c.l.b16 %v1354
      %v1631 = vunpack.c.h.b16 %v1354
      %v1632 = vunpack.c.l.b16 %v1355
      %v1633 = vunpack.c.l.b16 %v1356
      %v1634 = vunpack.c.h.b16 %v1356
      %v1635 = vunpack.c.l.b16 %v1357
      %v1636 = vunpack.c.l.b16 %v1358
      %v1637 = vunpack.c.h.b16 %v1358
      %v1638 = vunpack.c.l.b16 %v1359
      %v1639 = vunpack.c.l.b16 %v1360
      %v1640 = vunpack.c.h.b16 %v1360
      %v1641 = vunpack.c.l.b16 %v1361
      %v1642 = vunpack.c.l.b16 %v1362
      %v1643 = vunpack.c.h.b16 %v1362
      %v1644 = vunpack.c.l.b16 %v1363
      %v1645 = vunpack.c.l.b16 %v1364
      %v1646 = vunpack.c.h.b16 %v1364
      %v1647 = vunpack.c.l.b16 %v1365
      %v1648 = vunpack.c.l.b16 %v1366
      %v1649 = vunpack.c.h.b16 %v1366
      %v1650 = vunpack.c.l.b16 %v1367
      %v1651 = vunpack.c.l.b16 %v1368
      %v1652 = vunpack.c.h.b16 %v1368
      %v1653 = vunpack.c.l.b16 %v1369
      %v1654 = vpack.c.b16 %v1609, %v1606
      %v1655 = vpack.c.b16 %v1610, %v1607
      %v1656 = vpack.c.b16 %v1611, %v1608
      %v1657 = vpack.c.b16 %v1615, %v1612
      %v1658 = vpack.c.b16 %v1616, %v1613
      %v1659 = vpack.c.b16 %v1617, %v1614
      %v1660 = vpack.c.b16 %v1621, %v1618
      %v1661 = vpack.c.b16 %v1622, %v1619
      %v1662 = vpack.c.b16 %v1623, %v1620
      %v1663 = vpack.c.b16 %v1627, %v1624
      %v1664 = vpack.c.b16 %v1628, %v1625
      %v1665 = vpack.c.b16 %v1629, %v1626
      %v1666 = vpack.c.b16 %v1633, %v1630
      %v1667 = vpack.c.b16 %v1634, %v1631
      %v1668 = vpack.c.b16 %v1635, %v1632
      %v1669 = vpack.c.b16 %v1639, %v1636
      %v1670 = vpack.c.b16 %v1640, %v1637
      %v1671 = vpack.c.b16 %v1641, %v1638
      %v1672 = vpack.c.b16 %v1645, %v1642
      %v1673 = vpack.c.b16 %v1646, %v1643
      %v1674 = vpack.c.b16 %v1647, %v1644
      %v1675 = vpack.c.b16 %v1651, %v1648
      %v1676 = vpack.c.b16 %v1652, %v1649
      %v1677 = vpack.c.b16 %v1653, %v1650
      %v1802 = vunpack.c.l.b16 %v1370
      %v1803 = vunpack.c.h.b16 %v1370
      %v1804 = vunpack.c.l.b16 %v1371
      %v1805 = vunpack.c.h.b16 %v1371
      %v1806 = vunpack.c.l.b16 %v1372
      %v1807 = vunpack.c.l.b16 %v1373
      %v1808 = vunpack.c.h.b16 %v1373
      %v1809 = vunpack.c.l.b16 %v1374
      %v1810 = vunpack.c.h.b16 %v1374
      %v1811 = vunpack.c.l.b16 %v1375
      %v1812 = vunpack.c.l.b16 %v1376
      %v1813 = vunpack.c.h.b16 %v1376
      %v1814 = vunpack.c.l.b16 %v1377
      %v1815 = vunpack.c.h.b16 %v1377
      %v1816 = vunpack.c.l.b16 %v1378
      %v1817 = vunpack.c.l.b16 %v1379
      %v1818 = vunpack.c.h.b16 %v1379
      %v1819 = vunpack.c.l.b16 %v1380
      %v1820 = vunpack.c.h.b16 %v1380
      %v1821 = vunpack.c.l.b16 %v1381
      %v1822 = vunpack.c.l.b16 %v1382
      %v1823 = vunpack.c.h.b16 %v1382
      %v1824 = vunpack.c.l.b16 %v1383
      %v1825 = vunpack.c.h.b16 %v1383
      %v1826 = vunpack.c.l.b16 %v1384
      %v1827 = vunpack.c.l.b16 %v1385
      %v1828 = vunpack.c.h.b16 %v1385
      %v1829 = vunpack.c.l.b16 %v1386
      %v1830 = vunpack.c.h.b16 %v1386
      %v1831 = vunpack.c.l.b16 %v1387
      %v1832 = vunpack.c.l.b16 %v1388
      %v1833 = vunpack.c.h.b16 %v1388
      %v1834 = vunpack.c.l.b16 %v1389
      %v1835 = vunpack.c.h.b16 %v1389
      %v1836 = vunpack.c.l.b16 %v1390
      %v1837 = vunpack.c.l.b16 %v1391
      %v1838 = vunpack.c.h.b16 %v1391
      %v1839 = vunpack.c.l.b16 %v1392
      %v1840 = vunpack.c.h.b16 %v1392
      %v1841 = vunpack.c.l.b16 %v1393
      %v1842 = vunpack.c.l.b16 %v1394
      %v1843 = vunpack.c.h.b16 %v1394
      %v1844 = vunpack.c.l.b16 %v1395
      %v1845 = vunpack.c.h.b16 %v1395
      %v1846 = vunpack.c.l.b16 %v1396
      %v1847 = vunpack.c.l.b16 %v1397
      %v1848 = vunpack.c.h.b16 %v1397
      %v1849 = vunpack.c.l.b16 %v1398
      %v1850 = vunpack.c.h.b16 %v1398
      %v1851 = vunpack.c.l.b16 %v1399
      %v1852 = vunpack.c.l.b16 %v1400
      %v1853 = vunpack.c.h.b16 %v1400
      %v1854 = vunpack.c.l.b16 %v1401
      %v1855 = vunpack.c.h.b16 %v1401
      %v1856 = vunpack.c.l.b16 %v1402
      %v1857 = vunpack.c.l.b16 %v1403
      %v1858 = vunpack.c.h.b16 %v1403
      %v1859 = vunpack.c.l.b16 %v1404
      %v1860 = vunpack.c.h.b16 %v1404
      %v1861 = vunpack.c.l.b16 %v1405
      %v1862 = vunpack.c.l.b16 %v1406
      %v1863 = vunpack.c.h.b16 %v1406
      %v1864 = vunpack.c.l.b16 %v1407
      %v1865 = vunpack.c.h.b16 %v1407
      %v1866 = vunpack.c.l.b16 %v1408
      %v1867 = vunpack.c.l.b16 %v1409
      %v1868 = vunpack.c.h.b16 %v1409
      %v1869 = vunpack.c.l.b16 %v1410
      %v1870 = vunpack.c.h.b16 %v1410
      %v1871 = vunpack.c.l.b16 %v1411
      %v1872 = vunpack.c.l.b16 %v1412
      %v1873 = vunpack.c.h.b16 %v1412
      %v1874 = vunpack.c.l.b16 %v1413
      %v1875 = vunpack.c.h.b16 %v1413
      %v1876 = vunpack.c.l.b16 %v1414
      %v1877 = vunpack.c.l.b16 %v1415
      %v1878 = vunpack.c.h.b16 %v1415
      %v1879 = vunpack.c.l.b16 %v1416
      %v1880 = vunpack.c.h.b16 %v1416
      %v1881 = vunpack.c.l.b16 %v1417
      %v1882 = vunpack.c.l.b16 %v1418
      %v1883 = vunpack.c.h.b16 %v1418
      %v1884 = vunpack.c.l.b16 %v1419
      %v1885 = vunpack.c.h.b16 %v1419
      %v1886 = vunpack.c.l.b16 %v1420
      %v1887 = vunpack.c.l.b16 %v1421
      %v1888 = vunpack.c.h.b16 %v1421
      %v1889 = vunpack.c.l.b16 %v1422
      %v1890 = vunpack.c.h.b16 %v1422
      %v1891 = vunpack.c.l.b16 %v1423
      %v1892 = vunpack.c.l.b16 %v1424
      %v1893 = vunpack.c.h.b16 %v1424
      %v1894 = vunpack.c.l.b16 %v1425
      %v1895 = vunpack.c.h.b16 %v1425
      %v1896 = vunpack.c.l.b16 %v1426
      %v1897 = vunpack.c.l.b16 %v1427
      %v1898 = vunpack.c.h.b16 %v1427
      %v1899 = vunpack.c.l.b16 %v1428
      %v1900 = vunpack.c.h.b16 %v1428
      %v1901 = vunpack.c.l.b16 %v1429
      %v1902 = vunpack.c.l.b16 %v1430
      %v1903 = vunpack.c.h.b16 %v1430
      %v1904 = vunpack.c.l.b16 %v1431
      %v1905 = vunpack.c.h.b16 %v1431
      %v1906 = vunpack.c.l.b16 %v1432
      %v1907 = vunpack.c.l.b16 %v1433
      %v1908 = vunpack.c.h.b16 %v1433
      %v1909 = vunpack.c.l.b16 %v1434
      %v1910 = vunpack.c.h.b16 %v1434
      %v1911 = vunpack.c.l.b16 %v1435
      %v1912 = vunpack.c.l.b16 %v1436
      %v1913 = vunpack.c.h.b16 %v1436
      %v1914 = vunpack.c.l.b16 %v1437
      %v1915 = vunpack.c.h.b16 %v1437
      %v1916 = vunpack.c.l.b16 %v1438
      %v1917 = vunpack.c.l.b16 %v1439
      %v1918 = vunpack.c.h.b16 %v1439
      %v1919 = vunpack.c.l.b16 %v1440
      %v1920 = vunpack.c.h.b16 %v1440
      %v1921 = vunpack.c.l.b16 %v1441
      %v1922 = vunpack.c.l.b16 %v1442
      %v1923 = vunpack.c.h.b16 %v1442
      %v1924 = vunpack.c.l.b16 %v1443
      %v1925 = vunpack.c.h.b16 %v1443
      %v1926 = vunpack.c.l.b16 %v1444
      %v1927 = vunpack.c.l.b16 %v1445
      %v1928 = vunpack.c.h.b16 %v1445
      %v1929 = vunpack.c.l.b16 %v1446
      %v1930 = vunpack.c.h.b16 %v1446
      %v1931 = vunpack.c.l.b16 %v1447
      %v1932 = vunpack.c.l.b16 %v1448
      %v1933 = vunpack.c.h.b16 %v1448
      %v1934 = vunpack.c.l.b16 %v1449
      %v1935 = vunpack.c.h.b16 %v1449
      %v1936 = vunpack.c.l.b16 %v1450
      %v1937 = vunpack.c.l.b16 %v1451
      %v1938 = vunpack.c.h.b16 %v1451
      %v1939 = vunpack.c.l.b16 %v1452
      %v1940 = vunpack.c.h.b16 %v1452
      %v1941 = vunpack.c.l.b16 %v1453
      %v1942 = vunpack.c.l.b16 %v1454
      %v1943 = vunpack.c.h.b16 %v1454
      %v1944 = vunpack.c.l.b16 %v1455
      %v1945 = vunpack.c.h.b16 %v1455
      %v1946 = vunpack.c.l.b16 %v1456
      %v1947 = vunpack.c.l.b16 %v1457
      %v1948 = vunpack.c.h.b16 %v1457
      %v1949 = vunpack.c.l.b16 %v1458
      %v1950 = vunpack.c.h.b16 %v1458
      %v1951 = vunpack.c.l.b16 %v1459
      %v1952 = vunpack.c.l.b16 %v1460
      %v1953 = vunpack.c.h.b16 %v1460
      %v1954 = vunpack.c.l.b16 %v1461
      %v1955 = vunpack.c.h.b16 %v1461
      %v1956 = vunpack.c.l.b16 %v1462
      %v1957 = vunpack.c.l.b16 %v1463
      %v1958 = vunpack.c.h.b16 %v1463
      %v1959 = vunpack.c.l.b16 %v1464
      %v1960 = vunpack.c.h.b16 %v1464
      %v1961 = vunpack.c.l.b16 %v1465
      %v1962 = vunpack.c.l.b16 %v1466
      %v1963 = vunpack.c.h.b16 %v1466
      %v1964 = vunpack.c.l.b16 %v1467
      %v1965 = vunpack.c.h.b16 %v1467
      %v1966 = vunpack.c.l.b16 %v1468
      %v1967 = vunpack.c.l.b16 %v1469
      %v1968 = vunpack.c.h.b16 %v1469
      %v1969 = vunpack.c.l.b16 %v1470
      %v1970 = vunpack.c.h.b16 %v1470
      %v1971 = vunpack.c.l.b16 %v1471
      %v1972 = vunpack.c.l.b16 %v1472
      %v1973 = vunpack.c.h.b16 %v1472
      %v1974 = vunpack.c.l.b16 %v1473
      %v1975 = vunpack.c.h.b16 %v1473
      %v1976 = vunpack.c.l.b16 %v1474
      %v1977 = vunpack.c.l.b16 %v1475
      %v1978 = vunpack.c.h.b16 %v1475
      %v1979 = vunpack.c.l.b16 %v1476
      %v1980 = vunpack.c.h.b16 %v1476
      %v1981 = vunpack.c.l.b16 %v1477
      %v1982 = vpack.c.b16 %v1807, %v1802
      %v1983 = vpack.c.b16 %v1808, %v1803
      %v1984 = vpack.c.b16 %v1809, %v1804
      %v1985 = vpack.c.b16 %v1810, %v1805
      %v1986 = vpack.c.b16 %v1811, %v1806
      %v1987 = vpack.c.b16 %v1817, %v1812
      %v1988 = vpack.c.b16 %v1818, %v1813
      %v1989 = vpack.c.b16 %v1819, %v1814
      %v1990 = vpack.c.b16 %v1820, %v1815
      %v1991 = vpack.c.b16 %v1821, %v1816
      %v1992 = vpack.c.b16 %v1827, %v1822
      %v1993 = vpack.c.b16 %v1828, %v1823
      %v1994 = vpack.c.b16 %v1829, %v1824
      %v1995 = vpack.c.b16 %v1830, %v1825
      %v1996 = vpack.c.b16 %v1831, %v1826
      %v1997 = vpack.c.b16 %v1837, %v1832
      %v1998 = vpack.c.b16 %v1838, %v1833
      %v1999 = vpack.c.b16 %v1839, %v1834
      %v2000 = vpack.c.b16 %v1840, %v1835
      %v2001 = vpack.c.b16 %v1841, %v1836
      %v2002 = vpack.c.b16 %v1847, %v1842
      %v2003 = vpack.c.b16 %v1848, %v1843
      %v2004 = vpack.c.b16 %v1849, %v1844
      %v2005 = vpack.c.b16 %v1850, %v1845
      %v2006 = vpack.c.b16 %v1851, %v1846
      %v2007 = vpack.c.b16 %v1857, %v1852
      %v2008 = vpack.c.b16 %v1858, %v1853
      %v2009 = vpack.c.b16 %v1859, %v1854
      %v2010 = vpack.c.b16 %v1860, %v1855
      %v2011 = vpack.c.b16 %v1861, %v1856
      %v2012 = vpack.c.b16 %v1867, %v1862
      %v2013 = vpack.c.b16 %v1868, %v1863
      %v2014 = vpack.c.b16 %v1869, %v1864
      %v2015 = vpack.c.b16 %v1870, %v1865
      %v2016 = vpack.c.b16 %v1871, %v1866
      %v2017 = vpack.c.b16 %v1877, %v1872
      %v2018 = vpack.c.b16 %v1878, %v1873
      %v2019 = vpack.c.b16 %v1879, %v1874
      %v2020 = vpack.c.b16 %v1880, %v1875
      %v2021 = vpack.c.b16 %v1881, %v1876
      %v2022 = vpack.c.b16 %v1887, %v1882
      %v2023 = vpack.c.b16 %v1888, %v1883
      %v2024 = vpack.c.b16 %v1889, %v1884
      %v2025 = vpack.c.b16 %v1890, %v1885
      %v2026 = vpack.c.b16 %v1891, %v1886
      %v2027 = vpack.c.b16 %v1897, %v1892
      %v2028 = vpack.c.b16 %v1898, %v1893
      %v2029 = vpack.c.b16 %v1899, %v1894
      %v2030 = vpack.c.b16 %v1900, %v1895
      %v2031 = vpack.c.b16 %v1901, %v1896
      %v2032 = vpack.c.b16 %v1907, %v1902
      %v2033 = vpack.c.b16 %v1908, %v1903
      %v2034 = vpack.c.b16 %v1909, %v1904
      %v2035 = vpack.c.b16 %v1910, %v1905
      %v2036 = vpack.c.b16 %v1911, %v1906
      %v2037 = vpack.c.b16 %v1917, %v1912
      %v2038 = vpack.c.b16 %v1918, %v1913
      %v2039 = vpack.c.b16 %v1919, %v1914
      %v2040 = vpack.c.b16 %v1920, %v1915
      %v2041 = vpack.c.b16 %v1921, %v1916
      %v2042 = vpack.c.b16 %v1927, %v1922
      %v2043 = vpack.c.b16 %v1928, %v1923
      %v2044 = vpack.c.b16 %v1929, %v1924
      %v2045 = vpack.c.b16 %v1930, %v1925
      %v2046 = vpack.c.b16 %v1931, %v1926
      %v2047 = vpack.c.b16 %v1937, %v1932
      %v2048 = vpack.c.b16 %v1938, %v1933
      %v2049 = vpack.c.b16 %v1939, %v1934
      %v2050 = vpack.c.b16 %v1940, %v1935
      %v2051 = vpack.c.b16 %v1941, %v1936
      %v2052 = vpack.c.b16 %v1947, %v1942
      %v2053 = vpack.c.b16 %v1948, %v1943
      %v2054 = vpack.c.b16 %v1949, %v1944
      %v2055 = vpack.c.b16 %v1950, %v1945
      %v2056 = vpack.c.b16 %v1951, %v1946
      %v2057 = vpack.c.b16 %v1957, %v1952
      %v2058 = vpack.c.b16 %v1958, %v1953
      %v2059 = vpack.c.b16 %v1959, %v1954
      %v2060 = vpack.c.b16 %v1960, %v1955
      %v2061 = vpack.c.b16 %v1961, %v1956
      %v2062 = vpack.c.b16 %v1967, %v1962
      %v2063 = vpack.c.b16 %v1968, %v1963
      %v2064 = vpack.c.b16 %v1969, %v1964
      %v2065 = vpack.c.b16 %v1970, %v1965
      %v2066 = vpack.c.b16 %v1971, %v1966
      %v2067 = vpack.c.b16 %v1977, %v1972
      %v2068 = vpack.c.b16 %v1978, %v1973
      %v2069 = vpack.c.b16 %v1979, %v1974
      %v2070 = vpack.c.b16 %v1980, %v1975
      %v2071 = vpack.c.b16 %v1981, %v1976
      %vm2162 = vcmask 261120
      %v2164 = vsel %vm2162, %v1656, 0
      %v2167 = vsel %vm2162, %v1659, 0
      %v2170 = vsel %vm2162, %v1662, 0
      %v2173 = vsel %vm2162, %v1665, 0
      %v2176 = vsel %vm2162, %v1668, 0
      %v2179 = vsel %vm2162, %v1671, 0
      %v2182 = vsel %vm2162, %v1674, 0
      %v2185 = vsel %vm2162, %v1677, 0
      %2187 = vmatprep.subr.bf16.mxu0 %v2018
      %2188 = vmatpush1.bf16.msra.mxu0 %v2017
      %2189 = vmatprep.subr.bf16.mxu0 %v2013
      %2190 = vmatpush1.bf16.msra.mxu0 %v2012
      %2191 = vmatprep.subr.bf16.mxu0 %v2008
      %2192 = vmatpush1.bf16.msra.mxu0 %v2007
      %2193 = vmatprep.subr.bf16.mxu0 %v2003
      %2194 = vmatpush1.bf16.msra.mxu0 %v2002
      %2195 = vmatprep.subr.bf16.mxu0 %v1998
      %2196 = vmatpush1.bf16.msra.mxu0 %v1997
      %2197 = vmatprep.subr.bf16.mxu0 %v1993
      %2198 = vmatpush1.bf16.msra.mxu0 %v1992
      %2199 = vmatprep.subr.bf16.mxu0 %v1988
      %2200 = vmatpush1.bf16.msra.mxu0 %v1987
      %2201 = vmatprep.subr.bf16.mxu0 %v1983
      %2202 = vmatpush1.bf16.msra.mxu0 %v1982
      %2203 = vmatprep.subr.bf16.mxu0 %v2058
      %2204 = vmatpush2.bf16.msra.mxu0 %v2057
      %2205 = vmatprep.subr.bf16.mxu0 %v2053
      %2206 = vmatpush2.bf16.msra.mxu0 %v2052
      %2207 = vmatprep.subr.bf16.mxu0 %v2048
      %2208 = vmatpush2.bf16.msra.mxu0 %v2047
      %2209 = vmatprep.subr.bf16.mxu0 %v2043
      %2210 = vmatpush2.bf16.msra.mxu0 %v2042
      %2211 = vmatprep.subr.bf16.mxu0 %v2038
      %2212 = vmatpush2.bf16.msra.mxu0 %v2037
      %2213 = vmatprep.subr.bf16.mxu0 %v2033
      %2214 = vmatpush2.bf16.msra.mxu0 %v2032
      %2215 = vmatprep.subr.bf16.mxu0 %v2028
      %2216 = vmatpush2.bf16.msra.mxu0 %v2027
      %2217 = vmatprep.subr.bf16.mxu0 %v2023
      %2218 = vmatpush2.bf16.msra.mxu0 %v2022
      %2219 = vmatprep.mubr.bf16.mxu0 %v1655
      %2220 = vmatmul.mubr.bf16.gmra.mxu0 %v1654
      %v2221 = vpop.f32.mrf.mxu0
      %v2222 = vadd.f32 %v1497, %v2221
      %v2223 = vpop.f32.mrf.mxu0
      %v2224 = vadd.f32 %v1497, %v2223
      %v2225 = vpop.f32.mrf.mxu0
      %v2226 = vadd.f32 %v1502, %v2225
      %v2227 = vpop.f32.mrf.mxu0
      %v2228 = vadd.f32 %v1502, %v2227
      %2229 = vmatprep.mubr.bf16.mxu0 %v1658
      %2230 = vmatmul.mubr.bf16.gmra.mxu0 %v1657
      %v2231 = vpop.f32.mrf.mxu0
      %v2232 = vadd.f32 %v1507, %v2231
      %v2233 = vpop.f32.mrf.mxu0
      %v2234 = vadd.f32 %v1507, %v2233
      %v2235 = vpop.f32.mrf.mxu0
      %v2236 = vadd.f32 %v1512, %v2235
      %v2237 = vpop.f32.mrf.mxu0
      %v2238 = vadd.f32 %v1512, %v2237
      %2239 = vmatprep.mubr.bf16.mxu0 %v1661
      %2240 = vmatmul.mubr.bf16.gmra.mxu0 %v1660
      %v2241 = vpop.f32.mrf.mxu0
      %v2242 = vadd.f32 %v1517, %v2241
      %v2243 = vpop.f32.mrf.mxu0
      %v2244 = vadd.f32 %v1517, %v2243
      %v2245 = vpop.f32.mrf.mxu0
      %v2246 = vadd.f32 %v1522, %v2245
      %v2247 = vpop.f32.mrf.mxu0
      %v2248 = vadd.f32 %v1522, %v2247
      %2249 = vmatprep.mubr.bf16.mxu0 %v1664
      %2250 = vmatmul.mubr.bf16.gmra.mxu0 %v1663
      %v2251 = vpop.f32.mrf.mxu0
      %v2252 = vadd.f32 %v1527, %v2251
      %v2253 = vpop.f32.mrf.mxu0
      %v2254 = vadd.f32 %v1527, %v2253
      %v2255 = vpop.f32.mrf.mxu0
      %v2256 = vadd.f32 %v1532, %v2255
      %v2257 = vpop.f32.mrf.mxu0
      %v2258 = vadd.f32 %v1532, %v2257
      %2259 = vmatprep.mubr.bf16.mxu0 %v1667
      %2260 = vmatmul.mubr.bf16.gmra.mxu0 %v1666
      %v2261 = vpop.f32.mrf.mxu0
      %v2262 = vadd.f32 %v1537, %v2261
      %v2263 = vpop.f32.mrf.mxu0
      %v2264 = vadd.f32 %v1537, %v2263
      %v2265 = vpop.f32.mrf.mxu0
      %v2266 = vadd.f32 %v1542, %v2265
      %v2267 = vpop.f32.mrf.mxu0
      %v2268 = vadd.f32 %v1542, %v2267
      %2269 = vmatprep.mubr.bf16.mxu0 %v1670
      %2270 = vmatmul.mubr.bf16.gmra.mxu0 %v1669
      %v2271 = vpop.f32.mrf.mxu0
      %v2272 = vadd.f32 %v1547, %v2271
      %v2273 = vpop.f32.mrf.mxu0
      %v2274 = vadd.f32 %v1547, %v2273
      %v2275 = vpop.f32.mrf.mxu0
      %v2276 = vadd.f32 %v1552, %v2275
      %v2277 = vpop.f32.mrf.mxu0
      %v2278 = vadd.f32 %v1552, %v2277
      %2279 = vmatprep.mubr.bf16.mxu0 %v1673
      %2280 = vmatmul.mubr.bf16.gmra.mxu0 %v1672
      %v2281 = vpop.f32.mrf.mxu0
      %v2282 = vadd.f32 %v1557, %v2281
      %v2283 = vpop.f32.mrf.mxu0
      %v2284 = vadd.f32 %v1557, %v2283
      %v2285 = vpop.f32.mrf.mxu0
      %v2286 = vadd.f32 %v1562, %v2285
      %v2287 = vpop.f32.mrf.mxu0
      %v2288 = vadd.f32 %v1562, %v2287
      %2289 = vmatprep.mubr.bf16.mxu0 %v1676
      %2290 = vmatmul.mubr.bf16.gmra.mxu0 %v1675
      %v2291 = vpop.f32.mrf.mxu0
      %v2292 = vadd.f32 %v1567, %v2291
      %v2293 = vpop.f32.mrf.mxu0
      %v2294 = vadd.f32 %v1567, %v2293
      %v2295 = vpop.f32.mrf.mxu0
      %v2296 = vadd.f32 %v1572, %v2295
      %v2297 = vpop.f32.mrf.mxu0
      %v2298 = vadd.f32 %v1572, %v2297
      %2299 = vdwg.mxu0
      %2300 = vmatprep.subr.bf16.mxu0 0
      %2301 = vmatpush1.bf16.msra.mxu0 0
      %2302 = vmatprep.subr.bf16.mxu0 0
      %2303 = vmatpush1.bf16.msra.mxu0 0
      %2304 = vmatprep.subr.bf16.mxu0 0
      %2305 = vmatpush1.bf16.msra.mxu0 0
      %2306 = vmatprep.subr.bf16.mxu0 0
      %2307 = vmatpush1.bf16.msra.mxu0 0
      %2308 = vmatprep.subr.bf16.mxu0 0
      %2309 = vmatpush1.bf16.msra.mxu0 0
      %2310 = vmatprep.subr.bf16.mxu0 0
      %2311 = vmatpush1.bf16.msra.mxu0 0
      %2312 = vmatprep.subr.bf16.mxu0 %v2068
      %2313 = vmatpush1.bf16.msra.mxu0 %v2067
      %2314 = vmatprep.subr.bf16.mxu0 %v2063
      %2315 = vmatpush1.bf16.msra.mxu0 %v2062
      %2316 = vmatprep.subr.bf16.mxu0 0
      %2317 = vmatpush2.bf16.msra.mxu0 0
      %2318 = vmatprep.subr.bf16.mxu0 0
      %2319 = vmatpush2.bf16.msra.mxu0 0
      %2320 = vmatprep.subr.bf16.mxu0 0
      %2321 = vmatpush2.bf16.msra.mxu0 0
      %2322 = vmatprep.subr.bf16.mxu0 0
      %2323 = vmatpush2.bf16.msra.mxu0 0
      %2324 = vmatprep.subr.bf16.mxu0 0
      %2325 = vmatpush2.bf16.msra.mxu0 0
      %2326 = vmatprep.subr.bf16.mxu0 0
      %2327 = vmatpush2.bf16.msra.mxu0 0
      %2328 = vmatprep.subr.bf16.mxu0 0
      %2329 = vmatpush2.bf16.msra.mxu0 0
      %2330 = vmatprep.subr.bf16.mxu0 0
      %2331 = vmatpush2.bf16.msra.mxu0 0
      %2332 = vmatprep.mubr.bf16.mxu0 0
      %2333 = vmatmul.mubr.bf16.gmra.mxu0 %v2164
      %v2334 = vpop.f32.mrf.mxu0
      %v2335 = vadd.f32 %v2222, %v2334
      %v2336 = vpop.f32.mrf.mxu0
      %v2337 = vadd.f32 %v2224, %v2336
      %v2338 = vpop.f32.mrf.mxu0
      %v2339 = vadd.f32 %v2226, %v2338
      %v2340 = vpop.f32.mrf.mxu0
      %v2341 = vadd.f32 %v2228, %v2340
      %2342 = vmatprep.mubr.bf16.mxu0 0
      %2343 = vmatmul.mubr.bf16.gmra.mxu0 %v2167
      %v2344 = vpop.f32.mrf.mxu0
      %v2345 = vadd.f32 %v2232, %v2344
      %v2346 = vpop.f32.mrf.mxu0
      %v2347 = vadd.f32 %v2234, %v2346
      %v2348 = vpop.f32.mrf.mxu0
      %v2349 = vadd.f32 %v2236, %v2348
      %v2350 = vpop.f32.mrf.mxu0
      %v2351 = vadd.f32 %v2238, %v2350
      %2352 = vmatprep.mubr.bf16.mxu0 0
      %2353 = vmatmul.mubr.bf16.gmra.mxu0 %v2170
      %v2354 = vpop.f32.mrf.mxu0
      %v2355 = vadd.f32 %v2242, %v2354
      %v2356 = vpop.f32.mrf.mxu0
      %v2357 = vadd.f32 %v2244, %v2356
      %v2358 = vpop.f32.mrf.mxu0
      %v2359 = vadd.f32 %v2246, %v2358
      %v2360 = vpop.f32.mrf.mxu0
      %v2361 = vadd.f32 %v2248, %v2360
      %2362 = vmatprep.mubr.bf16.mxu0 0
      %2363 = vmatmul.mubr.bf16.gmra.mxu0 %v2173
      %v2364 = vpop.f32.mrf.mxu0
      %v2365 = vadd.f32 %v2252, %v2364
      %v2366 = vpop.f32.mrf.mxu0
      %v2367 = vadd.f32 %v2254, %v2366
      %v2368 = vpop.f32.mrf.mxu0
      %v2369 = vadd.f32 %v2256, %v2368
      %v2370 = vpop.f32.mrf.mxu0
      %v2371 = vadd.f32 %v2258, %v2370
      %2372 = vmatprep.mubr.bf16.mxu0 0
      %2373 = vmatmul.mubr.bf16.gmra.mxu0 %v2176
      %v2374 = vpop.f32.mrf.mxu0
      %v2375 = vadd.f32 %v2262, %v2374
      %v2376 = vpop.f32.mrf.mxu0
      %v2377 = vadd.f32 %v2264, %v2376
      %v2378 = vpop.f32.mrf.mxu0
      %v2379 = vadd.f32 %v2266, %v2378
      %v2380 = vpop.f32.mrf.mxu0
      %v2381 = vadd.f32 %v2268, %v2380
      %2382 = vmatprep.mubr.bf16.mxu0 0
      %2383 = vmatmul.mubr.bf16.gmra.mxu0 %v2179
      %v2384 = vpop.f32.mrf.mxu0
      %v2385 = vadd.f32 %v2272, %v2384
      %v2386 = vpop.f32.mrf.mxu0
      %v2387 = vadd.f32 %v2274, %v2386
      %v2388 = vpop.f32.mrf.mxu0
      %v2389 = vadd.f32 %v2276, %v2388
      %v2390 = vpop.f32.mrf.mxu0
      %v2391 = vadd.f32 %v2278, %v2390
      %2392 = vmatprep.mubr.bf16.mxu0 0
      %2393 = vmatmul.mubr.bf16.gmra.mxu0 %v2182
      %v2394 = vpop.f32.mrf.mxu0
      %v2395 = vadd.f32 %v2282, %v2394
      %v2396 = vpop.f32.mrf.mxu0
      %v2397 = vadd.f32 %v2284, %v2396
      %v2398 = vpop.f32.mrf.mxu0
      %v2399 = vadd.f32 %v2286, %v2398
      %v2400 = vpop.f32.mrf.mxu0
      %v2401 = vadd.f32 %v2288, %v2400
      %2402 = vmatprep.mubr.bf16.mxu0 0
      %2403 = vmatmul.mubr.bf16.gmra.mxu0 %v2185
      %v2404 = vpop.f32.mrf.mxu0
      %v2405 = vadd.f32 %v2292, %v2404
      %v2406 = vpop.f32.mrf.mxu0
      %v2407 = vadd.f32 %v2294, %v2406
      %v2408 = vpop.f32.mrf.mxu0
      %v2409 = vadd.f32 %v2296, %v2408
      %v2410 = vpop.f32.mrf.mxu0
      %v2411 = vadd.f32 %v2298, %v2410
      %2412 = vdwg.mxu0
      %2413 = vmatprep.subr.bf16.mxu0 %v2020
      %2414 = vmatpush1.bf16.msra.mxu0 %v2019
      %2415 = vmatprep.subr.bf16.mxu0 %v2015
      %2416 = vmatpush1.bf16.msra.mxu0 %v2014
      %2417 = vmatprep.subr.bf16.mxu0 %v2010
      %2418 = vmatpush1.bf16.msra.mxu0 %v2009
      %2419 = vmatprep.subr.bf16.mxu0 %v2005
      %2420 = vmatpush1.bf16.msra.mxu0 %v2004
      %2421 = vmatprep.subr.bf16.mxu0 %v2000
      %2422 = vmatpush1.bf16.msra.mxu0 %v1999
      %2423 = vmatprep.subr.bf16.mxu0 %v1995
      %2424 = vmatpush1.bf16.msra.mxu0 %v1994
      %2425 = vmatprep.subr.bf16.mxu0 %v1990
      %2426 = vmatpush1.bf16.msra.mxu0 %v1989
      %2427 = vmatprep.subr.bf16.mxu0 %v1985
      %2428 = vmatpush1.bf16.msra.mxu0 %v1984
      %2429 = vmatprep.subr.bf16.mxu0 %v2060
      %2430 = vmatpush2.bf16.msra.mxu0 %v2059
      %2431 = vmatprep.subr.bf16.mxu0 %v2055
      %2432 = vmatpush2.bf16.msra.mxu0 %v2054
      %2433 = vmatprep.subr.bf16.mxu0 %v2050
      %2434 = vmatpush2.bf16.msra.mxu0 %v2049
      %2435 = vmatprep.subr.bf16.mxu0 %v2045
      %2436 = vmatpush2.bf16.msra.mxu0 %v2044
      %2437 = vmatprep.subr.bf16.mxu0 %v2040
      %2438 = vmatpush2.bf16.msra.mxu0 %v2039
      %2439 = vmatprep.subr.bf16.mxu0 %v2035
      %2440 = vmatpush2.bf16.msra.mxu0 %v2034
      %2441 = vmatprep.subr.bf16.mxu0 %v2030
      %2442 = vmatpush2.bf16.msra.mxu0 %v2029
      %2443 = vmatprep.subr.bf16.mxu0 %v2025
      %2444 = vmatpush2.bf16.msra.mxu0 %v2024
      %2445 = vmatprep.mubr.bf16.mxu0 %v1655
      %2446 = vmatmul.mubr.bf16.gmra.mxu0 %v1654
      %v2447 = vpop.f32.mrf.mxu0
      %v2448 = vadd.f32 %v1497, %v2447
      %v2449 = vpop.f32.mrf.mxu0
      %v2450 = vadd.f32 %v1497, %v2449
      %v2451 = vpop.f32.mrf.mxu0
      %v2452 = vadd.f32 %v1502, %v2451
      %v2453 = vpop.f32.mrf.mxu0
      %v2454 = vadd.f32 %v1502, %v2453
      %2455 = vmatprep.mubr.bf16.mxu0 %v1658
      %2456 = vmatmul.mubr.bf16.gmra.mxu0 %v1657
      %v2457 = vpop.f32.mrf.mxu0
      %v2458 = vadd.f32 %v1507, %v2457
      %v2459 = vpop.f32.mrf.mxu0
      %v2460 = vadd.f32 %v1507, %v2459
      %v2461 = vpop.f32.mrf.mxu0
      %v2462 = vadd.f32 %v1512, %v2461
      %v2463 = vpop.f32.mrf.mxu0
      %v2464 = vadd.f32 %v1512, %v2463
      %2465 = vmatprep.mubr.bf16.mxu0 %v1661
      %2466 = vmatmul.mubr.bf16.gmra.mxu0 %v1660
      %v2467 = vpop.f32.mrf.mxu0
      %v2468 = vadd.f32 %v1517, %v2467
      %v2469 = vpop.f32.mrf.mxu0
      %v2470 = vadd.f32 %v1517, %v2469
      %v2471 = vpop.f32.mrf.mxu0
      %v2472 = vadd.f32 %v1522, %v2471
      %v2473 = vpop.f32.mrf.mxu0
      %v2474 = vadd.f32 %v1522, %v2473
      %2475 = vmatprep.mubr.bf16.mxu0 %v1664
      %2476 = vmatmul.mubr.bf16.gmra.mxu0 %v1663
      %v2477 = vpop.f32.mrf.mxu0
      %v2478 = vadd.f32 %v1527, %v2477
      %v2479 = vpop.f32.mrf.mxu0
      %v2480 = vadd.f32 %v1527, %v2479
      %v2481 = vpop.f32.mrf.mxu0
      %v2482 = vadd.f32 %v1532, %v2481
      %v2483 = vpop.f32.mrf.mxu0
      %v2484 = vadd.f32 %v1532, %v2483
      %2485 = vmatprep.mubr.bf16.mxu0 %v1667
      %2486 = vmatmul.mubr.bf16.gmra.mxu0 %v1666
      %v2487 = vpop.f32.mrf.mxu0
      %v2488 = vadd.f32 %v1537, %v2487
      %v2489 = vpop.f32.mrf.mxu0
      %v2490 = vadd.f32 %v1537, %v2489
      %v2491 = vpop.f32.mrf.mxu0
      %v2492 = vadd.f32 %v1542, %v2491
      %v2493 = vpop.f32.mrf.mxu0
      %v2494 = vadd.f32 %v1542, %v2493
      %2495 = vmatprep.mubr.bf16.mxu0 %v1670
      %2496 = vmatmul.mubr.bf16.gmra.mxu0 %v1669
      %v2497 = vpop.f32.mrf.mxu0
      %v2498 = vadd.f32 %v1547, %v2497
      %v2499 = vpop.f32.mrf.mxu0
      %v2500 = vadd.f32 %v1547, %v2499
      %v2501 = vpop.f32.mrf.mxu0
      %v2502 = vadd.f32 %v1552, %v2501
      %v2503 = vpop.f32.mrf.mxu0
      %v2504 = vadd.f32 %v1552, %v2503
      %2505 = vmatprep.mubr.bf16.mxu0 %v1673
      %2506 = vmatmul.mubr.bf16.gmra.mxu0 %v1672
      %v2507 = vpop.f32.mrf.mxu0
      %v2508 = vadd.f32 %v1557, %v2507
      %v2509 = vpop.f32.mrf.mxu0
      %v2510 = vadd.f32 %v1557, %v2509
      %v2511 = vpop.f32.mrf.mxu0
      %v2512 = vadd.f32 %v1562, %v2511
      %v2513 = vpop.f32.mrf.mxu0
      %v2514 = vadd.f32 %v1562, %v2513
      %2515 = vmatprep.mubr.bf16.mxu0 %v1676
      %2516 = vmatmul.mubr.bf16.gmra.mxu0 %v1675
      %v2517 = vpop.f32.mrf.mxu0
      %v2518 = vadd.f32 %v1567, %v2517
      %v2519 = vpop.f32.mrf.mxu0
      %v2520 = vadd.f32 %v1567, %v2519
      %v2521 = vpop.f32.mrf.mxu0
      %v2522 = vadd.f32 %v1572, %v2521
      %v2523 = vpop.f32.mrf.mxu0
      %v2524 = vadd.f32 %v1572, %v2523
      %2525 = vdwg.mxu0
      %2526 = vmatprep.subr.bf16.mxu0 0
      %2527 = vmatpush1.bf16.msra.mxu0 0
      %2528 = vmatprep.subr.bf16.mxu0 0
      %2529 = vmatpush1.bf16.msra.mxu0 0
      %2530 = vmatprep.subr.bf16.mxu0 0
      %2531 = vmatpush1.bf16.msra.mxu0 0
      %2532 = vmatprep.subr.bf16.mxu0 0
      %2533 = vmatpush1.bf16.msra.mxu0 0
      %2534 = vmatprep.subr.bf16.mxu0 0
      %2535 = vmatpush1.bf16.msra.mxu0 0
      %2536 = vmatprep.subr.bf16.mxu0 0
      %2537 = vmatpush1.bf16.msra.mxu0 0
      %2538 = vmatprep.subr.bf16.mxu0 %v2070
      %2539 = vmatpush1.bf16.msra.mxu0 %v2069
      %2540 = vmatprep.subr.bf16.mxu0 %v2065
      %2541 = vmatpush1.bf16.msra.mxu0 %v2064
      %2542 = vmatprep.subr.bf16.mxu0 0
      %2543 = vmatpush2.bf16.msra.mxu0 0
      %2544 = vmatprep.subr.bf16.mxu0 0
      %2545 = vmatpush2.bf16.msra.mxu0 0
      %2546 = vmatprep.subr.bf16.mxu0 0
      %2547 = vmatpush2.bf16.msra.mxu0 0
      %2548 = vmatprep.subr.bf16.mxu0 0
      %2549 = vmatpush2.bf16.msra.mxu0 0
      %2550 = vmatprep.subr.bf16.mxu0 0
      %2551 = vmatpush2.bf16.msra.mxu0 0
      %2552 = vmatprep.subr.bf16.mxu0 0
      %2553 = vmatpush2.bf16.msra.mxu0 0
      %2554 = vmatprep.subr.bf16.mxu0 0
      %2555 = vmatpush2.bf16.msra.mxu0 0
      %2556 = vmatprep.subr.bf16.mxu0 0
      %2557 = vmatpush2.bf16.msra.mxu0 0
      %2558 = vmatprep.mubr.bf16.mxu0 0
      %2559 = vmatmul.mubr.bf16.gmra.mxu0 %v2164
      %v2560 = vpop.f32.mrf.mxu0
      %v2561 = vadd.f32 %v2448, %v2560
      %v2562 = vpop.f32.mrf.mxu0
      %v2563 = vadd.f32 %v2450, %v2562
      %v2564 = vpop.f32.mrf.mxu0
      %v2565 = vadd.f32 %v2452, %v2564
      %v2566 = vpop.f32.mrf.mxu0
      %v2567 = vadd.f32 %v2454, %v2566
      %2568 = vmatprep.mubr.bf16.mxu0 0
      %2569 = vmatmul.mubr.bf16.gmra.mxu0 %v2167
      %v2570 = vpop.f32.mrf.mxu0
      %v2571 = vadd.f32 %v2458, %v2570
      %v2572 = vpop.f32.mrf.mxu0
      %v2573 = vadd.f32 %v2460, %v2572
      %v2574 = vpop.f32.mrf.mxu0
      %v2575 = vadd.f32 %v2462, %v2574
      %v2576 = vpop.f32.mrf.mxu0
      %v2577 = vadd.f32 %v2464, %v2576
      %2578 = vmatprep.mubr.bf16.mxu0 0
      %2579 = vmatmul.mubr.bf16.gmra.mxu0 %v2170
      %v2580 = vpop.f32.mrf.mxu0
      %v2581 = vadd.f32 %v2468, %v2580
      %v2582 = vpop.f32.mrf.mxu0
      %v2583 = vadd.f32 %v2470, %v2582
      %v2584 = vpop.f32.mrf.mxu0
      %v2585 = vadd.f32 %v2472, %v2584
      %v2586 = vpop.f32.mrf.mxu0
      %v2587 = vadd.f32 %v2474, %v2586
      %2588 = vmatprep.mubr.bf16.mxu0 0
      %2589 = vmatmul.mubr.bf16.gmra.mxu0 %v2173
      %v2590 = vpop.f32.mrf.mxu0
      %v2591 = vadd.f32 %v2478, %v2590
      %v2592 = vpop.f32.mrf.mxu0
      %v2593 = vadd.f32 %v2480, %v2592
      %v2594 = vpop.f32.mrf.mxu0
      %v2595 = vadd.f32 %v2482, %v2594
      %v2596 = vpop.f32.mrf.mxu0
      %v2597 = vadd.f32 %v2484, %v2596
      %2598 = vmatprep.mubr.bf16.mxu0 0
      %2599 = vmatmul.mubr.bf16.gmra.mxu0 %v2176
      %v2600 = vpop.f32.mrf.mxu0
      %v2601 = vadd.f32 %v2488, %v2600
      %v2602 = vpop.f32.mrf.mxu0
      %v2603 = vadd.f32 %v2490, %v2602
      %v2604 = vpop.f32.mrf.mxu0
      %v2605 = vadd.f32 %v2492, %v2604
      %v2606 = vpop.f32.mrf.mxu0
      %v2607 = vadd.f32 %v2494, %v2606
      %2608 = vmatprep.mubr.bf16.mxu0 0
      %2609 = vmatmul.mubr.bf16.gmra.mxu0 %v2179
      %v2610 = vpop.f32.mrf.mxu0
      %v2611 = vadd.f32 %v2498, %v2610
      %v2612 = vpop.f32.mrf.mxu0
      %v2613 = vadd.f32 %v2500, %v2612
      %v2614 = vpop.f32.mrf.mxu0
      %v2615 = vadd.f32 %v2502, %v2614
      %v2616 = vpop.f32.mrf.mxu0
      %v2617 = vadd.f32 %v2504, %v2616
      %2618 = vmatprep.mubr.bf16.mxu0 0
      %2619 = vmatmul.mubr.bf16.gmra.mxu0 %v2182
      %v2620 = vpop.f32.mrf.mxu0
      %v2621 = vadd.f32 %v2508, %v2620
      %v2622 = vpop.f32.mrf.mxu0
      %v2623 = vadd.f32 %v2510, %v2622
      %v2624 = vpop.f32.mrf.mxu0
      %v2625 = vadd.f32 %v2512, %v2624
      %v2626 = vpop.f32.mrf.mxu0
      %v2627 = vadd.f32 %v2514, %v2626
      %2628 = vmatprep.mubr.bf16.mxu0 0
      %2629 = vmatmul.mubr.bf16.gmra.mxu0 %v2185
      %v2630 = vpop.f32.mrf.mxu0
      %v2631 = vadd.f32 %v2518, %v2630
      %v2632 = vpop.f32.mrf.mxu0
      %v2633 = vadd.f32 %v2520, %v2632
      %v2634 = vpop.f32.mrf.mxu0
      %v2635 = vadd.f32 %v2522, %v2634
      %v2636 = vpop.f32.mrf.mxu0
      %v2637 = vadd.f32 %v2524, %v2636
      %2638 = vdwg.mxu0
      %2639 = vmatprep.subr.bf16.mxu0 0
      %2640 = vmatpush1.bf16.msra.mxu0 %v2021
      %2641 = vmatprep.subr.bf16.mxu0 0
      %2642 = vmatpush1.bf16.msra.mxu0 %v2016
      %2643 = vmatprep.subr.bf16.mxu0 0
      %2644 = vmatpush1.bf16.msra.mxu0 %v2011
      %2645 = vmatprep.subr.bf16.mxu0 0
      %2646 = vmatpush1.bf16.msra.mxu0 %v2006
      %2647 = vmatprep.subr.bf16.mxu0 0
      %2648 = vmatpush1.bf16.msra.mxu0 %v2001
      %2649 = vmatprep.subr.bf16.mxu0 0
      %2650 = vmatpush1.bf16.msra.mxu0 %v1996
      %2651 = vmatprep.subr.bf16.mxu0 0
      %2652 = vmatpush1.bf16.msra.mxu0 %v1991
      %2653 = vmatprep.subr.bf16.mxu0 0
      %2654 = vmatpush1.bf16.msra.mxu0 %v1986
      %2655 = vmatprep.subr.bf16.mxu0 0
      %2656 = vmatpush2.bf16.msra.mxu0 %v2061
      %2657 = vmatprep.subr.bf16.mxu0 0
      %2658 = vmatpush2.bf16.msra.mxu0 %v2056
      %2659 = vmatprep.subr.bf16.mxu0 0
      %2660 = vmatpush2.bf16.msra.mxu0 %v2051
      %2661 = vmatprep.subr.bf16.mxu0 0
      %2662 = vmatpush2.bf16.msra.mxu0 %v2046
      %2663 = vmatprep.subr.bf16.mxu0 0
      %2664 = vmatpush2.bf16.msra.mxu0 %v2041
      %2665 = vmatprep.subr.bf16.mxu0 0
      %2666 = vmatpush2.bf16.msra.mxu0 %v2036
      %2667 = vmatprep.subr.bf16.mxu0 0
      %2668 = vmatpush2.bf16.msra.mxu0 %v2031
      %2669 = vmatprep.subr.bf16.mxu0 0
      %2670 = vmatpush2.bf16.msra.mxu0 %v2026
      %2671 = vmatprep.mubr.bf16.mxu0 %v1655
      %2672 = vmatmul.mubr.bf16.gmra.mxu0 %v1654
      %v2673 = vpop.f32.mrf.mxu0
      %v2674 = vadd.f32 %v1497, %v2673
      %v2675 = vpop.f32.mrf.mxu0
      %v2676 = vpop.f32.mrf.mxu0
      %v2677 = vadd.f32 %v1502, %v2676
      %v2678 = vpop.f32.mrf.mxu0
      %2679 = vmatprep.mubr.bf16.mxu0 %v1658
      %2680 = vmatmul.mubr.bf16.gmra.mxu0 %v1657
      %v2681 = vpop.f32.mrf.mxu0
      %v2682 = vadd.f32 %v1507, %v2681
      %v2683 = vpop.f32.mrf.mxu0
      %v2684 = vpop.f32.mrf.mxu0
      %v2685 = vadd.f32 %v1512, %v2684
      %v2686 = vpop.f32.mrf.mxu0
      %2687 = vmatprep.mubr.bf16.mxu0 %v1661
      %2688 = vmatmul.mubr.bf16.gmra.mxu0 %v1660
      %v2689 = vpop.f32.mrf.mxu0
      %v2690 = vadd.f32 %v1517, %v2689
      %v2691 = vpop.f32.mrf.mxu0
      %v2692 = vpop.f32.mrf.mxu0
      %v2693 = vadd.f32 %v1522, %v2692
      %v2694 = vpop.f32.mrf.mxu0
      %2695 = vmatprep.mubr.bf16.mxu0 %v1664
      %2696 = vmatmul.mubr.bf16.gmra.mxu0 %v1663
      %v2697 = vpop.f32.mrf.mxu0
      %v2698 = vadd.f32 %v1527, %v2697
      %v2699 = vpop.f32.mrf.mxu0
      %v2700 = vpop.f32.mrf.mxu0
      %v2701 = vadd.f32 %v1532, %v2700
      %v2702 = vpop.f32.mrf.mxu0
      %2703 = vmatprep.mubr.bf16.mxu0 %v1667
      %2704 = vmatmul.mubr.bf16.gmra.mxu0 %v1666
      %v2705 = vpop.f32.mrf.mxu0
      %v2706 = vadd.f32 %v1537, %v2705
      %v2707 = vpop.f32.mrf.mxu0
      %v2708 = vpop.f32.mrf.mxu0
      %v2709 = vadd.f32 %v1542, %v2708
      %v2710 = vpop.f32.mrf.mxu0
      %2711 = vmatprep.mubr.bf16.mxu0 %v1670
      %2712 = vmatmul.mubr.bf16.gmra.mxu0 %v1669
      %v2713 = vpop.f32.mrf.mxu0
      %v2714 = vadd.f32 %v1547, %v2713
      %v2715 = vpop.f32.mrf.mxu0
      %v2716 = vpop.f32.mrf.mxu0
      %v2717 = vadd.f32 %v1552, %v2716
      %v2718 = vpop.f32.mrf.mxu0
      %2719 = vmatprep.mubr.bf16.mxu0 %v1673
      %2720 = vmatmul.mubr.bf16.gmra.mxu0 %v1672
      %v2721 = vpop.f32.mrf.mxu0
      %v2722 = vadd.f32 %v1557, %v2721
      %v2723 = vpop.f32.mrf.mxu0
      %v2724 = vpop.f32.mrf.mxu0
      %v2725 = vadd.f32 %v1562, %v2724
      %v2726 = vpop.f32.mrf.mxu0
      %2727 = vmatprep.mubr.bf16.mxu0 %v1676
      %2728 = vmatmul.mubr.bf16.gmra.mxu0 %v1675
      %v2729 = vpop.f32.mrf.mxu0
      %v2730 = vadd.f32 %v1567, %v2729
      %v2731 = vpop.f32.mrf.mxu0
      %v2732 = vpop.f32.mrf.mxu0
      %v2733 = vadd.f32 %v1572, %v2732
      %v2734 = vpop.f32.mrf.mxu0
      %2735 = vdwg.mxu0
      %2736 = vmatprep.subr.bf16.mxu0 0
      %2737 = vmatpush1.bf16.msra.mxu0 0
      %2738 = vmatprep.subr.bf16.mxu0 0
      %2739 = vmatpush1.bf16.msra.mxu0 0
      %2740 = vmatprep.subr.bf16.mxu0 0
      %2741 = vmatpush1.bf16.msra.mxu0 0
      %2742 = vmatprep.subr.bf16.mxu0 0
      %2743 = vmatpush1.bf16.msra.mxu0 0
      %2744 = vmatprep.subr.bf16.mxu0 0
      %2745 = vmatpush1.bf16.msra.mxu0 0
      %2746 = vmatprep.subr.bf16.mxu0 0
      %2747 = vmatpush1.bf16.msra.mxu0 0
      %2748 = vmatprep.subr.bf16.mxu0 0
      %2749 = vmatpush1.bf16.msra.mxu0 %v2071
      %2750 = vmatprep.subr.bf16.mxu0 0
      %2751 = vmatpush1.bf16.msra.mxu0 %v2066
      %2752 = vmatprep.subr.bf16.mxu0 0
      %2753 = vmatpush2.bf16.msra.mxu0 0
      %2754 = vmatprep.subr.bf16.mxu0 0
      %2755 = vmatpush2.bf16.msra.mxu0 0
      %2756 = vmatprep.subr.bf16.mxu0 0
      %2757 = vmatpush2.bf16.msra.mxu0 0
      %2758 = vmatprep.subr.bf16.mxu0 0
      %2759 = vmatpush2.bf16.msra.mxu0 0
      %2760 = vmatprep.subr.bf16.mxu0 0
      %2761 = vmatpush2.bf16.msra.mxu0 0
      %2762 = vmatprep.subr.bf16.mxu0 0
      %2763 = vmatpush2.bf16.msra.mxu0 0
      %2764 = vmatprep.subr.bf16.mxu0 0
      %2765 = vmatpush2.bf16.msra.mxu0 0
      %2766 = vmatprep.subr.bf16.mxu0 0
      %2767 = vmatpush2.bf16.msra.mxu0 0
      %2768 = vmatprep.mubr.bf16.mxu0 0
      %2769 = vmatmul.mubr.bf16.gmra.mxu0 %v2164
      %v2770 = vpop.f32.mrf.mxu0
      %v2771 = vadd.f32 %v2674, %v2770
      %v2772 = vpop.f32.mrf.mxu0
      %v2773 = vpop.f32.mrf.mxu0
      %v2774 = vadd.f32 %v2677, %v2773
      %v2775 = vpop.f32.mrf.mxu0
      %2776 = vmatprep.mubr.bf16.mxu0 0
      %2777 = vmatmul.mubr.bf16.gmra.mxu0 %v2167
      %v2778 = vpop.f32.mrf.mxu0
      %v2779 = vadd.f32 %v2682, %v2778
      %v2780 = vpop.f32.mrf.mxu0
      %v2781 = vpop.f32.mrf.mxu0
      %v2782 = vadd.f32 %v2685, %v2781
      %v2783 = vpop.f32.mrf.mxu0
      %2784 = vmatprep.mubr.bf16.mxu0 0
      %2785 = vmatmul.mubr.bf16.gmra.mxu0 %v2170
      %v2786 = vpop.f32.mrf.mxu0
      %v2787 = vadd.f32 %v2690, %v2786
      %v2788 = vpop.f32.mrf.mxu0
      %v2789 = vpop.f32.mrf.mxu0
      %v2790 = vadd.f32 %v2693, %v2789
      %v2791 = vpop.f32.mrf.mxu0
      %2792 = vmatprep.mubr.bf16.mxu0 0
      %2793 = vmatmul.mubr.bf16.gmra.mxu0 %v2173
      %v2794 = vpop.f32.mrf.mxu0
      %v2795 = vadd.f32 %v2698, %v2794
      %v2796 = vpop.f32.mrf.mxu0
      %v2797 = vpop.f32.mrf.mxu0
      %v2798 = vadd.f32 %v2701, %v2797
      %v2799 = vpop.f32.mrf.mxu0
      %2800 = vmatprep.mubr.bf16.mxu0 0
      %2801 = vmatmul.mubr.bf16.gmra.mxu0 %v2176
      %v2802 = vpop.f32.mrf.mxu0
      %v2803 = vadd.f32 %v2706, %v2802
      %v2804 = vpop.f32.mrf.mxu0
      %v2805 = vpop.f32.mrf.mxu0
      %v2806 = vadd.f32 %v2709, %v2805
      %v2807 = vpop.f32.mrf.mxu0
      %2808 = vmatprep.mubr.bf16.mxu0 0
      %2809 = vmatmul.mubr.bf16.gmra.mxu0 %v2179
      %v2810 = vpop.f32.mrf.mxu0
      %v2811 = vadd.f32 %v2714, %v2810
      %v2812 = vpop.f32.mrf.mxu0
      %v2813 = vpop.f32.mrf.mxu0
      %v2814 = vadd.f32 %v2717, %v2813
      %v2815 = vpop.f32.mrf.mxu0
      %2816 = vmatprep.mubr.bf16.mxu0 0
      %2817 = vmatmul.mubr.bf16.gmra.mxu0 %v2182
      %v2818 = vpop.f32.mrf.mxu0
      %v2819 = vadd.f32 %v2722, %v2818
      %v2820 = vpop.f32.mrf.mxu0
      %v2821 = vpop.f32.mrf.mxu0
      %v2822 = vadd.f32 %v2725, %v2821
      %v2823 = vpop.f32.mrf.mxu0
      %2824 = vmatprep.mubr.bf16.mxu0 0
      %2825 = vmatmul.mubr.bf16.gmra.mxu0 %v2185
      %v2826 = vpop.f32.mrf.mxu0
      %v2827 = vadd.f32 %v2730, %v2826
      %v2828 = vpop.f32.mrf.mxu0
      %v2829 = vpop.f32.mrf.mxu0
      %v2830 = vadd.f32 %v2733, %v2829
      %v2831 = vpop.f32.mrf.mxu0
      %2832 = vdwg.mxu0
      %v2833 = vmax.f32 %v2335, 0.0
      %v2834 = vmax.f32 %v2337, 0.0
      %v2835 = vmax.f32 %v2561, 0.0
      %v2836 = vmax.f32 %v2563, 0.0
      %v2837 = vmax.f32 %v2771, 0.0
      %v2838 = vmax.f32 %v2339, 0.0
      %v2839 = vmax.f32 %v2341, 0.0
      %v2840 = vmax.f32 %v2565, 0.0
      %v2841 = vmax.f32 %v2567, 0.0
      %v2842 = vmax.f32 %v2774, 0.0
      %v2843 = vmax.f32 %v2345, 0.0
      %v2844 = vmax.f32 %v2347, 0.0
      %v2845 = vmax.f32 %v2571, 0.0
      %v2846 = vmax.f32 %v2573, 0.0
      %v2847 = vmax.f32 %v2779, 0.0
      %v2848 = vmax.f32 %v2349, 0.0
      %v2849 = vmax.f32 %v2351, 0.0
      %v2850 = vmax.f32 %v2575, 0.0
      %v2851 = vmax.f32 %v2577, 0.0
      %v2852 = vmax.f32 %v2782, 0.0
      %v2853 = vmax.f32 %v2355, 0.0
      %v2854 = vmax.f32 %v2357, 0.0
      %v2855 = vmax.f32 %v2581, 0.0
      %v2856 = vmax.f32 %v2583, 0.0
      %v2857 = vmax.f32 %v2787, 0.0
      %v2858 = vmax.f32 %v2359, 0.0
      %v2859 = vmax.f32 %v2361, 0.0
      %v2860 = vmax.f32 %v2585, 0.0
      %v2861 = vmax.f32 %v2587, 0.0
      %v2862 = vmax.f32 %v2790, 0.0
      %v2863 = vmax.f32 %v2365, 0.0
      %v2864 = vmax.f32 %v2367, 0.0
      %v2865 = vmax.f32 %v2591, 0.0
      %v2866 = vmax.f32 %v2593, 0.0
      %v2867 = vmax.f32 %v2795, 0.0
      %v2868 = vmax.f32 %v2369, 0.0
      %v2869 = vmax.f32 %v2371, 0.0
      %v2870 = vmax.f32 %v2595, 0.0
      %v2871 = vmax.f32 %v2597, 0.0
      %v2872 = vmax.f32 %v2798, 0.0
      %v2873 = vmax.f32 %v2375, 0.0
      %v2874 = vmax.f32 %v2377, 0.0
      %v2875 = vmax.f32 %v2601, 0.0
      %v2876 = vmax.f32 %v2603, 0.0
      %v2877 = vmax.f32 %v2803, 0.0
      %v2878 = vmax.f32 %v2379, 0.0
      %v2879 = vmax.f32 %v2381, 0.0
      %v2880 = vmax.f32 %v2605, 0.0
      %v2881 = vmax.f32 %v2607, 0.0
      %v2882 = vmax.f32 %v2806, 0.0
      %v2883 = vmax.f32 %v2385, 0.0
      %v2884 = vmax.f32 %v2387, 0.0
      %v2885 = vmax.f32 %v2611, 0.0
      %v2886 = vmax.f32 %v2613, 0.0
      %v2887 = vmax.f32 %v2811, 0.0
      %v2888 = vmax.f32 %v2389, 0.0
      %v2889 = vmax.f32 %v2391, 0.0
      %v2890 = vmax.f32 %v2615, 0.0
      %v2891 = vmax.f32 %v2617, 0.0
      %v2892 = vmax.f32 %v2814, 0.0
      %v2893 = vmax.f32 %v2395, 0.0
      %v2894 = vmax.f32 %v2397, 0.0
      %v2895 = vmax.f32 %v2621, 0.0
      %v2896 = vmax.f32 %v2623, 0.0
      %v2897 = vmax.f32 %v2819, 0.0
      %v2898 = vmax.f32 %v2399, 0.0
      %v2899 = vmax.f32 %v2401, 0.0
      %v2900 = vmax.f32 %v2625, 0.0
      %v2901 = vmax.f32 %v2627, 0.0
      %v2902 = vmax.f32 %v2822, 0.0
      %v2903 = vmax.f32 %v2405, 0.0
      %v2904 = vmax.f32 %v2407, 0.0
      %v2905 = vmax.f32 %v2631, 0.0
      %v2906 = vmax.f32 %v2633, 0.0
      %v2907 = vmax.f32 %v2827, 0.0
      %v2908 = vmax.f32 %v2409, 0.0
      %v2909 = vmax.f32 %v2411, 0.0
      %v2910 = vmax.f32 %v2635, 0.0
      %v2911 = vmax.f32 %v2637, 0.0
      %v2912 = vmax.f32 %v2830, 0.0
      %v2913 = vpack.c.bf16 %v2838, %v2833
      %v2914 = vpack.c.bf16 %v2839, %v2834
      %v2915 = vpack.c.bf16 %v2840, %v2835
      %v2916 = vpack.c.bf16 %v2841, %v2836
      %v2917 = vpack.c.bf16 %v2842, %v2837
      %v2918 = vpack.c.bf16 %v2848, %v2843
      %v2919 = vpack.c.bf16 %v2849, %v2844
      %v2920 = vpack.c.bf16 %v2850, %v2845
      %v2921 = vpack.c.bf16 %v2851, %v2846
      %v2922 = vpack.c.bf16 %v2852, %v2847
      %v2923 = vpack.c.bf16 %v2858, %v2853
      %v2924 = vpack.c.bf16 %v2859, %v2854
      %v2925 = vpack.c.bf16 %v2860, %v2855
      %v2926 = vpack.c.bf16 %v2861, %v2856
      %v2927 = vpack.c.bf16 %v2862, %v2857
      %v2928 = vpack.c.bf16 %v2868, %v2863
      %v2929 = vpack.c.bf16 %v2869, %v2864
      %v2930 = vpack.c.bf16 %v2870, %v2865
      %v2931 = vpack.c.bf16 %v2871, %v2866
      %v2932 = vpack.c.bf16 %v2872, %v2867
      %v2933 = vpack.c.bf16 %v2878, %v2873
      %v2934 = vpack.c.bf16 %v2879, %v2874
      %v2935 = vpack.c.bf16 %v2880, %v2875
      %v2936 = vpack.c.bf16 %v2881, %v2876
      %v2937 = vpack.c.bf16 %v2882, %v2877
      %v2938 = vpack.c.bf16 %v2888, %v2883
      %v2939 = vpack.c.bf16 %v2889, %v2884
      %v2940 = vpack.c.bf16 %v2890, %v2885
      %v2941 = vpack.c.bf16 %v2891, %v2886
      %v2942 = vpack.c.bf16 %v2892, %v2887
      %v2943 = vpack.c.bf16 %v2898, %v2893
      %v2944 = vpack.c.bf16 %v2899, %v2894
      %v2945 = vpack.c.bf16 %v2900, %v2895
      %v2946 = vpack.c.bf16 %v2901, %v2896
      %v2947 = vpack.c.bf16 %v2902, %v2897
      %v2948 = vpack.c.bf16 %v2908, %v2903
      %v2949 = vpack.c.bf16 %v2909, %v2904
      %v2950 = vpack.c.bf16 %v2910, %v2905
      %v2951 = vpack.c.bf16 %v2911, %v2906
      %v2952 = vpack.c.bf16 %v2912, %v2907
      %v2953 = vld [vmem:[%s3] sm:$0xf]
      %v2954 = vld [vmem:[%s3 + $0x4] sm:$0xf]
      %v2955 = vld [vmem:[%s3 + $0x8] sm:$0xf]
      %v2956 = vld [vmem:[%s3 + $0xc] sm:$0xf]
      %v2961 = vunpack.c.l.b16 %v2953
      %v2962 = vunpack.c.l.b16 %v2954
      %v2963 = vunpack.c.l.b16 %v2955
      %v2964 = vunpack.c.l.b16 %v2956
      %v2965 = vpack.c.b16 %v2962, %v2961
      %v2966 = vpack.c.b16 %v2964, %v2963
      %2969 = vmatprep.subr.bf16.mxu0 %v2949
      %2970 = vmatpush1.bf16.msra.mxu0 %v2948
      %2971 = vmatprep.subr.bf16.mxu0 %v2944
      %2972 = vmatpush1.bf16.msra.mxu0 %v2943
      %2973 = vmatprep.subr.bf16.mxu0 %v2939
      %2974 = vmatpush1.bf16.msra.mxu0 %v2938
      %2975 = vmatprep.subr.bf16.mxu0 %v2934
      %2976 = vmatpush1.bf16.msra.mxu0 %v2933
      %2977 = vmatprep.subr.bf16.mxu0 %v2929
      %2978 = vmatpush1.bf16.msra.mxu0 %v2928
      %2979 = vmatprep.subr.bf16.mxu0 %v2924
      %2980 = vmatpush1.bf16.msra.mxu0 %v2923
      %2981 = vmatprep.subr.bf16.mxu0 %v2919
      %2982 = vmatpush1.bf16.msra.mxu0 %v2918
      %2983 = vmatprep.subr.bf16.mxu0 %v2914
      %2984 = vmatpush1.bf16.msra.mxu0 %v2913
      %2985 = vmatprep.subr.bf16.mxu0 0
      %2986 = vmatpush2.bf16.msra.mxu0 0
      %2987 = vmatprep.subr.bf16.mxu0 0
      %2988 = vmatpush2.bf16.msra.mxu0 0
      %2989 = vmatprep.subr.bf16.mxu0 0
      %2990 = vmatpush2.bf16.msra.mxu0 0
      %2991 = vmatprep.subr.bf16.mxu0 0
      %2992 = vmatpush2.bf16.msra.mxu0 0
      %2993 = vmatprep.subr.bf16.mxu0 0
      %2994 = vmatpush2.bf16.msra.mxu0 0
      %2995 = vmatprep.subr.bf16.mxu0 0
      %2996 = vmatpush2.bf16.msra.mxu0 0
      %2997 = vmatprep.subr.bf16.mxu0 0
      %2998 = vmatpush2.bf16.msra.mxu0 0
      %2999 = vmatprep.subr.bf16.mxu0 0
      %3000 = vmatpush2.bf16.msra.mxu0 0
      %3001 = vmatprep.mubr.bf16.mxu0 0
      %3002 = vmatmul.mubr.bf16.gmra.mxu0 %v2965
      %v3003 = vpop.f32.mrf.mxu0
      %v3004 = vadd.f32 0.0, %v3003
      %v3005 = vpop.f32.mrf.mxu0
      %v3006 = vadd.f32 0.0, %v3005
      %v3007 = vpop.f32.mrf.mxu0
      %v3008 = vadd.f32 0.0, %v3007
      %v3009 = vpop.f32.mrf.mxu0
      %v3010 = vadd.f32 0.0, %v3009
      %3011 = vmatprep.mubr.bf16.mxu0 0
      %3012 = vmatmul.mubr.bf16.gmra.mxu0 %v2966
      %v3013 = vpop.f32.mrf.mxu0
      %v3014 = vadd.f32 0.0, %v3013
      %v3015 = vpop.f32.mrf.mxu0
      %v3016 = vadd.f32 0.0, %v3015
      %v3017 = vpop.f32.mrf.mxu0
      %v3018 = vadd.f32 0.0, %v3017
      %v3019 = vpop.f32.mrf.mxu0
      %v3020 = vadd.f32 0.0, %v3019
      %3021 = vdwg.mxu0
      %3022 = vmatprep.subr.bf16.mxu0 %v2951
      %3023 = vmatpush1.bf16.msra.mxu0 %v2950
      %3024 = vmatprep.subr.bf16.mxu0 %v2946
      %3025 = vmatpush1.bf16.msra.mxu0 %v2945
      %3026 = vmatprep.subr.bf16.mxu0 %v2941
      %3027 = vmatpush1.bf16.msra.mxu0 %v2940
      %3028 = vmatprep.subr.bf16.mxu0 %v2936
      %3029 = vmatpush1.bf16.msra.mxu0 %v2935
      %3030 = vmatprep.subr.bf16.mxu0 %v2931
      %3031 = vmatpush1.bf16.msra.mxu0 %v2930
      %3032 = vmatprep.subr.bf16.mxu0 %v2926
      %3033 = vmatpush1.bf16.msra.mxu0 %v2925
      %3034 = vmatprep.subr.bf16.mxu0 %v2921
      %3035 = vmatpush1.bf16.msra.mxu0 %v2920
      %3036 = vmatprep.subr.bf16.mxu0 %v2916
      %3037 = vmatpush1.bf16.msra.mxu0 %v2915
      %3038 = vmatprep.subr.bf16.mxu0 0
      %3039 = vmatpush2.bf16.msra.mxu0 0
      %3040 = vmatprep.subr.bf16.mxu0 0
      %3041 = vmatpush2.bf16.msra.mxu0 0
      %3042 = vmatprep.subr.bf16.mxu0 0
      %3043 = vmatpush2.bf16.msra.mxu0 0
      %3044 = vmatprep.subr.bf16.mxu0 0
      %3045 = vmatpush2.bf16.msra.mxu0 0
      %3046 = vmatprep.subr.bf16.mxu0 0
      %3047 = vmatpush2.bf16.msra.mxu0 0
      %3048 = vmatprep.subr.bf16.mxu0 0
      %3049 = vmatpush2.bf16.msra.mxu0 0
      %3050 = vmatprep.subr.bf16.mxu0 0
      %3051 = vmatpush2.bf16.msra.mxu0 0
      %3052 = vmatprep.subr.bf16.mxu0 0
      %3053 = vmatpush2.bf16.msra.mxu0 0
      %3054 = vmatprep.mubr.bf16.mxu0 0
      %3055 = vmatmul.mubr.bf16.gmra.mxu0 %v2965
      %v3056 = vpop.f32.mrf.mxu0
      %v3057 = vadd.f32 0.0, %v3056
      %v3058 = vpop.f32.mrf.mxu0
      %v3059 = vadd.f32 0.0, %v3058
      %v3060 = vpop.f32.mrf.mxu0
      %v3061 = vadd.f32 0.0, %v3060
      %v3062 = vpop.f32.mrf.mxu0
      %v3063 = vadd.f32 0.0, %v3062
      %3064 = vmatprep.mubr.bf16.mxu0 0
      %3065 = vmatmul.mubr.bf16.gmra.mxu0 %v2966
      %v3066 = vpop.f32.mrf.mxu0
      %v3067 = vadd.f32 0.0, %v3066
      %v3068 = vpop.f32.mrf.mxu0
      %v3069 = vadd.f32 0.0, %v3068
      %v3070 = vpop.f32.mrf.mxu0
      %v3071 = vadd.f32 0.0, %v3070
      %v3072 = vpop.f32.mrf.mxu0
      %v3073 = vadd.f32 0.0, %v3072
      %3074 = vdwg.mxu0
      %3075 = vmatprep.subr.bf16.mxu0 0
      %3076 = vmatpush1.bf16.msra.mxu0 %v2952
      %3077 = vmatprep.subr.bf16.mxu0 0
      %3078 = vmatpush1.bf16.msra.mxu0 %v2947
      %3079 = vmatprep.subr.bf16.mxu0 0
      %3080 = vmatpush1.bf16.msra.mxu0 %v2942
      %3081 = vmatprep.subr.bf16.mxu0 0
      %3082 = vmatpush1.bf16.msra.mxu0 %v2937
      %3083 = vmatprep.subr.bf16.mxu0 0
      %3084 = vmatpush1.bf16.msra.mxu0 %v2932
      %3085 = vmatprep.subr.bf16.mxu0 0
      %3086 = vmatpush1.bf16.msra.mxu0 %v2927
      %3087 = vmatprep.subr.bf16.mxu0 0
      %3088 = vmatpush1.bf16.msra.mxu0 %v2922
      %3089 = vmatprep.subr.bf16.mxu0 0
      %3090 = vmatpush1.bf16.msra.mxu0 %v2917
      %3091 = vmatprep.subr.bf16.mxu0 0
      %3092 = vmatpush2.bf16.msra.mxu0 0
      %3093 = vmatprep.subr.bf16.mxu0 0
      %3094 = vmatpush2.bf16.msra.mxu0 0
      %3095 = vmatprep.subr.bf16.mxu0 0
      %3096 = vmatpush2.bf16.msra.mxu0 0
      %3097 = vmatprep.subr.bf16.mxu0 0
      %3098 = vmatpush2.bf16.msra.mxu0 0
      %3099 = vmatprep.subr.bf16.mxu0 0
      %3100 = vmatpush2.bf16.msra.mxu0 0
      %3101 = vmatprep.subr.bf16.mxu0 0
      %3102 = vmatpush2.bf16.msra.mxu0 0
      %3103 = vmatprep.subr.bf16.mxu0 0
      %3104 = vmatpush2.bf16.msra.mxu0 0
      %3105 = vmatprep.subr.bf16.mxu0 0
      %3106 = vmatpush2.bf16.msra.mxu0 0
      %3107 = vmatprep.mubr.bf16.mxu0 0
      %3108 = vmatmul.mubr.bf16.gmra.mxu0 %v2965
      %v3109 = vpop.f32.mrf.mxu0
      %v3110 = vadd.f32 0.0, %v3109
      %v3111 = vpop.f32.mrf.mxu0
      %v3112 = vpop.f32.mrf.mxu0
      %v3113 = vadd.f32 0.0, %v3112
      %v3114 = vpop.f32.mrf.mxu0
      %3115 = vmatprep.mubr.bf16.mxu0 0
      %3116 = vmatmul.mubr.bf16.gmra.mxu0 %v2966
      %v3117 = vpop.f32.mrf.mxu0
      %v3118 = vadd.f32 0.0, %v3117
      %v3119 = vpop.f32.mrf.mxu0
      %v3120 = vpop.f32.mrf.mxu0
      %v3121 = vadd.f32 0.0, %v3120
      %v3122 = vpop.f32.mrf.mxu0
      %3123 = vdwg.mxu0
      %v3124 = vld [vmem:[%s224] sm:$0xff]
      %v3125 = vld [vmem:[%s224 + $0x8] sm:$0xf]
      %v3126 = vld [vmem:[%s224 + $0xc] sm:$0xff]
      %v3127 = vld [vmem:[%s224 + $0x14] sm:$0xf]
      %v3128 = vld [vmem:[%s224 + $0x18] sm:$0xff]
      %v3129 = vld [vmem:[%s224 + $0x20] sm:$0xf]
      %v3130 = vld [vmem:[%s224 + $0x24] sm:$0xff]
      %v3131 = vld [vmem:[%s224 + $0x2c] sm:$0xf]
      %v3132 = vunpack.c.l.bf16 %v3124
      %v3133 = vunpack.c.h.bf16 %v3124
      %v3134 = vunpack.c.l.bf16 %v3125
      %v3135 = vunpack.c.l.bf16 %v3126
      %v3136 = vunpack.c.h.bf16 %v3126
      %v3137 = vunpack.c.l.bf16 %v3127
      %v3138 = vunpack.c.l.bf16 %v3128
      %v3139 = vunpack.c.h.bf16 %v3128
      %v3140 = vunpack.c.l.bf16 %v3129
      %v3141 = vunpack.c.l.bf16 %v3130
      %v3142 = vunpack.c.h.bf16 %v3130
      %v3143 = vunpack.c.l.bf16 %v3131
      %3156 = vrot.lane.b32.xlu0 %v3004, 19
      %v3157 = vpop.permute.xlu0 %3156
      %3158 = vrot.lane.b32.xlu0 %v3006, 19
      %v3159 = vpop.permute.xlu0 %3158
      %3160 = vrot.lane.b32.xlu0 %v3057, 19
      %v3161 = vpop.permute.xlu0 %3160
      %3162 = vrot.lane.b32.xlu0 %v3008, 19
      %v3163 = vpop.permute.xlu0 %3162
      %3164 = vrot.lane.b32.xlu0 %v3010, 19
      %v3165 = vpop.permute.xlu0 %3164
      %3166 = vrot.lane.b32.xlu0 %v3061, 19
      %v3167 = vpop.permute.xlu0 %3166
      %3168 = vrot.lane.b32.xlu0 %v3014, 19
      %v3169 = vpop.permute.xlu0 %3168
      %3170 = vrot.lane.b32.xlu0 %v3016, 19
      %v3171 = vpop.permute.xlu0 %3170
      %3172 = vrot.lane.b32.xlu0 %v3067, 19
      %v3173 = vpop.permute.xlu0 %3172
      %3174 = vrot.lane.b32.xlu0 %v3018, 19
      %v3175 = vpop.permute.xlu0 %3174
      %3176 = vrot.lane.b32.xlu0 %v3020, 19
      %v3177 = vpop.permute.xlu0 %3176
      %3178 = vrot.lane.b32.xlu0 %v3071, 19
      %v3179 = vpop.permute.xlu0 %3178
      %vm3180 = vcmask 154624
      %v3181 = vsel %vm3180, %v3157, %v3159
      %v3182 = vsel %vm3180, %v3159, %v3161
      %v3183 = vsel %vm3180, %v3163, %v3165
      %v3184 = vsel %vm3180, %v3165, %v3167
      %v3185 = vsel %vm3180, %v3169, %v3171
      %v3186 = vsel %vm3180, %v3171, %v3173
      %v3187 = vsel %vm3180, %v3175, %v3177
      %v3188 = vsel %vm3180, %v3177, %v3179
      %v3201 = vadd.f32 %v3132, %v3157
      %v3202 = vadd.f32 %v3133, %v3181
      %v3203 = vadd.f32 %v3134, %v3182
      %v3204 = vadd.f32 %v3135, %v3163
      %v3205 = vadd.f32 %v3136, %v3183
      %v3206 = vadd.f32 %v3137, %v3184
      %v3207 = vadd.f32 %v3138, %v3169
      %v3208 = vadd.f32 %v3139, %v3185
      %v3209 = vadd.f32 %v3140, %v3186
      %v3210 = vadd.f32 %v3141, %v3175
      %v3211 = vadd.f32 %v3142, %v3187
      %v3212 = vadd.f32 %v3143, %v3188
      %v3213 = vld [vmem:[%s4] sm:$0xff]
      %v3214 = vld [vmem:[%s4 + $0x8] sm:$0xff]
      %v3215 = vld [vmem:[%s4 + $0x10] sm:$0xff]
      %v3216 = vld [vmem:[%s4 + $0x18] sm:$0xff]
      %3218 = vset.pattern.permute.xlu0 0
      %3219 = vperm.xlu0 %3218, %v3213
      %v3220 = vpop.permute.xlu0 %3219
      %3223 = vset.pattern.permute.xlu0 0
      %3224 = vperm.xlu0 %3223, %v3214
      %v3225 = vpop.permute.xlu0 %3224
      %3228 = vset.pattern.permute.xlu0 0
      %3229 = vperm.xlu0 %3228, %v3215
      %v3230 = vpop.permute.xlu0 %3229
      %3233 = vset.pattern.permute.xlu0 0
      %3234 = vperm.xlu0 %3233, %v3216
      %v3235 = vpop.permute.xlu0 %3234
      %v3237 = vadd.f32 %v3201, %v3220
      %v3238 = vadd.f32 %v3202, %v3220
      %v3239 = vadd.f32 %v3203, %v3220
      %v3240 = vadd.f32 %v3204, %v3225
      %v3241 = vadd.f32 %v3205, %v3225
      %v3242 = vadd.f32 %v3206, %v3225
      %v3243 = vadd.f32 %v3207, %v3230
      %v3244 = vadd.f32 %v3208, %v3230
      %v3245 = vadd.f32 %v3209, %v3230
      %v3246 = vadd.f32 %v3210, %v3235
      %v3247 = vadd.f32 %v3211, %v3235
      %v3248 = vadd.f32 %v3212, %v3235
      %v3249 = vmax.f32 %v3237, 0.0
      %v3250 = vmax.f32 %v3238, 0.0
      %v3251 = vmax.f32 %v3239, 0.0
      %v3252 = vmax.f32 %v3240, 0.0
      %v3253 = vmax.f32 %v3241, 0.0
      %v3254 = vmax.f32 %v3242, 0.0
      %v3255 = vmax.f32 %v3243, 0.0
      %v3256 = vmax.f32 %v3244, 0.0
      %v3257 = vmax.f32 %v3245, 0.0
      %v3258 = vmax.f32 %v3246, 0.0
      %v3259 = vmax.f32 %v3247, 0.0
      %v3260 = vmax.f32 %v3248, 0.0
      %3273 = vrot.lane.b32.xlu0 %v3249, 109
      %v3274 = vpop.permute.xlu0 %3273
      %3275 = vrot.lane.b32.xlu0 %v3250, 109
      %v3276 = vpop.permute.xlu0 %3275
      %3277 = vrot.lane.b32.xlu0 %v3251, 109
      %v3278 = vpop.permute.xlu0 %3277
      %3279 = vrot.lane.b32.xlu0 %v3252, 109
      %v3280 = vpop.permute.xlu0 %3279
      %3281 = vrot.lane.b32.xlu0 %v3253, 109
      %v3282 = vpop.permute.xlu0 %3281
      %3283 = vrot.lane.b32.xlu0 %v3254, 109
      %v3284 = vpop.permute.xlu0 %3283
      %3285 = vrot.lane.b32.xlu0 %v3255, 109
      %v3286 = vpop.permute.xlu0 %3285
      %3287 = vrot.lane.b32.xlu0 %v3256, 109
      %v3288 = vpop.permute.xlu0 %3287
      %3289 = vrot.lane.b32.xlu0 %v3257, 109
      %v3290 = vpop.permute.xlu0 %3289
      %3291 = vrot.lane.b32.xlu0 %v3258, 109
      %v3292 = vpop.permute.xlu0 %3291
      %3293 = vrot.lane.b32.xlu0 %v3259, 109
      %v3294 = vpop.permute.xlu0 %3293
      %3295 = vrot.lane.b32.xlu0 %v3260, 109
      %v3296 = vpop.permute.xlu0 %3295
      %vm3297 = vcmask 891904
      %v3298 = vsel %vm3297, %v3274, %v3276
      %v3299 = vsel %vm3297, %v3276, %v3278
      %v3300 = vsel %vm3297, %v3280, %v3282
      %v3301 = vsel %vm3297, %v3282, %v3284
      %v3302 = vsel %vm3297, %v3286, %v3288
      %v3303 = vsel %vm3297, %v3288, %v3290
      %v3304 = vsel %vm3297, %v3292, %v3294
      %v3305 = vsel %vm3297, %v3294, %v3296
      %3318 = vst [vmem:[%s231] sm:$0xff] %v3298
      %3319 = vst [vmem:[%s231 + $0x8] sm:$0xff] %v3299
      %3320 = vst.msk [vmem:[%s231 + $0x10] sm:$0xff] %vm2162, %v3278
      %3321 = vst [vmem:[%s231 + $0x18] sm:$0xff] %v3300
      %3322 = vst [vmem:[%s231 + $0x20] sm:$0xff] %v3301
      %3323 = vst.msk [vmem:[%s231 + $0x28] sm:$0xff] %vm2162, %v3284
      %3324 = vst [vmem:[%s231 + $0x30] sm:$0xff] %v3302
      %3325 = vst [vmem:[%s231 + $0x38] sm:$0xff] %v3303
      %3326 = vst.msk [vmem:[%s231 + $0x40] sm:$0xff] %vm2162, %v3290
      %3327 = vst [vmem:[%s231 + $0x48] sm:$0xff] %v3304
      %3328 = vst [vmem:[%s231 + $0x50] sm:$0xff] %v3305
      %3329 = vst.msk [vmem:[%s231 + $0x58] sm:$0xff] %vm2162, %v3296
      %v3330 = vld [vmem:[%s772] sm:$0xff]
      %v3331 = vld [vmem:[%s772 + $0x8] sm:$0xf]
      %v3332 = vld [vmem:[%s772 + $0xc] sm:$0xff]
      %v3333 = vld [vmem:[%s772 + $0x14] sm:$0xf]
      %v3334 = vld [vmem:[%s772 + $0x18] sm:$0xff]
      %v3335 = vld [vmem:[%s772 + $0x20] sm:$0xf]
      %v3336 = vld [vmem:[%s772 + $0x24] sm:$0xff]
      %v3337 = vld [vmem:[%s772 + $0x2c] sm:$0xf]
      %v3338 = vunpack.c.l.bf16 %v3330
      %v3339 = vunpack.c.h.bf16 %v3330
      %v3340 = vunpack.c.l.bf16 %v3331
      %v3341 = vunpack.c.l.bf16 %v3332
      %v3342 = vunpack.c.h.bf16 %v3332
      %v3343 = vunpack.c.l.bf16 %v3333
      %v3344 = vunpack.c.l.bf16 %v3334
      %v3345 = vunpack.c.h.bf16 %v3334
      %v3346 = vunpack.c.l.bf16 %v3335
      %v3347 = vunpack.c.l.bf16 %v3336
      %v3348 = vunpack.c.h.bf16 %v3336
      %v3349 = vunpack.c.l.bf16 %v3337
      %3358 = vrot.lane.b32.xlu0 %v3057, 115
      %v3359 = vpop.permute.xlu0 %3358
      %3360 = vrot.lane.b32.xlu0 %v3059, 115
      %v3361 = vpop.permute.xlu0 %3360
      %3362 = vrot.lane.b32.xlu0 %v3110, 115
      %v3363 = vpop.permute.xlu0 %3362
      %3364 = vrot.lane.b32.xlu0 %v3061, 115
      %v3365 = vpop.permute.xlu0 %3364
      %3366 = vrot.lane.b32.xlu0 %v3063, 115
      %v3367 = vpop.permute.xlu0 %3366
      %3368 = vrot.lane.b32.xlu0 %v3113, 115
      %v3369 = vpop.permute.xlu0 %3368
      %3370 = vrot.lane.b32.xlu0 %v3067, 115
      %v3371 = vpop.permute.xlu0 %3370
      %3372 = vrot.lane.b32.xlu0 %v3069, 115
      %v3373 = vpop.permute.xlu0 %3372
      %3374 = vrot.lane.b32.xlu0 %v3118, 115
      %v3375 = vpop.permute.xlu0 %3374
      %3376 = vrot.lane.b32.xlu0 %v3071, 115
      %v3377 = vpop.permute.xlu0 %3376
      %3378 = vrot.lane.b32.xlu0 %v3073, 115
      %v3379 = vpop.permute.xlu0 %3378
      %3380 = vrot.lane.b32.xlu0 %v3121, 115
      %v3381 = vpop.permute.xlu0 %3380
      %vm3382 = vcmask 941056
      %v3383 = vsel %vm3382, %v3359, %v3361
      %v3384 = vsel %vm3382, %v3361, %v3363
      %v3385 = vsel %vm3382, %v3365, %v3367
      %v3386 = vsel %vm3382, %v3367, %v3369
      %v3387 = vsel %vm3382, %v3371, %v3373
      %v3388 = vsel %vm3382, %v3373, %v3375
      %v3389 = vsel %vm3382, %v3377, %v3379
      %v3390 = vsel %vm3382, %v3379, %v3381
      %v3403 = vadd.f32 %v3338, %v3383
      %v3404 = vadd.f32 %v3339, %v3384
      %v3405 = vadd.f32 %v3340, %v3363
      %v3406 = vadd.f32 %v3341, %v3385
      %v3407 = vadd.f32 %v3342, %v3386
      %v3408 = vadd.f32 %v3343, %v3369
      %v3409 = vadd.f32 %v3344, %v3387
      %v3410 = vadd.f32 %v3345, %v3388
      %v3411 = vadd.f32 %v3346, %v3375
      %v3412 = vadd.f32 %v3347, %v3389
      %v3413 = vadd.f32 %v3348, %v3390
      %v3414 = vadd.f32 %v3349, %v3381
      %v3415 = vld [vmem:[%s4] sm:$0xff]
      %v3416 = vld [vmem:[%s4 + $0x8] sm:$0xff]
      %v3417 = vld [vmem:[%s4 + $0x10] sm:$0xff]
      %v3418 = vld [vmem:[%s4 + $0x18] sm:$0xff]
      %3420 = vset.pattern.permute.xlu0 0
      %3421 = vperm.xlu0 %3420, %v3415
      %v3422 = vpop.permute.xlu0 %3421
      %3425 = vset.pattern.permute.xlu0 0
      %3426 = vperm.xlu0 %3425, %v3416
      %v3427 = vpop.permute.xlu0 %3426
      %3430 = vset.pattern.permute.xlu0 0
      %3431 = vperm.xlu0 %3430, %v3417
      %v3432 = vpop.permute.xlu0 %3431
      %3435 = vset.pattern.permute.xlu0 0
      %3436 = vperm.xlu0 %3435, %v3418
      %v3437 = vpop.permute.xlu0 %3436
      %v3439 = vadd.f32 %v3403, %v3422
      %v3440 = vadd.f32 %v3404, %v3422
      %v3441 = vadd.f32 %v3405, %v3422
      %v3442 = vadd.f32 %v3406, %v3427
      %v3443 = vadd.f32 %v3407, %v3427
      %v3444 = vadd.f32 %v3408, %v3427
      %v3445 = vadd.f32 %v3409, %v3432
      %v3446 = vadd.f32 %v3410, %v3432
      %v3447 = vadd.f32 %v3411, %v3432
      %v3448 = vadd.f32 %v3412, %v3437
      %v3449 = vadd.f32 %v3413, %v3437
      %v3450 = vadd.f32 %v3414, %v3437
      %v3451 = vmax.f32 %v3439, 0.0
      %v3452 = vmax.f32 %v3440, 0.0
      %v3453 = vmax.f32 %v3441, 0.0
      %v3454 = vmax.f32 %v3442, 0.0
      %v3455 = vmax.f32 %v3443, 0.0
      %v3456 = vmax.f32 %v3444, 0.0
      %v3457 = vmax.f32 %v3445, 0.0
      %v3458 = vmax.f32 %v3446, 0.0
      %v3459 = vmax.f32 %v3447, 0.0
      %v3460 = vmax.f32 %v3448, 0.0
      %v3461 = vmax.f32 %v3449, 0.0
      %v3462 = vmax.f32 %v3450, 0.0
      %3475 = vrot.lane.b32.xlu0 %v3451, 109
      %v3476 = vpop.permute.xlu0 %3475
      %3477 = vrot.lane.b32.xlu0 %v3452, 109
      %v3478 = vpop.permute.xlu0 %3477
      %3479 = vrot.lane.b32.xlu0 %v3453, 109
      %v3480 = vpop.permute.xlu0 %3479
      %3481 = vrot.lane.b32.xlu0 %v3454, 109
      %v3482 = vpop.permute.xlu0 %3481
      %3483 = vrot.lane.b32.xlu0 %v3455, 109
      %v3484 = vpop.permute.xlu0 %3483
      %3485 = vrot.lane.b32.xlu0 %v3456, 109
      %v3486 = vpop.permute.xlu0 %3485
      %3487 = vrot.lane.b32.xlu0 %v3457, 109
      %v3488 = vpop.permute.xlu0 %3487
      %3489 = vrot.lane.b32.xlu0 %v3458, 109
      %v3490 = vpop.permute.xlu0 %3489
      %3491 = vrot.lane.b32.xlu0 %v3459, 109
      %v3492 = vpop.permute.xlu0 %3491
      %3493 = vrot.lane.b32.xlu0 %v3460, 109
      %v3494 = vpop.permute.xlu0 %3493
      %3495 = vrot.lane.b32.xlu0 %v3461, 109
      %v3496 = vpop.permute.xlu0 %3495
      %3497 = vrot.lane.b32.xlu0 %v3462, 109
      %v3498 = vpop.permute.xlu0 %3497
      %v3499 = vsel %vm3297, %v3476, %v3478
      %v3500 = vsel %vm3297, %v3478, %v3480
      %v3501 = vsel %vm3297, %v3482, %v3484
      %v3502 = vsel %vm3297, %v3484, %v3486
      %v3503 = vsel %vm3297, %v3488, %v3490
      %v3504 = vsel %vm3297, %v3490, %v3492
      %v3505 = vsel %vm3297, %v3494, %v3496
      %v3506 = vsel %vm3297, %v3496, %v3498
      %s3519 = scalar_lea.vmem %s231, 96
      %3520 = vst [vmem:[%s3519] sm:$0xff] %v3499
      %3521 = vst [vmem:[%s3519 + $0x8] sm:$0xff] %v3500
      %3522 = vst.msk [vmem:[%s3519 + $0x10] sm:$0xff] %vm2162, %v3480
      %3523 = vst [vmem:[%s3519 + $0x18] sm:$0xff] %v3501
      %3524 = vst [vmem:[%s3519 + $0x20] sm:$0xff] %v3502
      %3525 = vst.msk [vmem:[%s3519 + $0x28] sm:$0xff] %vm2162, %v3486
      %3526 = vst [vmem:[%s3519 + $0x30] sm:$0xff] %v3503
      %3527 = vst [vmem:[%s3519 + $0x38] sm:$0xff] %v3504
      %3528 = vst.msk [vmem:[%s3519 + $0x40] sm:$0xff] %vm2162, %v3492
      %3529 = vst [vmem:[%s3519 + $0x48] sm:$0xff] %v3505
      %3530 = vst [vmem:[%s3519 + $0x50] sm:$0xff] %v3506
      %3531 = vst.msk [vmem:[%s3519 + $0x58] sm:$0xff] %vm2162, %v3498
      %s3532 = smul.u32 2, %s16
      %p3533 = scmp.lt.s32.totalorder %s3532, 3
      %s3534 = scalar_select %p3533, %s3532, 3
      %s3535 = smul.addr %s3534, 12
      %s3536 = smul.addr %s3535, 8
      %s3537 = scalar_lea.vmem %s5, %s3536
      // Predicated region
      $region41: #{feblock_pallas.1} parent=39 // pred_check
        %p3538 = pneg %p144
      $region42: #{feblock_pallas.1} parent=39 // pred_check_branch
        %3540 = sbr.rel (%p3538) target = $region44
      $region43: #{feblock_pallas.1} parent=39 // pred_region
        %s3541 = smul.u32 2, %s16
      $region44: #{feblock_pallas.1} parent=39 // pred_fallthru
        _
    $region40: #{feblock_pallas.1} parent=5 // pred_fallthru
      _
    %p3542 = scmp.le.s32.totalorder 2, %s11
    // Predicated region
    $region45: #{feblock_pallas.1} parent=5 // pred_check
      %p3543 = pneg %p3542
    $region46: #{feblock_pallas.1} parent=5 // pred_check_branch
      %3545 = sbr.rel (%p3543) target = $region48
    $region47: #{feblock_pallas.1} parent=5 // pred_region
      %s3546 = ssub.s32 %s11, 2
      // Predicated region
      $region49: #{feblock_pallas.1} parent=47 // pred_check
        %p3547 = pneg %p150
      $region50: #{feblock_pallas.1} parent=47 // pred_check_branch
        %3549 = sbr.rel (%p3547) target = $region52
      $region51: #{feblock_pallas.1} parent=47 // pred_region
        %s3550 = smul.u32 2, %s17
        %p3551 = scmp.lt.s32.totalorder %s3550, 3
        %s3552 = scalar_select %p3551, %s3550, 3
        %s3553 = smul.addr %s3552, 12
        %s3554 = smul.addr %s3553, 8
        %s3555 = scalar_lea.vmem %s5, %s3554
      $region52: #{feblock_pallas.1} parent=47 // pred_fallthru
        _
    $region48: #{feblock_pallas.1} parent=5 // pred_fallthru
      _
  $region6: #{feblock_pallas.1} parent=0 // loop_footer
    %s15 = sadd.s32 1, %s11
  $region7: #{feblock_pallas.1} parent=0 // loop_footer_branch
    %10 = sbr.rel target = $region3
  $region8: #{feblock_pallas.1} parent=0 // loop_exit
    _

</llo_original>
